<compile_context>
chip_gen: v7x
topology: tpu7x:2x2x1
jax: 0.10.0
libtpu: 0.0.40
codegen_flags: <defaults>
</compile_context>

<pallas_src>
import math
from functools import partial

import numpy as np
import jax
import jax.numpy as jnp
from jax.experimental import pallas as pl
from jax.experimental.pallas import tpu as pltpu

# ----------------------------- config -------------------------------------
DIM = 32
NUM_HEADS = 4
WINDOW_SIZE = (4, 2, 2)
SHIFT_SIZE = (2, 1, 1)
MLP_RATIO = 4.0
T, H, W = 4, 4, 4
B = 2
LN_EPS = 1e-5          # torch.nn.LayerNorm default
NEG_BIG = -1e9         # cross-window / cross-batch logit mask (exp underflows to exactly 0)


# ----------------------------- small math helpers --------------------------
def _erf_f32(x):
    # Abramowitz & Stegun 7.1.26, |err| < 1.5e-7; matches exact-erf GELU closely.
    a1, a2, a3, a4, a5 = 0.254829592, -0.284496736, 1.421413741, -1.453152027, 1.061405429
    p = 0.3275911
    s = jnp.where(x < 0.0, -1.0, 1.0)
    ax = jnp.abs(x)
    t = 1.0 / (1.0 + p * ax)
    poly = ((((a5 * t + a4) * t + a3) * t + a2) * t + a1) * t
    return s * (1.0 - poly * jnp.exp(-ax * ax))


def _gelu_exact(x):
    return 0.5 * x * (1.0 + _erf_f32(x * (1.0 / math.sqrt(2.0))))


# ----------------------------- fused Pallas kernel -------------------------
def _swin_block_kernel(x_ref, msel_ref, kqkv_ref, pinv_ref,
                       ln1g_ref, ln1b_ref, bqkv_ref, bm_ref,
                       wproj_ref, bproj_ref, ln2g_ref, ln2b_ref,
                       w1_ref, b1_ref, w2_ref, b2_ref, o_ref, *, num_heads):
    # One grid step == `G` batch elements (G adaptive: 1 on v7x, B on v5e/v6e).
    # x_ref: (P, C) = (G*L, C) in the original (token, channel) layout; everything
    # stays resident in VMEM.
    x = x_ref[...]                                            # (P, C) f32
    P, C = x.shape
    hd = C // num_heads
    scale = hd ** (-0.5)
    nsel = msel_ref.shape[0]

    def nt(a, b):                                             # a @ b.T  (contract last dims)
        return jax.lax.dot_general(a, b, (((1,), (1,)), ((), ())),
                                   preferred_element_type=jnp.float32)

    # ---- norm1 (single pass: var = E[x^2] - mu^2) ----------------------------
    mu = jnp.mean(x, axis=-1, keepdims=True)
    var = jnp.mean(x * x, axis=-1, keepdims=True) - mu * mu
    xn = (x - mu) * jax.lax.rsqrt(var + LN_EPS) * ln1g_ref[...] + ln1b_ref[...]

    # ---- reshape/pad/permute/roll/window_partition fused WITH the qkv projection
    #      (kqkv = kmat @ wqkv built at setup):
    #      qkv[p, :] = sum_s (msel[s] ._c xn) @ kqkv[s]   + bqkv
    qkv = jnp.dot(nt(msel_ref[0], xn), kqkv_ref[0],
                  preferred_element_type=jnp.float32)
    for si in range(1, nsel):
        qkv = qkv + jnp.dot(nt(msel_ref[si], xn), kqkv_ref[si],
                            preferred_element_type=jnp.float32)
    qkv = qkv + bqkv_ref[...]

    q = qkv[:, 0:C] * scale
    k = qkv[:, C:2 * C]
    v = qkv[:, 2 * C:3 * C]

    # ---- head-stacked window multi-head attention -----------------------------
    # Qstack rows [h*P:(h+1)*P] hold q with only head h's channels kept, so one
    # (nh*P, C) x (P, C)^T matmul produces every head's scores; the pre-stacked
    # bias/mask constant is block-diagonal over windows (and batches) per head.
    lane = jax.lax.broadcasted_iota(jnp.int32, (1, C), 1)
    hmasks = [jnp.logical_and(lane >= h * hd, lane < (h + 1) * hd).astype(jnp.float32)
              for h in range(num_heads)]
    qstack = jnp.concatenate([q * hm for hm in hmasks], axis=0)   # (nh*P, C)
    scores = nt(qstack, k) + bm_ref[...]                          # (nh*P, P)
    scores = scores - jnp.max(scores, axis=-1, keepdims=True)
    probs = jnp.exp(scores)
    probs = probs * pl.reciprocal(jnp.sum(probs, axis=-1, keepdims=True), approx=True)
    ctx_stack = jnp.dot(probs, v, preferred_element_type=jnp.float32)   # (nh*P, C)
    ctx = ctx_stack[0:P, :] * hmasks[0]
    for h in range(1, num_heads):
        ctx = ctx + ctx_stack[h * P:(h + 1) * P, :] * hmasks[h]

    attn = jnp.dot(ctx, wproj_ref[...], preferred_element_type=jnp.float32) + bproj_ref[...]

    # ---- window_reverse + roll-back + crop == one (block-diag) row permutation;
    #      residual ------------------------------------------------------------
    x2 = x + jnp.dot(pinv_ref[...], attn, preferred_element_type=jnp.float32)

    # ---- norm2 + MLP + residual (fused) ---------------------------------------
    mu2 = jnp.mean(x2, axis=-1, keepdims=True)
    var2 = jnp.mean(x2 * x2, axis=-1, keepdims=True) - mu2 * mu2
    xn2 = (x2 - mu2) * jax.lax.rsqrt(var2 + LN_EPS) * ln2g_ref[...] + ln2b_ref[...]
    hmid = jnp.dot(xn2, w1_ref[...], preferred_element_type=jnp.float32) + b1_ref[...]
    hmid = _gelu_exact(hmid)
    y = x2 + jnp.dot(hmid, w2_ref[...], preferred_element_type=jnp.float32) + b2_ref[...]

    o_ref[...] = y


def swin_block_pallas(x, params, consts):
    Bx, L, C = x.shape
    nh = NUM_HEADS
    hidden = params['w1'].shape[1]
    G = consts['batch_per_step']
    steps = Bx // G
    P = G * L                                     # rows per grid step

    x2d = x.reshape(Bx * L, C)
    kernel = partial(_swin_block_kernel, num_heads=nh)

    out2d = pl.pallas_call(
        kernel,
        out_shape=jax.ShapeDtypeStruct((Bx * L, C), jnp.float32),
        grid=(steps,),
        in_specs=[
            pl.BlockSpec((P, C), lambda b: (b, 0)),                 # x (per-step block)
            pl.BlockSpec(tuple(consts['msel'].shape), lambda b: (0, 0, 0)),   # forward selection
            pl.BlockSpec(tuple(consts['kqkv'].shape), lambda b: (0, 0, 0)),   # selection @ wqkv
            pl.BlockSpec((P, P), lambda b: (0, 0)),                 # reverse row permutation
            pl.BlockSpec((1, C), lambda b: (0, 0)),                 # ln1 gamma
            pl.BlockSpec((1, C), lambda b: (0, 0)),                 # ln1 beta
            pl.BlockSpec((1, 3 * C), lambda b: (0, 0)),             # bqkv
            pl.BlockSpec((nh * P, P), lambda b: (0, 0)),            # head-stacked bias+mask
            pl.BlockSpec((C, C), lambda b: (0, 0)),                 # wproj
            pl.BlockSpec((1, C), lambda b: (0, 0)),                 # bproj
            pl.BlockSpec((1, C), lambda b: (0, 0)),                 # ln2 gamma
            pl.BlockSpec((1, C), lambda b: (0, 0)),                 # ln2 beta
            pl.BlockSpec((C, hidden), lambda b: (0, 0)),            # w1
            pl.BlockSpec((1, hidden), lambda b: (0, 0)),            # b1
            pl.BlockSpec((hidden, C), lambda b: (0, 0)),            # w2
            pl.BlockSpec((1, C), lambda b: (0, 0)),                 # b2
        ],
        out_specs=pl.BlockSpec((P, C), lambda b: (b, 0)),
        compiler_params=pltpu.CompilerParams(dimension_semantics=("parallel",)),
    )(x2d, consts['msel'], consts['kqkv'], consts['pinv'],
      params['ln1_g'].reshape(1, C), params['ln1_b'].reshape(1, C),
      params['bqkv'].reshape(1, 3 * C),
      consts['bmstack'],
      params['wproj'], params['bproj'].reshape(1, C),
      params['ln2_g'].reshape(1, C), params['ln2_b'].reshape(1, C),
      params['w1'], params['b1'].reshape(1, hidden),
      params['w2'], params['b2'].reshape(1, C))

    return out2d.reshape(Bx, L, C)      # row-major reinterpretation; no data movement


# -------------- faithful numpy transcriptions of the module's glue ----------
def window_partition_np(x, window_size):
    Bx, Tx, Hx, Wx, C = x.shape
    Tw, Hw, Ww = window_size
    x = x.reshape(Bx, Tx // Tw, Tw, Hx // Hw, Hw, Wx // Ww, Ww, C)
    return x.transpose(0, 1, 3, 5, 2, 4, 6, 7).reshape(-1, Tw, Hw, Ww, C)


def window_reverse_np(windows, window_size, Tx, Hx, Wx):
    # exact transcription of the module's window_reverse (including its permute order)
    Tw, Hw, Ww = window_size
    num_windows = Tx * Hx * Wx // (Hw * Ww * Tw)
    Bx = windows.shape[0] // num_windows
    C = windows.shape[-1]
    x = windows.reshape(Bx, Tx // Tw, Hx // Hw, Wx // Ww, Tw, Hw, Ww, C)
    x = x.transpose(0, 1, 2, 4, 3, 5, 6, 7)
    return x.reshape(Bx, Tx, Hx, Wx, C)


def build_rel_pos_index(window_size):
    wt, wh, ww = window_size
    coords = np.stack(np.meshgrid(np.arange(wt), np.arange(wh), np.arange(ww),
                                  indexing='ij'))
    cf = coords.reshape(3, -1)
    rel = cf[:, :, None] - cf[:, None, :]
    rel = np.ascontiguousarray(rel.transpose(1, 2, 0)).astype(np.int64)
    rel[:, :, 0] += wt - 1
    rel[:, :, 1] += wh - 1
    rel[:, :, 2] += ww - 1
    rel[:, :, 0] *= (2 * wh - 1) * (2 * ww - 1)
    return rel.sum(-1)  # (N, N)


def build_attn_mask(Tp, Hp, Wp, window_size, shift_size):
    wt, wh, ww = window_size
    st, sh, sw = shift_size
    img_mask = np.zeros((1, Tp, Hp, Wp, 1), np.float32)
    t_slices = (slice(0, -wt), slice(-wt, -st), slice(-st, None)) if st > 0 else (slice(None),)
    h_slices = (slice(0, -wh), slice(-wh, -sh), slice(-sh, None)) if sh > 0 else (slice(None),)
    w_slices = (slice(0, -ww), slice(-ww, -sw), slice(-sw, None)) if sw > 0 else (slice(None),)
    cnt = 0
    for ts in t_slices:
        for hs in h_slices:
            for ws in w_slices:
                img_mask[:, ts, hs, ws, :] = cnt
                cnt += 1
    mw = window_partition_np(img_mask, window_size)
    N = wt * wh * ww
    mw = mw.reshape(-1, N)
    am = mw[:, None, :] - mw[:, :, None]
    return np.where(am != 0, -100.0, 0.0).astype(np.float32)   # (nW, N, N)


# -------------- setup-time constants for the fused kernel -------------------
def build_window_maps():
    """Trace the module's reshape/pad/permute/roll/window glue (per batch element)
    with flat indices and verify the structure used by the in-kernel factorization:
        win[p, m] = xn[2*m + r(p), c(p)]        (forward)
        orig[l, :] = win[p_l(l), :]             (reverse: pure row permutation)
    """
    wt, wh, ww = WINDOW_SIZE
    st, sh, sw = SHIFT_SIZE
    N = wt * wh * ww
    L = T * H * W
    C = DIM
    pad_t = (wt - T % wt) % wt
    pad_h = (wh - H % wh) % wh
    pad_w = (ww - W % ww) % ww
    # TODO(synk): padded T/H/W path is not fused (pads are 0 for this configuration).
    assert pad_t == 0 and pad_h == 0 and pad_w == 0
    nW = L // N
    P = nW * N                                   # == L for this config

    # forward: original (L, C) -> window layout (nW*N, C), traced with flat indices
    fidx = np.arange(L * C).reshape(1, L, C)
    x5 = fidx.reshape(1, C, H, W, T)             # the module's (quirky) reshape
    x5 = x5.transpose(0, 4, 2, 3, 1)             # (1, T, H, W, C)
    shifted = np.roll(x5, shift=(-st, -sh, -sw), axis=(1, 2, 3))
    gfwd = window_partition_np(shifted, WINDOW_SIZE).reshape(P, C)

    l_of, c_of = gfwd // C, gfwd % C
    r_p = l_of[:, 0] % 2
    c_p = c_of[:, 0]
    m_idx = np.arange(C)
    assert np.array_equal(l_of, 2 * m_idx[None, :] + r_p[:, None])
    assert np.array_equal(c_of, np.broadcast_to(c_p[:, None], c_of.shape))

    # reverse: window layout -> original (L, C)
    ridx = np.arange(P * C).reshape(nW, N, C)
    aw = ridx.reshape(-1, wt, wh, ww, C)
    back = window_reverse_np(aw, WINDOW_SIZE, T, H, W)
    back = np.roll(back, shift=(st, sh, sw), axis=(1, 2, 3))
    back = back[:, :T, :H, :W, :].reshape(L, C)
    p_src, m_src = back // C, back % C
    assert np.array_equal(m_src, np.broadcast_to(np.arange(C)[None, :], (L, C)))
    p_l = p_src[:, 0]
    assert np.array_equal(p_src, np.broadcast_to(p_l[:, None], (L, C)))
    return r_p, c_p, p_l


def build_selection_constants(G, wqkv_np):
    """Batch-block selection constants for G batch elements per grid step, with the
    qkv weight folded in (removes the explicit winx materialization in-kernel)."""
    r_p, c_p, p_l = build_window_maps()
    L = T * H * W
    C = DIM
    P = G * L

    # kqkv_r[r] = kmat[r] @ wqkv  (kmat[r, 2m+r, m] = 1)
    kmat = np.zeros((2, L, C), np.float32)
    m = np.arange(C)
    for r in (0, 1):
        kmat[r, 2 * m + r, m] = 1.0
    kqkv_r = np.einsum('rlc,cd->rld', kmat, wqkv_np.astype(np.float32))  # (2, L, 3C)

    msel = np.zeros((2 * G, P, C), np.float32)
    kqkv = np.zeros((2 * G, P, 3 * C), np.float32)
    pinv = np.zeros((P, P), np.float32)
    p_idx = np.arange(L)
    for g in range(G):
        for r in (0, 1):
            si = 2 * g + r
            rows = g * L + p_idx[r_p == r]
            msel[si, rows, c_p[r_p == r]] = 1.0
            kqkv[si, g * L:(g + 1) * L, :] = kqkv_r[r]
        pinv[g * L + np.arange(L), g * L + p_l] = 1.0
    return msel, kqkv, pinv


def build_stacked_bias_mask(params, G):
    """Relative-position bias + shift mask, pre-combined and head-stacked:
    shape (nh*P, P), block-diagonal over (batch, window); cross entries NEG_BIG."""
    wt, wh, ww = WINDOW_SIZE
    N = wt * wh * ww
    nh = NUM_HEADS
    L = T * H * W
    nW = L // N
    P = G * L
    idx = build_rel_pos_index(WINDOW_SIZE)
    table = np.asarray(params['rpb_table']).astype(np.float32)
    rel = table[idx.reshape(-1)].reshape(N, N, nh).transpose(2, 0, 1)     # (nh, N, N)
    shift_mask = build_attn_mask(T, H, W, WINDOW_SIZE, SHIFT_SIZE)        # (nW, N, N)
    big = np.full((nh, P, P), NEG_BIG, np.float32)
    for g in range(G):
        for w in range(nW):
            o = g * L + w * N
            big[:, o:o + N, o:o + N] = rel + shift_mask[w][None]
    return jnp.asarray(big.reshape(nh * P, P))


def pick_batch_per_step(batch):
    """v7x has 2 TensorCores/chip: keep one batch element per grid step so the
    'parallel' grid axis feeds both cores.  Single-core chips (v5e/v6e): fuse
    all batch elements into a single grid step."""
    try:
        kind = jax.devices()[0].device_kind.lower()
    except Exception:
        kind = ""
    return 1 if "7" in kind else batch


def prepare_block_constants(params, batch_per_step):
    # NOTE: these constants depend on params (wqkv, rpb_table); rebuild them if the
    # parameters change (inference-time usage assumed).
    G = batch_per_step
    msel, kqkv, pinv = build_selection_constants(G, np.asarray(params['wqkv']))
    return dict(batch_per_step=G,
                msel=jnp.asarray(msel), kqkv=jnp.asarray(kqkv), pinv=jnp.asarray(pinv),
                bmstack=build_stacked_bias_mask(params, G))


# ----------------------------- pure-JAX reference ---------------------------
def ln_ref(x, g, b):
    mu = x.mean(-1, keepdims=True)
    var = ((x - mu) ** 2).mean(-1, keepdims=True)
    return (x - mu) / jnp.sqrt(var + LN_EPS) * g + b


def window_partition_jax(x, window_size):
    Bx, Tx, Hx, Wx, C = x.shape
    Tw, Hw, Ww = window_size
    x = x.reshape(Bx, Tx // Tw, Tw, Hx // Hw, Hw, Wx // Ww, Ww, C)
    return jnp.transpose(x, (0, 1, 3, 5, 2, 4, 6, 7)).reshape(-1, Tw, Hw, Ww, C)


def window_reverse_jax(windows, window_size, Tx, Hx, Wx):
    Tw, Hw, Ww = window_size
    num_windows = Tx * Hx * Wx // (Hw * Ww * Tw)
    Bx = windows.shape[0] // num_windows
    C = windows.shape[-1]
    x = windows.reshape(Bx, Tx // Tw, Hx // Hw, Wx // Ww, Tw, Hw, Ww, C)
    x = jnp.transpose(x, (0, 1, 2, 4, 3, 5, 6, 7))
    return x.reshape(Bx, Tx, Hx, Wx, C)


def attn_ref(xw, mask_full, rel_bias, wqkv, bqkv, wproj, bproj, num_heads):
    B_, N, C = xw.shape
    hd = C // num_heads
    qkv = xw @ wqkv + bqkv
    qkv = qkv.reshape(B_, N, 3, num_heads, hd).transpose(2, 0, 3, 1, 4)
    q, k, v = qkv[0] * hd ** (-0.5), qkv[1], qkv[2]
    a = jnp.einsum('bhnd,bhmd->bhnm', q, k)
    a = a + rel_bias[None] + mask_full[:, None]
    a = jax.nn.softmax(a, axis=-1)
    out = jnp.einsum('bhnm,bhmd->bhnd', a, v).transpose(0, 2, 1, 3).reshape(B_, N, C)
    return out @ wproj + bproj


def swin_block_reference(x, params, attn_mask):
    Bx, L, C = x.shape
    wt, wh, ww = WINDOW_SIZE
    st, sh, sw = SHIFT_SIZE
    nh = NUM_HEADS
    N = wt * wh * ww
    shortcut = x
    xn = ln_ref(x, params['ln1_g'], params['ln1_b'])
    x5 = xn.reshape(Bx, C, H, W, T)
    pad_t = (wt - T % wt) % wt
    pad_h = (wh - H % wh) % wh
    pad_w = (ww - W % ww) % ww
    x5 = jnp.pad(x5, ((0, 0), (0, 0), (0, pad_h), (0, pad_w), (0, pad_t)))
    x5 = jnp.transpose(x5, (0, 4, 2, 3, 1))
    _, Tp, Hp, Wp, _ = x5.shape
    if any(s > 0 for s in SHIFT_SIZE):
        shifted = jnp.roll(x5, shift=(-st, -sh, -sw), axis=(1, 2, 3))
        mask = jnp.asarray(attn_mask)
    else:
        shifted = x5
        mask = None
    xw = window_partition_jax(shifted, WINDOW_SIZE).reshape(-1, N, C)
    B_ = xw.shape[0]
    if mask is None:
        mask_full = jnp.zeros((B_, N, N), jnp.float32)
    else:
        nW = mask.shape[0]
        mask_full = jnp.tile(mask, (B_ // nW, 1, 1))
    idx = jnp.asarray(build_rel_pos_index(WINDOW_SIZE), dtype=jnp.int32)
    rel_bias = params['rpb_table'][idx.reshape(-1)].reshape(N, N, nh)
    rel_bias = jnp.transpose(rel_bias, (2, 0, 1))
    attn_out = attn_ref(xw, mask_full, rel_bias, params['wqkv'], params['bqkv'],
                        params['wproj'], params['bproj'], nh)
    attn_out = attn_out.reshape(-1, wt, wh, ww, C)
    shifted = window_reverse_jax(attn_out, WINDOW_SIZE, Tp, Hp, Wp)
    if any(s > 0 for s in SHIFT_SIZE):
        x5 = jnp.roll(shifted, shift=(st, sh, sw), axis=(1, 2, 3))
    else:
        x5 = shifted
    x5 = x5[:, :T, :H, :W, :]
    x2 = shortcut + x5.reshape(Bx, T * H * W, C)
    xn2 = ln_ref(x2, params['ln2_g'], params['ln2_b'])
    hdn = jax.nn.gelu(xn2 @ params['w1'] + params['b1'], approximate=False)
    return x2 + (hdn @ params['w2'] + params['b2'])


# ----------------------------- params --------------------------------------
def init_params(key):
    keys = jax.random.split(key, 10)
    dim, nh = DIM, NUM_HEADS
    hidden = int(dim * MLP_RATIO)
    wt, wh, ww = WINDOW_SIZE
    table_size = (2 * wt - 1) * (2 * wh - 1) * (2 * ww - 1)

    def nrm(k, shape, s=0.02):
        return s * jax.random.normal(k, shape, jnp.float32)

    return dict(
        ln1_g=jnp.ones((dim,), jnp.float32),
        ln1_b=jnp.zeros((dim,), jnp.float32),
        ln2_g=jnp.ones((dim,), jnp.float32),
        ln2_b=jnp.zeros((dim,), jnp.float32),
        wqkv=nrm(keys[0], (dim, 3 * dim)),     # = torch qkv.weight.T
        bqkv=nrm(keys[1], (3 * dim,)),
        wproj=nrm(keys[2], (dim, dim)),        # = torch proj.weight.T
        bproj=nrm(keys[3], (dim,)),
        rpb_table=0.02 * jax.random.truncated_normal(
            keys[4], -2.0, 2.0, (table_size, nh), jnp.float32),
        w1=nrm(keys[5], (dim, hidden)),        # = torch fc1.weight.T
        b1=nrm(keys[6], (hidden,)),
        w2=nrm(keys[7], (hidden, dim)),        # = torch fc2.weight.T
        b2=nrm(keys[8], (dim,)),
    )


if __name__ == "__main__":
    key = jax.random.PRNGKey(0)
    kx, kp = jax.random.split(key)
    params = init_params(kp)

    L = T * H * W
    x = jax.random.normal(kx, (B, L, DIM), jnp.float32)

    G = pick_batch_per_step(B)                  # 1 step/batch on v7x; fully fused on v5e/v6e
    consts = prepare_block_constants(params, G)  # built once, outside the hot path

    out = swin_block_pallas(x, params, consts)
    out = jax.block_until_ready(out)

    attn_mask = build_attn_mask(T, H, W, WINDOW_SIZE, SHIFT_SIZE)
    ref = jax.block_until_ready(swin_block_reference(x, params, attn_mask))

    assert out.shape == (B, L, DIM)
    err = float(jnp.max(jnp.abs(out - ref)))
    assert err < 2e-2, f"max abs err {err}"
    print("KERNEL_OK")
</pallas_src>

<mosaic_0001>
module attributes {stable_mosaic.version = 11 : i64} {
  func.func @_swin_block_kernel(%arg0: i32, %arg1: memref<128x32xf32, #tpu.memory_space<vmem>>, %arg2: memref<4x128x32xf32, #tpu.memory_space<vmem>>, %arg3: memref<4x128x96xf32, #tpu.memory_space<vmem>>, %arg4: memref<128x128xf32, #tpu.memory_space<vmem>>, %arg5: memref<1x32xf32, #tpu.memory_space<vmem>>, %arg6: memref<1x32xf32, #tpu.memory_space<vmem>>, %arg7: memref<1x96xf32, #tpu.memory_space<vmem>>, %arg8: memref<512x128xf32, #tpu.memory_space<vmem>>, %arg9: memref<32x32xf32, #tpu.memory_space<vmem>>, %arg10: memref<1x32xf32, #tpu.memory_space<vmem>>, %arg11: memref<1x32xf32, #tpu.memory_space<vmem>>, %arg12: memref<1x32xf32, #tpu.memory_space<vmem>>, %arg13: memref<32x128xf32, #tpu.memory_space<vmem>>, %arg14: memref<1x128xf32, #tpu.memory_space<vmem>>, %arg15: memref<128x32xf32, #tpu.memory_space<vmem>>, %arg16: memref<1x32xf32, #tpu.memory_space<vmem>>, %arg17: memref<128x32xf32, #tpu.memory_space<vmem>>) attributes {dimension_semantics = [#tpu.dimension_semantics<parallel>], iteration_bounds = array<i64: 1>, scalar_prefetch = 0 : i64, scratch_operands = 0 : i64, tpu.core_type = #tpu.core_type<tc>, window_params = [{transform_indices = @transform_0, window_bounds = array<i64: 128, 32>}, {pipeline_mode = #tpu.pipeline_mode<synchronous>, transform_indices = @transform_1, window_bounds = array<i64: 4, 128, 32>}, {pipeline_mode = #tpu.pipeline_mode<synchronous>, transform_indices = @transform_2, window_bounds = array<i64: 4, 128, 96>}, {pipeline_mode = #tpu.pipeline_mode<synchronous>, transform_indices = @transform_3, window_bounds = array<i64: 128, 128>}, {pipeline_mode = #tpu.pipeline_mode<synchronous>, transform_indices = @transform_4, window_bounds = array<i64: 1, 32>}, {pipeline_mode = #tpu.pipeline_mode<synchronous>, transform_indices = @transform_5, window_bounds = array<i64: 1, 32>}, {pipeline_mode = #tpu.pipeline_mode<synchronous>, transform_indices = @transform_6, window_bounds = array<i64: 1, 96>}, {pipeline_mode = #tpu.pipeline_mode<synchronous>, transform_indices = @transform_7, window_bounds = array<i64: 512, 128>}, {pipeline_mode = #tpu.pipeline_mode<synchronous>, transform_indices = @transform_8, window_bounds = array<i64: 32, 32>}, {pipeline_mode = #tpu.pipeline_mode<synchronous>, transform_indices = @transform_9, window_bounds = array<i64: 1, 32>}, {pipeline_mode = #tpu.pipeline_mode<synchronous>, transform_indices = @transform_10, window_bounds = array<i64: 1, 32>}, {pipeline_mode = #tpu.pipeline_mode<synchronous>, transform_indices = @transform_11, window_bounds = array<i64: 1, 32>}, {pipeline_mode = #tpu.pipeline_mode<synchronous>, transform_indices = @transform_12, window_bounds = array<i64: 32, 128>}, {pipeline_mode = #tpu.pipeline_mode<synchronous>, transform_indices = @transform_13, window_bounds = array<i64: 1, 128>}, {pipeline_mode = #tpu.pipeline_mode<synchronous>, transform_indices = @transform_14, window_bounds = array<i64: 128, 32>}, {pipeline_mode = #tpu.pipeline_mode<synchronous>, transform_indices = @transform_15, window_bounds = array<i64: 1, 32>}, {transform_indices = @transform_16, window_bounds = array<i64: 128, 32>}]} {
    %c0 = arith.constant 0 : index
    %c0_0 = arith.constant 0 : index
    %0 = vector.load %arg1[%c0, %c0_0] : memref<128x32xf32, #tpu.memory_space<vmem>>, vector<128x32xf32>
    %cst = arith.constant dense<0.000000e+00> : vector<128xf32>
    %1 = vector.multi_reduction <add>, %0, %cst [1] : vector<128x32xf32> to vector<128xf32>
    %2 = vector.shape_cast %1 : vector<128xf32> to vector<128x1xf32>
    %cst_1 = arith.constant 3.200000e+01 : f32
    %3 = vector.broadcast %cst_1 : f32 to vector<128x1xf32>
    %4 = arith.divf %2, %3 : vector<128x1xf32>
    %5 = arith.mulf %0, %0 : vector<128x32xf32>
    %cst_2 = arith.constant dense<0.000000e+00> : vector<128xf32>
    %6 = vector.multi_reduction <add>, %5, %cst_2 [1] : vector<128x32xf32> to vector<128xf32>
    %7 = vector.shape_cast %6 : vector<128xf32> to vector<128x1xf32>
    %cst_3 = arith.constant 3.200000e+01 : f32
    %8 = vector.broadcast %cst_3 : f32 to vector<128x1xf32>
    %9 = arith.divf %7, %8 : vector<128x1xf32>
    %10 = arith.mulf %4, %4 : vector<128x1xf32>
    %11 = arith.subf %9, %10 : vector<128x1xf32>
    %12 = vector.broadcast %4 : vector<128x1xf32> to vector<128x32xf32>
    %13 = arith.subf %0, %12 : vector<128x32xf32>
    %cst_4 = arith.constant 9.99999974E-6 : f32
    %14 = vector.broadcast %cst_4 : f32 to vector<128x1xf32>
    %15 = arith.addf %11, %14 : vector<128x1xf32>
    %16 = math.rsqrt %15 : vector<128x1xf32>
    %17 = vector.broadcast %16 : vector<128x1xf32> to vector<128x32xf32>
    %18 = arith.mulf %13, %17 : vector<128x32xf32>
    %c0_5 = arith.constant 0 : index
    %c0_6 = arith.constant 0 : index
    %19 = vector.load %arg5[%c0_5, %c0_6] : memref<1x32xf32, #tpu.memory_space<vmem>>, vector<1x32xf32>
    %20 = vector.broadcast %19 : vector<1x32xf32> to vector<128x32xf32>
    %21 = arith.mulf %18, %20 : vector<128x32xf32>
    %c0_7 = arith.constant 0 : index
    %c0_8 = arith.constant 0 : index
    %22 = vector.load %arg6[%c0_7, %c0_8] : memref<1x32xf32, #tpu.memory_space<vmem>>, vector<1x32xf32>
    %23 = vector.broadcast %22 : vector<1x32xf32> to vector<128x32xf32>
    %24 = arith.addf %21, %23 : vector<128x32xf32>
    %c0_9 = arith.constant 0 : index
    %c0_10 = arith.constant 0 : index
    %c0_11 = arith.constant 0 : index
    %25 = vector.load %arg2[%c0_9, %c0_10, %c0_11] : memref<4x128x32xf32, #tpu.memory_space<vmem>>, vector<1x128x32xf32>
    %26 = vector.shape_cast %25 : vector<1x128x32xf32> to vector<128x32xf32>
    %cst_12 = arith.constant dense<0.000000e+00> : vector<128x128xf32>
    %27 = tpu.matmul %26, %24, %cst_12 {dimension_numbers = #tpu.dot_dimension_numbers<[1], [1], [0], [0], [0, 0, 1, 0], [], []>} : vector<128x32xf32>, vector<128x32xf32>, vector<128x128xf32> -> vector<128x128xf32>
    %c0_13 = arith.constant 0 : index
    %c0_14 = arith.constant 0 : index
    %c0_15 = arith.constant 0 : index
    %28 = vector.load %arg3[%c0_13, %c0_14, %c0_15] : memref<4x128x96xf32, #tpu.memory_space<vmem>>, vector<1x128x96xf32>
    %29 = vector.shape_cast %28 : vector<1x128x96xf32> to vector<128x96xf32>
    %cst_16 = arith.constant dense<0.000000e+00> : vector<128x96xf32>
    %30 = tpu.matmul %27, %29, %cst_16 {dimension_numbers = #tpu.dot_dimension_numbers<[1], [0], [0], [1], [0, 0, 1, 1], [], []>} : vector<128x128xf32>, vector<128x96xf32>, vector<128x96xf32> -> vector<128x96xf32>
    %c1 = arith.constant 1 : index
    %c0_17 = arith.constant 0 : index
    %c0_18 = arith.constant 0 : index
    %31 = vector.load %arg2[%c1, %c0_17, %c0_18] : memref<4x128x32xf32, #tpu.memory_space<vmem>>, vector<1x128x32xf32>
    %32 = vector.shape_cast %31 : vector<1x128x32xf32> to vector<128x32xf32>
    %cst_19 = arith.constant dense<0.000000e+00> : vector<128x128xf32>
    %33 = tpu.matmul %32, %24, %cst_19 {dimension_numbers = #tpu.dot_dimension_numbers<[1], [1], [0], [0], [0, 0, 1, 0], [], []>} : vector<128x32xf32>, vector<128x32xf32>, vector<128x128xf32> -> vector<128x128xf32>
    %c1_20 = arith.constant 1 : index
    %c0_21 = arith.constant 0 : index
    %c0_22 = arith.constant 0 : index
    %34 = vector.load %arg3[%c1_20, %c0_21, %c0_22] : memref<4x128x96xf32, #tpu.memory_space<vmem>>, vector<1x128x96xf32>
    %35 = vector.shape_cast %34 : vector<1x128x96xf32> to vector<128x96xf32>
    %cst_23 = arith.constant dense<0.000000e+00> : vector<128x96xf32>
    %36 = tpu.matmul %33, %35, %cst_23 {dimension_numbers = #tpu.dot_dimension_numbers<[1], [0], [0], [1], [0, 0, 1, 1], [], []>} : vector<128x128xf32>, vector<128x96xf32>, vector<128x96xf32> -> vector<128x96xf32>
    %37 = arith.addf %30, %36 : vector<128x96xf32>
    %c2 = arith.constant 2 : index
    %c0_24 = arith.constant 0 : index
    %c0_25 = arith.constant 0 : index
    %38 = vector.load %arg2[%c2, %c0_24, %c0_25] : memref<4x128x32xf32, #tpu.memory_space<vmem>>, vector<1x128x32xf32>
    %39 = vector.shape_cast %38 : vector<1x128x32xf32> to vector<128x32xf32>
    %cst_26 = arith.constant dense<0.000000e+00> : vector<128x128xf32>
    %40 = tpu.matmul %39, %24, %cst_26 {dimension_numbers = #tpu.dot_dimension_numbers<[1], [1], [0], [0], [0, 0, 1, 0], [], []>} : vector<128x32xf32>, vector<128x32xf32>, vector<128x128xf32> -> vector<128x128xf32>
    %c2_27 = arith.constant 2 : index
    %c0_28 = arith.constant 0 : index
    %c0_29 = arith.constant 0 : index
    %41 = vector.load %arg3[%c2_27, %c0_28, %c0_29] : memref<4x128x96xf32, #tpu.memory_space<vmem>>, vector<1x128x96xf32>
    %42 = vector.shape_cast %41 : vector<1x128x96xf32> to vector<128x96xf32>
    %cst_30 = arith.constant dense<0.000000e+00> : vector<128x96xf32>
    %43 = tpu.matmul %40, %42, %cst_30 {dimension_numbers = #tpu.dot_dimension_numbers<[1], [0], [0], [1], [0, 0, 1, 1], [], []>} : vector<128x128xf32>, vector<128x96xf32>, vector<128x96xf32> -> vector<128x96xf32>
    %44 = arith.addf %37, %43 : vector<128x96xf32>
    %c3 = arith.constant 3 : index
    %c0_31 = arith.constant 0 : index
    %c0_32 = arith.constant 0 : index
    %45 = vector.load %arg2[%c3, %c0_31, %c0_32] : memref<4x128x32xf32, #tpu.memory_space<vmem>>, vector<1x128x32xf32>
    %46 = vector.shape_cast %45 : vector<1x128x32xf32> to vector<128x32xf32>
    %cst_33 = arith.constant dense<0.000000e+00> : vector<128x128xf32>
    %47 = tpu.matmul %46, %24, %cst_33 {dimension_numbers = #tpu.dot_dimension_numbers<[1], [1], [0], [0], [0, 0, 1, 0], [], []>} : vector<128x32xf32>, vector<128x32xf32>, vector<128x128xf32> -> vector<128x128xf32>
    %c3_34 = arith.constant 3 : index
    %c0_35 = arith.constant 0 : index
    %c0_36 = arith.constant 0 : index
    %48 = vector.load %arg3[%c3_34, %c0_35, %c0_36] : memref<4x128x96xf32, #tpu.memory_space<vmem>>, vector<1x128x96xf32>
    %49 = vector.shape_cast %48 : vector<1x128x96xf32> to vector<128x96xf32>
    %cst_37 = arith.constant dense<0.000000e+00> : vector<128x96xf32>
    %50 = tpu.matmul %47, %49, %cst_37 {dimension_numbers = #tpu.dot_dimension_numbers<[1], [0], [0], [1], [0, 0, 1, 1], [], []>} : vector<128x128xf32>, vector<128x96xf32>, vector<128x96xf32> -> vector<128x96xf32>
    %51 = arith.addf %44, %50 : vector<128x96xf32>
    %c0_38 = arith.constant 0 : index
    %c0_39 = arith.constant 0 : index
    %52 = vector.load %arg7[%c0_38, %c0_39] : memref<1x96xf32, #tpu.memory_space<vmem>>, vector<1x96xf32>
    %53 = vector.broadcast %52 : vector<1x96xf32> to vector<128x96xf32>
    %54 = arith.addf %51, %53 : vector<128x96xf32>
    %55 = vector.extract_strided_slice %54 {offsets = [0, 0], sizes = [128, 32], strides = [1, 1]} : vector<128x96xf32> to vector<128x32xf32>
    %cst_40 = arith.constant 0.353553385 : f32
    %56 = vector.broadcast %cst_40 : f32 to vector<128x32xf32>
    %57 = arith.mulf %55, %56 : vector<128x32xf32>
    %58 = vector.extract_strided_slice %54 {offsets = [0, 32], sizes = [128, 32], strides = [1, 1]} : vector<128x96xf32> to vector<128x32xf32>
    %59 = vector.extract_strided_slice %54 {offsets = [0, 64], sizes = [128, 32], strides = [1, 1]} : vector<128x96xf32> to vector<128x32xf32>
    %60 = tpu.iota {dimensions = array<i32: 1>} : vector<1x32xi32>
    %c0_i32 = arith.constant 0 : i32
    %61 = vector.broadcast %c0_i32 : i32 to vector<1x32xi32>
    %62 = arith.cmpi sge, %60, %61 : vector<1x32xi32>
    %c8_i32 = arith.constant 8 : i32
    %63 = vector.broadcast %c8_i32 : i32 to vector<1x32xi32>
    %64 = arith.cmpi slt, %60, %63 : vector<1x32xi32>
    %65 = arith.andi %62, %64 : vector<1x32xi1>
    %66 = arith.extui %65 : vector<1x32xi1> to vector<1x32xi32>
    %67 = arith.sitofp %66 : vector<1x32xi32> to vector<1x32xf32>
    %c8_i32_41 = arith.constant 8 : i32
    %68 = vector.broadcast %c8_i32_41 : i32 to vector<1x32xi32>
    %69 = arith.cmpi sge, %60, %68 : vector<1x32xi32>
    %c16_i32 = arith.constant 16 : i32
    %70 = vector.broadcast %c16_i32 : i32 to vector<1x32xi32>
    %71 = arith.cmpi slt, %60, %70 : vector<1x32xi32>
    %72 = arith.andi %69, %71 : vector<1x32xi1>
    %73 = arith.extui %72 : vector<1x32xi1> to vector<1x32xi32>
    %74 = arith.sitofp %73 : vector<1x32xi32> to vector<1x32xf32>
    %c16_i32_42 = arith.constant 16 : i32
    %75 = vector.broadcast %c16_i32_42 : i32 to vector<1x32xi32>
    %76 = arith.cmpi sge, %60, %75 : vector<1x32xi32>
    %c24_i32 = arith.constant 24 : i32
    %77 = vector.broadcast %c24_i32 : i32 to vector<1x32xi32>
    %78 = arith.cmpi slt, %60, %77 : vector<1x32xi32>
    %79 = arith.andi %76, %78 : vector<1x32xi1>
    %80 = arith.extui %79 : vector<1x32xi1> to vector<1x32xi32>
    %81 = arith.sitofp %80 : vector<1x32xi32> to vector<1x32xf32>
    %c24_i32_43 = arith.constant 24 : i32
    %82 = vector.broadcast %c24_i32_43 : i32 to vector<1x32xi32>
    %83 = arith.cmpi sge, %60, %82 : vector<1x32xi32>
    %c32_i32 = arith.constant 32 : i32
    %84 = vector.broadcast %c32_i32 : i32 to vector<1x32xi32>
    %85 = arith.cmpi slt, %60, %84 : vector<1x32xi32>
    %86 = arith.andi %83, %85 : vector<1x32xi1>
    %87 = arith.extui %86 : vector<1x32xi1> to vector<1x32xi32>
    %88 = arith.sitofp %87 : vector<1x32xi32> to vector<1x32xf32>
    %89 = vector.broadcast %67 : vector<1x32xf32> to vector<128x32xf32>
    %90 = arith.mulf %57, %89 : vector<128x32xf32>
    %91 = vector.broadcast %74 : vector<1x32xf32> to vector<128x32xf32>
    %92 = arith.mulf %57, %91 : vector<128x32xf32>
    %93 = vector.broadcast %81 : vector<1x32xf32> to vector<128x32xf32>
    %94 = arith.mulf %57, %93 : vector<128x32xf32>
    %95 = vector.broadcast %88 : vector<1x32xf32> to vector<128x32xf32>
    %96 = arith.mulf %57, %95 : vector<128x32xf32>
    %97 = tpu.concatenate %90, %92, %94, %96 in 0 : vector<128x32xf32>, vector<128x32xf32>, vector<128x32xf32>, vector<128x32xf32> -> vector<512x32xf32>
    %cst_44 = arith.constant dense<0.000000e+00> : vector<512x128xf32>
    %98 = tpu.matmul %97, %58, %cst_44 {dimension_numbers = #tpu.dot_dimension_numbers<[1], [1], [0], [0], [0, 0, 1, 0], [], []>} : vector<512x32xf32>, vector<128x32xf32>, vector<512x128xf32> -> vector<512x128xf32>
    %c0_45 = arith.constant 0 : index
    %c0_46 = arith.constant 0 : index
    %99 = vector.load %arg8[%c0_45, %c0_46] : memref<512x128xf32, #tpu.memory_space<vmem>>, vector<512x128xf32>
    %100 = arith.addf %98, %99 : vector<512x128xf32>
    %cst_47 = arith.constant dense<0xFF800000> : vector<512xf32>
    %101 = vector.multi_reduction <maximumf>, %100, %cst_47 [1] : vector<512x128xf32> to vector<512xf32>
    %102 = vector.shape_cast %101 : vector<512xf32> to vector<512x1xf32>
    %103 = vector.broadcast %102 : vector<512x1xf32> to vector<512x128xf32>
    %104 = arith.subf %100, %103 : vector<512x128xf32>
    %105 = math.exp %104 : vector<512x128xf32>
    %cst_48 = arith.constant dense<0.000000e+00> : vector<512xf32>
    %106 = vector.multi_reduction <add>, %105, %cst_48 [1] : vector<512x128xf32> to vector<512xf32>
    %107 = vector.shape_cast %106 : vector<512xf32> to vector<512x1xf32>
    %108 = tpu.reciprocal %107 {approx = true} : vector<512x1xf32> -> vector<512x1xf32>
    %109 = vector.broadcast %108 : vector<512x1xf32> to vector<512x128xf32>
    %110 = arith.mulf %105, %109 : vector<512x128xf32>
    %cst_49 = arith.constant dense<0.000000e+00> : vector<512x32xf32>
    %111 = tpu.matmul %110, %59, %cst_49 {dimension_numbers = #tpu.dot_dimension_numbers<[1], [0], [0], [1], [0, 0, 1, 1], [], []>} : vector<512x128xf32>, vector<128x32xf32>, vector<512x32xf32> -> vector<512x32xf32>
    %112 = vector.extract_strided_slice %111 {offsets = [0, 0], sizes = [128, 32], strides = [1, 1]} : vector<512x32xf32> to vector<128x32xf32>
    %113 = vector.broadcast %67 : vector<1x32xf32> to vector<128x32xf32>
    %114 = arith.mulf %112, %113 : vector<128x32xf32>
    %115 = vector.extract_strided_slice %111 {offsets = [128, 0], sizes = [128, 32], strides = [1, 1]} : vector<512x32xf32> to vector<128x32xf32>
    %116 = vector.broadcast %74 : vector<1x32xf32> to vector<128x32xf32>
    %117 = arith.mulf %115, %116 : vector<128x32xf32>
    %118 = arith.addf %114, %117 : vector<128x32xf32>
    %119 = vector.extract_strided_slice %111 {offsets = [256, 0], sizes = [128, 32], strides = [1, 1]} : vector<512x32xf32> to vector<128x32xf32>
    %120 = vector.broadcast %81 : vector<1x32xf32> to vector<128x32xf32>
    %121 = arith.mulf %119, %120 : vector<128x32xf32>
    %122 = arith.addf %118, %121 : vector<128x32xf32>
    %123 = vector.extract_strided_slice %111 {offsets = [384, 0], sizes = [128, 32], strides = [1, 1]} : vector<512x32xf32> to vector<128x32xf32>
    %124 = vector.broadcast %88 : vector<1x32xf32> to vector<128x32xf32>
    %125 = arith.mulf %123, %124 : vector<128x32xf32>
    %126 = arith.addf %122, %125 : vector<128x32xf32>
    %c0_50 = arith.constant 0 : index
    %c0_51 = arith.constant 0 : index
    %127 = vector.load %arg9[%c0_50, %c0_51] : memref<32x32xf32, #tpu.memory_space<vmem>>, vector<32x32xf32>
    %cst_52 = arith.constant dense<0.000000e+00> : vector<128x32xf32>
    %128 = tpu.matmul %126, %127, %cst_52 {dimension_numbers = #tpu.dot_dimension_numbers<[1], [0], [0], [1], [0, 0, 1, 1], [], []>} : vector<128x32xf32>, vector<32x32xf32>, vector<128x32xf32> -> vector<128x32xf32>
    %c0_53 = arith.constant 0 : index
    %c0_54 = arith.constant 0 : index
    %129 = vector.load %arg10[%c0_53, %c0_54] : memref<1x32xf32, #tpu.memory_space<vmem>>, vector<1x32xf32>
    %130 = vector.broadcast %129 : vector<1x32xf32> to vector<128x32xf32>
    %131 = arith.addf %128, %130 : vector<128x32xf32>
    %c0_55 = arith.constant 0 : index
    %c0_56 = arith.constant 0 : index
    %132 = vector.load %arg4[%c0_55, %c0_56] : memref<128x128xf32, #tpu.memory_space<vmem>>, vector<128x128xf32>
    %cst_57 = arith.constant dense<0.000000e+00> : vector<128x32xf32>
    %133 = tpu.matmul %132, %131, %cst_57 {dimension_numbers = #tpu.dot_dimension_numbers<[1], [0], [0], [1], [0, 0, 1, 1], [], []>} : vector<128x128xf32>, vector<128x32xf32>, vector<128x32xf32> -> vector<128x32xf32>
    %134 = arith.addf %0, %133 : vector<128x32xf32>
    %cst_58 = arith.constant dense<0.000000e+00> : vector<128xf32>
    %135 = vector.multi_reduction <add>, %134, %cst_58 [1] : vector<128x32xf32> to vector<128xf32>
    %136 = vector.shape_cast %135 : vector<128xf32> to vector<128x1xf32>
    %cst_59 = arith.constant 3.200000e+01 : f32
    %137 = vector.broadcast %cst_59 : f32 to vector<128x1xf32>
    %138 = arith.divf %136, %137 : vector<128x1xf32>
    %139 = arith.mulf %134, %134 : vector<128x32xf32>
    %cst_60 = arith.constant dense<0.000000e+00> : vector<128xf32>
    %140 = vector.multi_reduction <add>, %139, %cst_60 [1] : vector<128x32xf32> to vector<128xf32>
    %141 = vector.shape_cast %140 : vector<128xf32> to vector<128x1xf32>
    %cst_61 = arith.constant 3.200000e+01 : f32
    %142 = vector.broadcast %cst_61 : f32 to vector<128x1xf32>
    %143 = arith.divf %141, %142 : vector<128x1xf32>
    %144 = arith.mulf %138, %138 : vector<128x1xf32>
    %145 = arith.subf %143, %144 : vector<128x1xf32>
    %146 = vector.broadcast %138 : vector<128x1xf32> to vector<128x32xf32>
    %147 = arith.subf %134, %146 : vector<128x32xf32>
    %cst_62 = arith.constant 9.99999974E-6 : f32
    %148 = vector.broadcast %cst_62 : f32 to vector<128x1xf32>
    %149 = arith.addf %145, %148 : vector<128x1xf32>
    %150 = math.rsqrt %149 : vector<128x1xf32>
    %151 = vector.broadcast %150 : vector<128x1xf32> to vector<128x32xf32>
    %152 = arith.mulf %147, %151 : vector<128x32xf32>
    %c0_63 = arith.constant 0 : index
    %c0_64 = arith.constant 0 : index
    %153 = vector.load %arg11[%c0_63, %c0_64] : memref<1x32xf32, #tpu.memory_space<vmem>>, vector<1x32xf32>
    %154 = vector.broadcast %153 : vector<1x32xf32> to vector<128x32xf32>
    %155 = arith.mulf %152, %154 : vector<128x32xf32>
    %c0_65 = arith.constant 0 : index
    %c0_66 = arith.constant 0 : index
    %156 = vector.load %arg12[%c0_65, %c0_66] : memref<1x32xf32, #tpu.memory_space<vmem>>, vector<1x32xf32>
    %157 = vector.broadcast %156 : vector<1x32xf32> to vector<128x32xf32>
    %158 = arith.addf %155, %157 : vector<128x32xf32>
    %c0_67 = arith.constant 0 : index
    %c0_68 = arith.constant 0 : index
    %159 = vector.load %arg13[%c0_67, %c0_68] : memref<32x128xf32, #tpu.memory_space<vmem>>, vector<32x128xf32>
    %cst_69 = arith.constant dense<0.000000e+00> : vector<128x128xf32>
    %160 = tpu.matmul %158, %159, %cst_69 {dimension_numbers = #tpu.dot_dimension_numbers<[1], [0], [0], [1], [0, 0, 1, 1], [], []>} : vector<128x32xf32>, vector<32x128xf32>, vector<128x128xf32> -> vector<128x128xf32>
    %c0_70 = arith.constant 0 : index
    %c0_71 = arith.constant 0 : index
    %161 = vector.load %arg14[%c0_70, %c0_71] : memref<1x128xf32, #tpu.memory_space<vmem>>, vector<1x128xf32>
    %162 = vector.broadcast %161 : vector<1x128xf32> to vector<128x128xf32>
    %163 = arith.addf %160, %162 : vector<128x128xf32>
    %cst_72 = arith.constant 5.000000e-01 : f32
    %164 = vector.broadcast %cst_72 : f32 to vector<128x128xf32>
    %165 = arith.mulf %164, %163 : vector<128x128xf32>
    %cst_73 = arith.constant 0.707106769 : f32
    %166 = vector.broadcast %cst_73 : f32 to vector<128x128xf32>
    %167 = arith.mulf %163, %166 : vector<128x128xf32>
    %cst_74 = arith.constant 0.000000e+00 : f32
    %168 = vector.broadcast %cst_74 : f32 to vector<128x128xf32>
    %169 = arith.cmpf olt, %167, %168 : vector<128x128xf32>
    %cst_75 = arith.constant -1.000000e+00 : f32
    %cst_76 = arith.constant 1.000000e+00 : f32
    %170 = vector.broadcast %cst_75 : f32 to vector<128x128xf32>
    %171 = vector.broadcast %cst_76 : f32 to vector<128x128xf32>
    %172 = arith.select %169, %170, %171 : vector<128x128xi1>, vector<128x128xf32>
    %173 = math.absf %167 : vector<128x128xf32>
    %cst_77 = arith.constant 0.327591091 : f32
    %174 = vector.broadcast %cst_77 : f32 to vector<128x128xf32>
    %175 = arith.mulf %174, %173 : vector<128x128xf32>
    %cst_78 = arith.constant 1.000000e+00 : f32
    %176 = vector.broadcast %cst_78 : f32 to vector<128x128xf32>
    %177 = arith.addf %176, %175 : vector<128x128xf32>
    %cst_79 = arith.constant 1.000000e+00 : f32
    %178 = vector.broadcast %cst_79 : f32 to vector<128x128xf32>
    %179 = arith.divf %178, %177 : vector<128x128xf32>
    %cst_80 = arith.constant 1.06140542 : f32
    %180 = vector.broadcast %cst_80 : f32 to vector<128x128xf32>
    %181 = arith.mulf %180, %179 : vector<128x128xf32>
    %cst_81 = arith.constant -1.45315206 : f32
    %182 = vector.broadcast %cst_81 : f32 to vector<128x128xf32>
    %183 = arith.addf %181, %182 : vector<128x128xf32>
    %184 = arith.mulf %183, %179 : vector<128x128xf32>
    %cst_82 = arith.constant 1.42141378 : f32
    %185 = vector.broadcast %cst_82 : f32 to vector<128x128xf32>
    %186 = arith.addf %184, %185 : vector<128x128xf32>
    %187 = arith.mulf %186, %179 : vector<128x128xf32>
    %cst_83 = arith.constant -0.284496725 : f32
    %188 = vector.broadcast %cst_83 : f32 to vector<128x128xf32>
    %189 = arith.addf %187, %188 : vector<128x128xf32>
    %190 = arith.mulf %189, %179 : vector<128x128xf32>
    %cst_84 = arith.constant 0.254829586 : f32
    %191 = vector.broadcast %cst_84 : f32 to vector<128x128xf32>
    %192 = arith.addf %190, %191 : vector<128x128xf32>
    %193 = arith.mulf %192, %179 : vector<128x128xf32>
    %cst_85 = arith.constant 0.000000e+00 : f32
    %194 = vector.broadcast %cst_85 : f32 to vector<128x128xf32>
    %195 = arith.subf %194, %173 : vector<128x128xf32>
    %196 = arith.mulf %195, %173 : vector<128x128xf32>
    %197 = math.exp %196 : vector<128x128xf32>
    %198 = arith.mulf %193, %197 : vector<128x128xf32>
    %cst_86 = arith.constant 1.000000e+00 : f32
    %199 = vector.broadcast %cst_86 : f32 to vector<128x128xf32>
    %200 = arith.subf %199, %198 : vector<128x128xf32>
    %201 = arith.mulf %172, %200 : vector<128x128xf32>
    %cst_87 = arith.constant 1.000000e+00 : f32
    %202 = vector.broadcast %cst_87 : f32 to vector<128x128xf32>
    %203 = arith.addf %202, %201 : vector<128x128xf32>
    %204 = arith.mulf %165, %203 : vector<128x128xf32>
    %c0_88 = arith.constant 0 : index
    %c0_89 = arith.constant 0 : index
    %205 = vector.load %arg15[%c0_88, %c0_89] : memref<128x32xf32, #tpu.memory_space<vmem>>, vector<128x32xf32>
    %cst_90 = arith.constant dense<0.000000e+00> : vector<128x32xf32>
    %206 = tpu.matmul %204, %205, %cst_90 {dimension_numbers = #tpu.dot_dimension_numbers<[1], [0], [0], [1], [0, 0, 1, 1], [], []>} : vector<128x128xf32>, vector<128x32xf32>, vector<128x32xf32> -> vector<128x32xf32>
    %207 = arith.addf %134, %206 : vector<128x32xf32>
    %c0_91 = arith.constant 0 : index
    %c0_92 = arith.constant 0 : index
    %208 = vector.load %arg16[%c0_91, %c0_92] : memref<1x32xf32, #tpu.memory_space<vmem>>, vector<1x32xf32>
    %209 = vector.broadcast %208 : vector<1x32xf32> to vector<128x32xf32>
    %210 = arith.addf %207, %209 : vector<128x32xf32>
    %c0_93 = arith.constant 0 : index
    %c0_94 = arith.constant 0 : index
    %211 = vector.load %arg17[%c0_93, %c0_94] : memref<128x32xf32, #tpu.memory_space<vmem>>, vector<128x32xf32>
    tpu.vector_store %arg17[%c0_93, %c0_94], %210 {strides = array<i32>} : memref<128x32xf32, #tpu.memory_space<vmem>>, vector<128x32xf32>,
    return
  }
  func.func @transform_0(%arg0: i32) -> (i32, i32) {
    %c0_i32 = arith.constant 0 : i32
    %c0_i32_0 = arith.constant 0 : i32
    return %arg0, %c0_i32 : i32, i32
  }
  func.func @transform_1(%arg0: i32) -> (i32, i32, i32) {
    %c0_i32 = arith.constant 0 : i32
    %c0_i32_0 = arith.constant 0 : i32
    %c0_i32_1 = arith.constant 0 : i32
    %c0_i32_2 = arith.constant 0 : i32
    return %c0_i32, %c0_i32_0, %c0_i32_1 : i32, i32, i32
  }
  func.func @transform_2(%arg0: i32) -> (i32, i32, i32) {
    %c0_i32 = arith.constant 0 : i32
    %c0_i32_0 = arith.constant 0 : i32
    %c0_i32_1 = arith.constant 0 : i32
    %c0_i32_2 = arith.constant 0 : i32
    return %c0_i32, %c0_i32_0, %c0_i32_1 : i32, i32, i32
  }
  func.func @transform_3(%arg0: i32) -> (i32, i32) {
    %c0_i32 = arith.constant 0 : i32
    %c0_i32_0 = arith.constant 0 : i32
    %c0_i32_1 = arith.constant 0 : i32
    return %c0_i32, %c0_i32_0 : i32, i32
  }
  func.func @transform_4(%arg0: i32) -> (i32, i32) {
    %c0_i32 = arith.constant 0 : i32
    %c0_i32_0 = arith.constant 0 : i32
    %c0_i32_1 = arith.constant 0 : i32
    return %c0_i32, %c0_i32_0 : i32, i32
  }
  func.func @transform_5(%arg0: i32) -> (i32, i32) {
    %c0_i32 = arith.constant 0 : i32
    %c0_i32_0 = arith.constant 0 : i32
    %c0_i32_1 = arith.constant 0 : i32
    return %c0_i32, %c0_i32_0 : i32, i32
  }
  func.func @transform_6(%arg0: i32) -> (i32, i32) {
    %c0_i32 = arith.constant 0 : i32
    %c0_i32_0 = arith.constant 0 : i32
    %c0_i32_1 = arith.constant 0 : i32
    return %c0_i32, %c0_i32_0 : i32, i32
  }
  func.func @transform_7(%arg0: i32) -> (i32, i32) {
    %c0_i32 = arith.constant 0 : i32
    %c0_i32_0 = arith.constant 0 : i32
    %c0_i32_1 = arith.constant 0 : i32
    return %c0_i32, %c0_i32_0 : i32, i32
  }
  func.func @transform_8(%arg0: i32) -> (i32, i32) {
    %c0_i32 = arith.constant 0 : i32
    %c0_i32_0 = arith.constant 0 : i32
    %c0_i32_1 = arith.constant 0 : i32
    return %c0_i32, %c0_i32_0 : i32, i32
  }
  func.func @transform_9(%arg0: i32) -> (i32, i32) {
    %c0_i32 = arith.constant 0 : i32
    %c0_i32_0 = arith.constant 0 : i32
    %c0_i32_1 = arith.constant 0 : i32
    return %c0_i32, %c0_i32_0 : i32, i32
  }
  func.func @transform_10(%arg0: i32) -> (i32, i32) {
    %c0_i32 = arith.constant 0 : i32
    %c0_i32_0 = arith.constant 0 : i32
    %c0_i32_1 = arith.constant 0 : i32
    return %c0_i32, %c0_i32_0 : i32, i32
  }
  func.func @transform_11(%arg0: i32) -> (i32, i32) {
    %c0_i32 = arith.constant 0 : i32
    %c0_i32_0 = arith.constant 0 : i32
    %c0_i32_1 = arith.constant 0 : i32
    return %c0_i32, %c0_i32_0 : i32, i32
  }
  func.func @transform_12(%arg0: i32) -> (i32, i32) {
    %c0_i32 = arith.constant 0 : i32
    %c0_i32_0 = arith.constant 0 : i32
    %c0_i32_1 = arith.constant 0 : i32
    return %c0_i32, %c0_i32_0 : i32, i32
  }
  func.func @transform_13(%arg0: i32) -> (i32, i32) {
    %c0_i32 = arith.constant 0 : i32
    %c0_i32_0 = arith.constant 0 : i32
    %c0_i32_1 = arith.constant 0 : i32
    return %c0_i32, %c0_i32_0 : i32, i32
  }
  func.func @transform_14(%arg0: i32) -> (i32, i32) {
    %c0_i32 = arith.constant 0 : i32
    %c0_i32_0 = arith.constant 0 : i32
    %c0_i32_1 = arith.constant 0 : i32
    return %c0_i32, %c0_i32_0 : i32, i32
  }
  func.func @transform_15(%arg0: i32) -> (i32, i32) {
    %c0_i32 = arith.constant 0 : i32
    %c0_i32_0 = arith.constant 0 : i32
    %c0_i32_1 = arith.constant 0 : i32
    return %c0_i32, %c0_i32_0 : i32, i32
  }
  func.func @transform_16(%arg0: i32) -> (i32, i32) {
    %c0_i32 = arith.constant 0 : i32
    %c0_i32_0 = arith.constant 0 : i32
    return %arg0, %c0_i32 : i32, i32
  }
}

</mosaic_0001>

<llo_original>
// kernel: tpu_custom_call.1
$region0: #{tpu_custom_call.1}
  #allocation0 [shape = 'u32[]', space=smem, size = 0x4, offset = 0x4, fixed_abs, tag = 'smem constant byte address 0x4 - core index']
  #allocation1 [shape = 'u32[144,128]{1,0:T(1,128)}', space=vmem, size = 0x12000, scoped, tag = 'internal scratch']
  %s0 = inlined_call_operand.vmem [shape: f32[128,32], index: 0, kind: input, shape index: {}]
  %s1 = inlined_call_operand.vmem [shape: f32[4,128,32], index: 1, kind: input, shape index: {}]
  %s2 = inlined_call_operand.vmem [shape: f32[4,128,96], index: 2, kind: input, shape index: {}]
  %s3 = inlined_call_operand.vmem [shape: f32[128,128], index: 3, kind: input, shape index: {}]
  %s4 = inlined_call_operand.vmem [shape: f32[1,32], index: 4, kind: input, shape index: {}]
  %s5 = inlined_call_operand.vmem [shape: f32[1,32], index: 5, kind: input, shape index: {}]
  %s6 = inlined_call_operand.vmem [shape: f32[1,96], index: 6, kind: input, shape index: {}]
  %s7 = inlined_call_operand.vmem [shape: f32[512,128], index: 7, kind: input, shape index: {}]
  %s8 = inlined_call_operand.vmem [shape: f32[32,32], index: 8, kind: input, shape index: {}]
  %s9 = inlined_call_operand.vmem [shape: f32[1,32], index: 9, kind: input, shape index: {}]
  %s10 = inlined_call_operand.vmem [shape: f32[1,32], index: 10, kind: input, shape index: {}]
  %s11 = inlined_call_operand.vmem [shape: f32[1,32], index: 11, kind: input, shape index: {}]
  %s12 = inlined_call_operand.vmem [shape: f32[32,128], index: 12, kind: input, shape index: {}]
  %s13 = inlined_call_operand.vmem [shape: f32[1,128], index: 13, kind: input, shape index: {}]
  %s14 = inlined_call_operand.vmem [shape: f32[128,32], index: 14, kind: input, shape index: {}]
  %s15 = inlined_call_operand.vmem [shape: f32[1,32], index: 15, kind: input, shape index: {}]
  %s16 = inlined_call_operand.vmem [shape: f32[128,32], index: 16, kind: output, shape index: {}]
  %s17 = sld [smem:[#allocation0]]
  $region74: #{tpu_custom_call.1} parent=0
    _
  %s19 = ssub.s32 1, %s17
  %s20 = scalar_select 0, %s19, %s17
  // Predicated region
  $region2: #{tpu_custom_call.1} parent=0 // pred_check
    _
  $region3: #{tpu_custom_call.1} parent=0 // pred_check_branch
    %22 = sbr.rel (0) target = $region5
  $region4: #{tpu_custom_call.1} parent=0 // pred_region
    _
  $region5: #{tpu_custom_call.1} parent=0 // pred_fallthru
    _
  // Predicated region
  $region6: #{tpu_custom_call.1} parent=0 // pred_check
    _
  $region7: #{tpu_custom_call.1} parent=0 // pred_check_branch
    %24 = sbr.rel (0) target = $region9
  $region8: #{tpu_custom_call.1} parent=0 // pred_region
    _
  $region9: #{tpu_custom_call.1} parent=0 // pred_fallthru
    _
  // Predicated region
  $region10: #{tpu_custom_call.1} parent=0 // pred_check
    _
  $region11: #{tpu_custom_call.1} parent=0 // pred_check_branch
    %26 = sbr.rel (0) target = $region13
  $region12: #{tpu_custom_call.1} parent=0 // pred_region
    _
  $region13: #{tpu_custom_call.1} parent=0 // pred_fallthru
    _
  // Predicated region
  $region14: #{tpu_custom_call.1} parent=0 // pred_check
    _
  $region15: #{tpu_custom_call.1} parent=0 // pred_check_branch
    %28 = sbr.rel (0) target = $region17
  $region16: #{tpu_custom_call.1} parent=0 // pred_region
    _
  $region17: #{tpu_custom_call.1} parent=0 // pred_fallthru
    _
  // Predicated region
  $region18: #{tpu_custom_call.1} parent=0 // pred_check
    _
  $region19: #{tpu_custom_call.1} parent=0 // pred_check_branch
    %30 = sbr.rel (0) target = $region21
  $region20: #{tpu_custom_call.1} parent=0 // pred_region
    _
  $region21: #{tpu_custom_call.1} parent=0 // pred_fallthru
    _
  // Predicated region
  $region22: #{tpu_custom_call.1} parent=0 // pred_check
    _
  $region23: #{tpu_custom_call.1} parent=0 // pred_check_branch
    %32 = sbr.rel (0) target = $region25
  $region24: #{tpu_custom_call.1} parent=0 // pred_region
    _
  $region25: #{tpu_custom_call.1} parent=0 // pred_fallthru
    _
  // Predicated region
  $region26: #{tpu_custom_call.1} parent=0 // pred_check
    _
  $region27: #{tpu_custom_call.1} parent=0 // pred_check_branch
    %34 = sbr.rel (0) target = $region29
  $region28: #{tpu_custom_call.1} parent=0 // pred_region
    _
  $region29: #{tpu_custom_call.1} parent=0 // pred_fallthru
    _
  // Predicated region
  $region30: #{tpu_custom_call.1} parent=0 // pred_check
    _
  $region31: #{tpu_custom_call.1} parent=0 // pred_check_branch
    %36 = sbr.rel (0) target = $region33
  $region32: #{tpu_custom_call.1} parent=0 // pred_region
    _
  $region33: #{tpu_custom_call.1} parent=0 // pred_fallthru
    _
  // Predicated region
  $region34: #{tpu_custom_call.1} parent=0 // pred_check
    _
  $region35: #{tpu_custom_call.1} parent=0 // pred_check_branch
    %38 = sbr.rel (0) target = $region37
  $region36: #{tpu_custom_call.1} parent=0 // pred_region
    _
  $region37: #{tpu_custom_call.1} parent=0 // pred_fallthru
    _
  // Predicated region
  $region38: #{tpu_custom_call.1} parent=0 // pred_check
    _
  $region39: #{tpu_custom_call.1} parent=0 // pred_check_branch
    %40 = sbr.rel (0) target = $region41
  $region40: #{tpu_custom_call.1} parent=0 // pred_region
    _
  $region41: #{tpu_custom_call.1} parent=0 // pred_fallthru
    _
  // Predicated region
  $region42: #{tpu_custom_call.1} parent=0 // pred_check
    _
  $region43: #{tpu_custom_call.1} parent=0 // pred_check_branch
    %42 = sbr.rel (0) target = $region45
  $region44: #{tpu_custom_call.1} parent=0 // pred_region
    _
  $region45: #{tpu_custom_call.1} parent=0 // pred_fallthru
    _
  // Predicated region
  $region46: #{tpu_custom_call.1} parent=0 // pred_check
    _
  $region47: #{tpu_custom_call.1} parent=0 // pred_check_branch
    %44 = sbr.rel (0) target = $region49
  $region48: #{tpu_custom_call.1} parent=0 // pred_region
    _
  $region49: #{tpu_custom_call.1} parent=0 // pred_fallthru
    _
  // Predicated region
  $region50: #{tpu_custom_call.1} parent=0 // pred_check
    _
  $region51: #{tpu_custom_call.1} parent=0 // pred_check_branch
    %46 = sbr.rel (0) target = $region53
  $region52: #{tpu_custom_call.1} parent=0 // pred_region
    _
  $region53: #{tpu_custom_call.1} parent=0 // pred_fallthru
    _
  // Predicated region
  $region54: #{tpu_custom_call.1} parent=0 // pred_check
    _
  $region55: #{tpu_custom_call.1} parent=0 // pred_check_branch
    %48 = sbr.rel (0) target = $region57
  $region56: #{tpu_custom_call.1} parent=0 // pred_region
    _
  $region57: #{tpu_custom_call.1} parent=0 // pred_fallthru
    _
  // Predicated region
  $region58: #{tpu_custom_call.1} parent=0 // pred_check
    _
  $region59: #{tpu_custom_call.1} parent=0 // pred_check_branch
    %50 = sbr.rel (0) target = $region61
  $region60: #{tpu_custom_call.1} parent=0 // pred_region
    _
  $region61: #{tpu_custom_call.1} parent=0 // pred_fallthru
    _
  // Predicated region
  $region62: #{tpu_custom_call.1} parent=0 // pred_check
    _
  $region63: #{tpu_custom_call.1} parent=0 // pred_check_branch
    %52 = sbr.rel (0) target = $region65
  $region64: #{tpu_custom_call.1} parent=0 // pred_region
    _
  $region65: #{tpu_custom_call.1} parent=0 // pred_fallthru
    _
  %v53 = vld [vmem:[%s0] sm:$0xff]
  %v54 = vld [vmem:[%s0 + $0x8] sm:$0xff]
  %v55 = vld [vmem:[%s0 + $0x10] sm:$0xff]
  %v56 = vld [vmem:[%s0 + $0x18] sm:$0xff]
  %v57 = vld [vmem:[%s0 + $0x20] sm:$0xff]
  %v58 = vld [vmem:[%s0 + $0x28] sm:$0xff]
  %v59 = vld [vmem:[%s0 + $0x30] sm:$0xff]
  %v60 = vld [vmem:[%s0 + $0x38] sm:$0xff]
  %v61 = vld [vmem:[%s0 + $0x40] sm:$0xff]
  %v62 = vld [vmem:[%s0 + $0x48] sm:$0xff]
  %v63 = vld [vmem:[%s0 + $0x50] sm:$0xff]
  %v64 = vld [vmem:[%s0 + $0x58] sm:$0xff]
  %v65 = vld [vmem:[%s0 + $0x60] sm:$0xff]
  %v66 = vld [vmem:[%s0 + $0x68] sm:$0xff]
  %v67 = vld [vmem:[%s0 + $0x70] sm:$0xff]
  %v68 = vld [vmem:[%s0 + $0x78] sm:$0xff]
  %vm69 = vcmask 261120
  %v70 = vsel %vm69, %v53, 0.0
  %71 = vadd.xlane.f32.xlu0 %v70
  %v72 = vpop.xlane.xlu0 %71
  %v73 = vsel %vm69, %v54, 0.0
  %74 = vadd.xlane.f32.xlu0 %v73
  %v75 = vpop.xlane.xlu0 %74
  %v76 = vsel %vm69, %v55, 0.0
  %77 = vadd.xlane.f32.xlu0 %v76
  %v78 = vpop.xlane.xlu0 %77
  %v79 = vsel %vm69, %v56, 0.0
  %80 = vadd.xlane.f32.xlu0 %v79
  %v81 = vpop.xlane.xlu0 %80
  %v82 = vsel %vm69, %v57, 0.0
  %83 = vadd.xlane.f32.xlu0 %v82
  %v84 = vpop.xlane.xlu0 %83
  %v85 = vsel %vm69, %v58, 0.0
  %86 = vadd.xlane.f32.xlu0 %v85
  %v87 = vpop.xlane.xlu0 %86
  %v88 = vsel %vm69, %v59, 0.0
  %89 = vadd.xlane.f32.xlu0 %v88
  %v90 = vpop.xlane.xlu0 %89
  %v91 = vsel %vm69, %v60, 0.0
  %92 = vadd.xlane.f32.xlu0 %v91
  %v93 = vpop.xlane.xlu0 %92
  %v94 = vsel %vm69, %v61, 0.0
  %95 = vadd.xlane.f32.xlu0 %v94
  %v96 = vpop.xlane.xlu0 %95
  %v97 = vsel %vm69, %v62, 0.0
  %98 = vadd.xlane.f32.xlu0 %v97
  %v99 = vpop.xlane.xlu0 %98
  %v100 = vsel %vm69, %v63, 0.0
  %101 = vadd.xlane.f32.xlu0 %v100
  %v102 = vpop.xlane.xlu0 %101
  %v103 = vsel %vm69, %v64, 0.0
  %104 = vadd.xlane.f32.xlu0 %v103
  %v105 = vpop.xlane.xlu0 %104
  %v106 = vsel %vm69, %v65, 0.0
  %107 = vadd.xlane.f32.xlu0 %v106
  %v108 = vpop.xlane.xlu0 %107
  %v109 = vsel %vm69, %v66, 0.0
  %110 = vadd.xlane.f32.xlu0 %v109
  %v111 = vpop.xlane.xlu0 %110
  %v112 = vsel %vm69, %v67, 0.0
  %113 = vadd.xlane.f32.xlu0 %v112
  %v114 = vpop.xlane.xlu0 %113
  %v115 = vsel %vm69, %v68, 0.0
  %116 = vadd.xlane.f32.xlu0 %v115
  %v117 = vpop.xlane.xlu0 %116
  %v118 = vrcp.pop 32.0
  %v119 = vmul.f32 %v72, %v118
  %v120 = vmul.f32 %v75, %v118
  %v121 = vmul.f32 %v78, %v118
  %v122 = vmul.f32 %v81, %v118
  %v123 = vmul.f32 %v84, %v118
  %v124 = vmul.f32 %v87, %v118
  %v125 = vmul.f32 %v90, %v118
  %v126 = vmul.f32 %v93, %v118
  %v127 = vmul.f32 %v96, %v118
  %v128 = vmul.f32 %v99, %v118
  %v129 = vmul.f32 %v102, %v118
  %v130 = vmul.f32 %v105, %v118
  %v131 = vmul.f32 %v108, %v118
  %v132 = vmul.f32 %v111, %v118
  %v133 = vmul.f32 %v114, %v118
  %v134 = vmul.f32 %v117, %v118
  %v135 = vmul.f32 %v53, %v53
  %v136 = vmul.f32 %v54, %v54
  %v137 = vmul.f32 %v55, %v55
  %v138 = vmul.f32 %v56, %v56
  %v139 = vmul.f32 %v57, %v57
  %v140 = vmul.f32 %v58, %v58
  %v141 = vmul.f32 %v59, %v59
  %v142 = vmul.f32 %v60, %v60
  %v143 = vmul.f32 %v61, %v61
  %v144 = vmul.f32 %v62, %v62
  %v145 = vmul.f32 %v63, %v63
  %v146 = vmul.f32 %v64, %v64
  %v147 = vmul.f32 %v65, %v65
  %v148 = vmul.f32 %v66, %v66
  %v149 = vmul.f32 %v67, %v67
  %v150 = vmul.f32 %v68, %v68
  %v151 = vsel %vm69, %v135, 0.0
  %152 = vadd.xlane.f32.xlu0 %v151
  %v153 = vpop.xlane.xlu0 %152
  %v154 = vsel %vm69, %v136, 0.0
  %155 = vadd.xlane.f32.xlu0 %v154
  %v156 = vpop.xlane.xlu0 %155
  %v157 = vsel %vm69, %v137, 0.0
  %158 = vadd.xlane.f32.xlu0 %v157
  %v159 = vpop.xlane.xlu0 %158
  %v160 = vsel %vm69, %v138, 0.0
  %161 = vadd.xlane.f32.xlu0 %v160
  %v162 = vpop.xlane.xlu0 %161
  %v163 = vsel %vm69, %v139, 0.0
  %164 = vadd.xlane.f32.xlu0 %v163
  %v165 = vpop.xlane.xlu0 %164
  %v166 = vsel %vm69, %v140, 0.0
  %167 = vadd.xlane.f32.xlu0 %v166
  %v168 = vpop.xlane.xlu0 %167
  %v169 = vsel %vm69, %v141, 0.0
  %170 = vadd.xlane.f32.xlu0 %v169
  %v171 = vpop.xlane.xlu0 %170
  %v172 = vsel %vm69, %v142, 0.0
  %173 = vadd.xlane.f32.xlu0 %v172
  %v174 = vpop.xlane.xlu0 %173
  %v175 = vsel %vm69, %v143, 0.0
  %176 = vadd.xlane.f32.xlu0 %v175
  %v177 = vpop.xlane.xlu0 %176
  %v178 = vsel %vm69, %v144, 0.0
  %179 = vadd.xlane.f32.xlu0 %v178
  %v180 = vpop.xlane.xlu0 %179
  %v181 = vsel %vm69, %v145, 0.0
  %182 = vadd.xlane.f32.xlu0 %v181
  %v183 = vpop.xlane.xlu0 %182
  %v184 = vsel %vm69, %v146, 0.0
  %185 = vadd.xlane.f32.xlu0 %v184
  %v186 = vpop.xlane.xlu0 %185
  %v187 = vsel %vm69, %v147, 0.0
  %188 = vadd.xlane.f32.xlu0 %v187
  %v189 = vpop.xlane.xlu0 %188
  %v190 = vsel %vm69, %v148, 0.0
  %191 = vadd.xlane.f32.xlu0 %v190
  %v192 = vpop.xlane.xlu0 %191
  %v193 = vsel %vm69, %v149, 0.0
  %194 = vadd.xlane.f32.xlu0 %v193
  %v195 = vpop.xlane.xlu0 %194
  %v196 = vsel %vm69, %v150, 0.0
  %197 = vadd.xlane.f32.xlu0 %v196
  %v198 = vpop.xlane.xlu0 %197
  %v199 = vmul.f32 %v153, %v118
  %v200 = vmul.f32 %v156, %v118
  %v201 = vmul.f32 %v159, %v118
  %v202 = vmul.f32 %v162, %v118
  %v203 = vmul.f32 %v165, %v118
  %v204 = vmul.f32 %v168, %v118
  %v205 = vmul.f32 %v171, %v118
  %v206 = vmul.f32 %v174, %v118
  %v207 = vmul.f32 %v177, %v118
  %v208 = vmul.f32 %v180, %v118
  %v209 = vmul.f32 %v183, %v118
  %v210 = vmul.f32 %v186, %v118
  %v211 = vmul.f32 %v189, %v118
  %v212 = vmul.f32 %v192, %v118
  %v213 = vmul.f32 %v195, %v118
  %v214 = vmul.f32 %v198, %v118
  %v215 = vmul.f32 %v119, %v119
  %v216 = vmul.f32 %v120, %v120
  %v217 = vmul.f32 %v121, %v121
  %v218 = vmul.f32 %v122, %v122
  %v219 = vmul.f32 %v123, %v123
  %v220 = vmul.f32 %v124, %v124
  %v221 = vmul.f32 %v125, %v125
  %v222 = vmul.f32 %v126, %v126
  %v223 = vmul.f32 %v127, %v127
  %v224 = vmul.f32 %v128, %v128
  %v225 = vmul.f32 %v129, %v129
  %v226 = vmul.f32 %v130, %v130
  %v227 = vmul.f32 %v131, %v131
  %v228 = vmul.f32 %v132, %v132
  %v229 = vmul.f32 %v133, %v133
  %v230 = vmul.f32 %v134, %v134
  %v231 = vsub.f32 %v199, %v215
  %v232 = vsub.f32 %v200, %v216
  %v233 = vsub.f32 %v201, %v217
  %v234 = vsub.f32 %v202, %v218
  %v235 = vsub.f32 %v203, %v219
  %v236 = vsub.f32 %v204, %v220
  %v237 = vsub.f32 %v205, %v221
  %v238 = vsub.f32 %v206, %v222
  %v239 = vsub.f32 %v207, %v223
  %v240 = vsub.f32 %v208, %v224
  %v241 = vsub.f32 %v209, %v225
  %v242 = vsub.f32 %v210, %v226
  %v243 = vsub.f32 %v211, %v227
  %v244 = vsub.f32 %v212, %v228
  %v245 = vsub.f32 %v213, %v229
  %v246 = vsub.f32 %v214, %v230
  %v247 = vsub.f32 %v53, %v119
  %v248 = vsub.f32 %v54, %v120
  %v249 = vsub.f32 %v55, %v121
  %v250 = vsub.f32 %v56, %v122
  %v251 = vsub.f32 %v57, %v123
  %v252 = vsub.f32 %v58, %v124
  %v253 = vsub.f32 %v59, %v125
  %v254 = vsub.f32 %v60, %v126
  %v255 = vsub.f32 %v61, %v127
  %v256 = vsub.f32 %v62, %v128
  %v257 = vsub.f32 %v63, %v129
  %v258 = vsub.f32 %v64, %v130
  %v259 = vsub.f32 %v65, %v131
  %v260 = vsub.f32 %v66, %v132
  %v261 = vsub.f32 %v67, %v133
  %v262 = vsub.f32 %v68, %v134
  %v263 = vadd.f32 %v231, 1e-05
  %v264 = vadd.f32 %v232, 1e-05
  %v265 = vadd.f32 %v233, 1e-05
  %v266 = vadd.f32 %v234, 1e-05
  %v267 = vadd.f32 %v235, 1e-05
  %v268 = vadd.f32 %v236, 1e-05
  %v269 = vadd.f32 %v237, 1e-05
  %v270 = vadd.f32 %v238, 1e-05
  %v271 = vadd.f32 %v239, 1e-05
  %v272 = vadd.f32 %v240, 1e-05
  %v273 = vadd.f32 %v241, 1e-05
  %v274 = vadd.f32 %v242, 1e-05
  %v275 = vadd.f32 %v243, 1e-05
  %v276 = vadd.f32 %v244, 1e-05
  %v277 = vadd.f32 %v245, 1e-05
  %v278 = vadd.f32 %v246, 1e-05
  %v279 = vrsqrt.pop %v263
  %v280 = vrsqrt.pop %v264
  %v281 = vrsqrt.pop %v265
  %v282 = vrsqrt.pop %v266
  %v283 = vrsqrt.pop %v267
  %v284 = vrsqrt.pop %v268
  %v285 = vrsqrt.pop %v269
  %v286 = vrsqrt.pop %v270
  %v287 = vrsqrt.pop %v271
  %v288 = vrsqrt.pop %v272
  %v289 = vrsqrt.pop %v273
  %v290 = vrsqrt.pop %v274
  %v291 = vrsqrt.pop %v275
  %v292 = vrsqrt.pop %v276
  %v293 = vrsqrt.pop %v277
  %v294 = vrsqrt.pop %v278
  %v295 = vmul.f32 %v247, %v279
  %v296 = vmul.f32 %v248, %v280
  %v297 = vmul.f32 %v249, %v281
  %v298 = vmul.f32 %v250, %v282
  %v299 = vmul.f32 %v251, %v283
  %v300 = vmul.f32 %v252, %v284
  %v301 = vmul.f32 %v253, %v285
  %v302 = vmul.f32 %v254, %v286
  %v303 = vmul.f32 %v255, %v287
  %v304 = vmul.f32 %v256, %v288
  %v305 = vmul.f32 %v257, %v289
  %v306 = vmul.f32 %v258, %v290
  %v307 = vmul.f32 %v259, %v291
  %v308 = vmul.f32 %v260, %v292
  %v309 = vmul.f32 %v261, %v293
  %v310 = vmul.f32 %v262, %v294
  %v311 = vld [vmem:[%s4] sm:$0x1]
  %v313 = vlaneseq
  %v314 = vshrl.u32 %v313, 7
  %v315 = vsub.s32 0, %v314
  %v316 = vrot.slane %v311, %v315
  %v318 = vmul.f32 %v295, %v316
  %v319 = vmul.f32 %v296, %v316
  %v320 = vmul.f32 %v297, %v316
  %v321 = vmul.f32 %v298, %v316
  %v322 = vmul.f32 %v299, %v316
  %v323 = vmul.f32 %v300, %v316
  %v324 = vmul.f32 %v301, %v316
  %v325 = vmul.f32 %v302, %v316
  %v326 = vmul.f32 %v303, %v316
  %v327 = vmul.f32 %v304, %v316
  %v328 = vmul.f32 %v305, %v316
  %v329 = vmul.f32 %v306, %v316
  %v330 = vmul.f32 %v307, %v316
  %v331 = vmul.f32 %v308, %v316
  %v332 = vmul.f32 %v309, %v316
  %v333 = vmul.f32 %v310, %v316
  %v334 = vld [vmem:[%s5] sm:$0x1]
  %v336 = vlaneseq
  %v337 = vshrl.u32 %v336, 7
  %v338 = vsub.s32 0, %v337
  %v339 = vrot.slane %v334, %v338
  %v341 = vadd.f32 %v318, %v339
  %v342 = vadd.f32 %v319, %v339
  %v343 = vadd.f32 %v320, %v339
  %v344 = vadd.f32 %v321, %v339
  %v345 = vadd.f32 %v322, %v339
  %v346 = vadd.f32 %v323, %v339
  %v347 = vadd.f32 %v324, %v339
  %v348 = vadd.f32 %v325, %v339
  %v349 = vadd.f32 %v326, %v339
  %v350 = vadd.f32 %v327, %v339
  %v351 = vadd.f32 %v328, %v339
  %v352 = vadd.f32 %v329, %v339
  %v353 = vadd.f32 %v330, %v339
  %v354 = vadd.f32 %v331, %v339
  %v355 = vadd.f32 %v332, %v339
  %v356 = vadd.f32 %v333, %v339
  %v357 = vld [vmem:[%s1] sm:$0xff]
  %v358 = vld [vmem:[%s1 + $0x8] sm:$0xff]
  %v359 = vld [vmem:[%s1 + $0x10] sm:$0xff]
  %v360 = vld [vmem:[%s1 + $0x18] sm:$0xff]
  %v361 = vld [vmem:[%s1 + $0x20] sm:$0xff]
  %v362 = vld [vmem:[%s1 + $0x28] sm:$0xff]
  %v363 = vld [vmem:[%s1 + $0x30] sm:$0xff]
  %v364 = vld [vmem:[%s1 + $0x38] sm:$0xff]
  %v365 = vld [vmem:[%s1 + $0x40] sm:$0xff]
  %v366 = vld [vmem:[%s1 + $0x48] sm:$0xff]
  %v367 = vld [vmem:[%s1 + $0x50] sm:$0xff]
  %v368 = vld [vmem:[%s1 + $0x58] sm:$0xff]
  %v369 = vld [vmem:[%s1 + $0x60] sm:$0xff]
  %v370 = vld [vmem:[%s1 + $0x68] sm:$0xff]
  %v371 = vld [vmem:[%s1 + $0x70] sm:$0xff]
  %v372 = vld [vmem:[%s1 + $0x78] sm:$0xff]
  %v374 = vsel %vm69, %v357, 0
  %v377 = vsel %vm69, %v358, 0
  %v380 = vsel %vm69, %v359, 0
  %v383 = vsel %vm69, %v360, 0
  %v386 = vsel %vm69, %v361, 0
  %v389 = vsel %vm69, %v362, 0
  %v392 = vsel %vm69, %v363, 0
  %v395 = vsel %vm69, %v364, 0
  %v398 = vsel %vm69, %v365, 0
  %v401 = vsel %vm69, %v366, 0
  %v404 = vsel %vm69, %v367, 0
  %v407 = vsel %vm69, %v368, 0
  %v410 = vsel %vm69, %v369, 0
  %v413 = vsel %vm69, %v370, 0
  %v416 = vsel %vm69, %v371, 0
  %v419 = vsel %vm69, %v372, 0
  %v422 = vsel %vm69, %v341, 0
  %v425 = vsel %vm69, %v342, 0
  %v428 = vsel %vm69, %v343, 0
  %v431 = vsel %vm69, %v344, 0
  %v434 = vsel %vm69, %v345, 0
  %v437 = vsel %vm69, %v346, 0
  %v440 = vsel %vm69, %v347, 0
  %v443 = vsel %vm69, %v348, 0
  %v446 = vsel %vm69, %v349, 0
  %v449 = vsel %vm69, %v350, 0
  %v452 = vsel %vm69, %v351, 0
  %v455 = vsel %vm69, %v352, 0
  %v458 = vsel %vm69, %v353, 0
  %v461 = vsel %vm69, %v354, 0
  %v464 = vsel %vm69, %v355, 0
  %v467 = vsel %vm69, %v356, 0
  %469 = vmatprep.subr.mxu0 0.0
  %470 = vmatpush1.xpose.msra.mxu0 %v422
  %471 = vmatprep.subr.mxu0 0.0
  %472 = vmatpush1.xpose.msra.mxu0 %v425
  %473 = vmatprep.subr.mxu0 0.0
  %474 = vmatpush1.xpose.msra.mxu0 %v428
  %475 = vmatprep.subr.mxu0 0.0
  %476 = vmatpush1.xpose.msra.mxu0 %v431
  %477 = vmatprep.subr.mxu0 0.0
  %478 = vmatpush1.xpose.msra.mxu0 %v434
  %479 = vmatprep.subr.mxu0 0.0
  %480 = vmatpush1.xpose.msra.mxu0 %v437
  %481 = vmatprep.subr.mxu0 0.0
  %482 = vmatpush1.xpose.msra.mxu0 %v440
  %483 = vmatprep.subr.mxu0 0.0
  %484 = vmatpush1.xpose.msra.mxu0 %v443
  %485 = vmatprep.subr.mxu0 0.0
  %486 = vmatpush1.xpose.msra.mxu0 %v446
  %487 = vmatprep.subr.mxu0 0.0
  %488 = vmatpush1.xpose.msra.mxu0 %v449
  %489 = vmatprep.subr.mxu0 0.0
  %490 = vmatpush1.xpose.msra.mxu0 %v452
  %491 = vmatprep.subr.mxu0 0.0
  %492 = vmatpush1.xpose.msra.mxu0 %v455
  %493 = vmatprep.subr.mxu0 0.0
  %494 = vmatpush1.xpose.msra.mxu0 %v458
  %495 = vmatprep.subr.mxu0 0.0
  %496 = vmatpush1.xpose.msra.mxu0 %v461
  %497 = vmatprep.subr.mxu0 0.0
  %498 = vmatpush1.xpose.msra.mxu0 %v464
  %499 = vmatprep.subr.mxu0 0.0
  %500 = vmatpush1.xpose.msra.mxu0 %v467
  %501 = vmatprep.subr.mxu0 0.0
  %502 = vmatpush1.xpose.msra.mxu0 0.0
  %503 = vmatprep.subr.mxu0 0.0
  %504 = vmatpush1.xpose.msra.mxu0 0.0
  %505 = vmatprep.subr.mxu0 0.0
  %506 = vmatpush1.xpose.msra.mxu0 0.0
  %507 = vmatprep.subr.mxu0 0.0
  %508 = vmatpush1.xpose.msra.mxu0 0.0
  %509 = vmatprep.subr.mxu0 0.0
  %510 = vmatpush1.xpose.msra.mxu0 0.0
  %511 = vmatprep.subr.mxu0 0.0
  %512 = vmatpush1.xpose.msra.mxu0 0.0
  %513 = vmatprep.subr.mxu0 0.0
  %514 = vmatpush1.xpose.msra.mxu0 0.0
  %515 = vmatprep.subr.mxu0 0.0
  %516 = vmatpush1.xpose.msra.mxu0 0.0
  %517 = vmatprep.subr.mxu0 0.0
  %518 = vmatpush1.xpose.msra.mxu0 0.0
  %519 = vmatprep.subr.mxu0 0.0
  %520 = vmatpush1.xpose.msra.mxu0 0.0
  %521 = vmatprep.subr.mxu0 0.0
  %522 = vmatpush1.xpose.msra.mxu0 0.0
  %523 = vmatprep.subr.mxu0 0.0
  %524 = vmatpush1.xpose.msra.mxu0 0.0
  %525 = vmatprep.subr.mxu0 0.0
  %526 = vmatpush1.xpose.msra.mxu0 0.0
  %527 = vmatprep.subr.mxu0 0.0
  %528 = vmatpush1.xpose.msra.mxu0 0.0
  %529 = vmatprep.subr.mxu0 0.0
  %530 = vmatpush1.xpose.msra.mxu0 0.0
  %531 = vmatprep.subr.mxu0 0.0
  %532 = vmatpush1.xpose.msra.mxu0 0.0
  %533 = vmatprep.mubr.f32.mxu0 0.0
  %534 = vmatmul.mubr.f32.gmra.mrb[0].mxu0 %v374
  %v535 = vpop.f32.mrb[0].mxu0
  %v536 = vadd.f32 0.0, %v535
  %v537 = vpop.f32.mrb[0].mxu0
  %538 = vmatprep.mubr.f32.mxu0 0.0
  %539 = vmatmul.mubr.f32.gmra.mrb[0].mxu0 %v377
  %v540 = vpop.f32.mrb[0].mxu0
  %v541 = vadd.f32 0.0, %v540
  %v542 = vpop.f32.mrb[0].mxu0
  %543 = vmatprep.mubr.f32.mxu0 0.0
  %544 = vmatmul.mubr.f32.gmra.mrb[0].mxu0 %v380
  %v545 = vpop.f32.mrb[0].mxu0
  %v546 = vadd.f32 0.0, %v545
  %v547 = vpop.f32.mrb[0].mxu0
  %548 = vmatprep.mubr.f32.mxu0 0.0
  %549 = vmatmul.mubr.f32.gmra.mrb[0].mxu0 %v383
  %v550 = vpop.f32.mrb[0].mxu0
  %v551 = vadd.f32 0.0, %v550
  %v552 = vpop.f32.mrb[0].mxu0
  %553 = vmatprep.mubr.f32.mxu0 0.0
  %554 = vmatmul.mubr.f32.gmra.mrb[0].mxu0 %v386
  %v555 = vpop.f32.mrb[0].mxu0
  %v556 = vadd.f32 0.0, %v555
  %v557 = vpop.f32.mrb[0].mxu0
  %558 = vmatprep.mubr.f32.mxu0 0.0
  %559 = vmatmul.mubr.f32.gmra.mrb[0].mxu0 %v389
  %v560 = vpop.f32.mrb[0].mxu0
  %v561 = vadd.f32 0.0, %v560
  %v562 = vpop.f32.mrb[0].mxu0
  %563 = vmatprep.mubr.f32.mxu0 0.0
  %564 = vmatmul.mubr.f32.gmra.mrb[0].mxu0 %v392
  %v565 = vpop.f32.mrb[0].mxu0
  %v566 = vadd.f32 0.0, %v565
  %v567 = vpop.f32.mrb[0].mxu0
  %568 = vmatprep.mubr.f32.mxu0 0.0
  %569 = vmatmul.mubr.f32.gmra.mrb[0].mxu0 %v395
  %v570 = vpop.f32.mrb[0].mxu0
  %v571 = vadd.f32 0.0, %v570
  %v572 = vpop.f32.mrb[0].mxu0
  %573 = vmatprep.mubr.f32.mxu0 0.0
  %574 = vmatmul.mubr.f32.gmra.mrb[0].mxu0 %v398
  %v575 = vpop.f32.mrb[0].mxu0
  %v576 = vadd.f32 0.0, %v575
  %v577 = vpop.f32.mrb[0].mxu0
  %578 = vmatprep.mubr.f32.mxu0 0.0
  %579 = vmatmul.mubr.f32.gmra.mrb[0].mxu0 %v401
  %v580 = vpop.f32.mrb[0].mxu0
  %v581 = vadd.f32 0.0, %v580
  %v582 = vpop.f32.mrb[0].mxu0
  %583 = vmatprep.mubr.f32.mxu0 0.0
  %584 = vmatmul.mubr.f32.gmra.mrb[0].mxu0 %v404
  %v585 = vpop.f32.mrb[0].mxu0
  %v586 = vadd.f32 0.0, %v585
  %v587 = vpop.f32.mrb[0].mxu0
  %588 = vmatprep.mubr.f32.mxu0 0.0
  %589 = vmatmul.mubr.f32.gmra.mrb[0].mxu0 %v407
  %v590 = vpop.f32.mrb[0].mxu0
  %v591 = vadd.f32 0.0, %v590
  %v592 = vpop.f32.mrb[0].mxu0
  %593 = vmatprep.mubr.f32.mxu0 0.0
  %594 = vmatmul.mubr.f32.gmra.mrb[0].mxu0 %v410
  %v595 = vpop.f32.mrb[0].mxu0
  %v596 = vadd.f32 0.0, %v595
  %v597 = vpop.f32.mrb[0].mxu0
  %598 = vmatprep.mubr.f32.mxu0 0.0
  %599 = vmatmul.mubr.f32.gmra.mrb[0].mxu0 %v413
  %v600 = vpop.f32.mrb[0].mxu0
  %v601 = vadd.f32 0.0, %v600
  %v602 = vpop.f32.mrb[0].mxu0
  %603 = vmatprep.mubr.f32.mxu0 0.0
  %604 = vmatmul.mubr.f32.gmra.mrb[0].mxu0 %v416
  %v605 = vpop.f32.mrb[0].mxu0
  %v606 = vadd.f32 0.0, %v605
  %v607 = vpop.f32.mrb[0].mxu0
  %608 = vmatprep.mubr.f32.mxu0 0.0
  %609 = vmatmul.mubr.f32.gmra.mrb[0].mxu0 %v419
  %v610 = vpop.f32.mrb[0].mxu0
  %v611 = vadd.f32 0.0, %v610
  %v612 = vpop.f32.mrb[0].mxu0
  %613 = vdwg.mxu0
  %v614 = vld [vmem:[%s2] sm:$0xff]
  %v615 = vld [vmem:[%s2 + $0x8] sm:$0xff]
  %v616 = vld [vmem:[%s2 + $0x10] sm:$0xff]
  %v617 = vld [vmem:[%s2 + $0x18] sm:$0xff]
  %v618 = vld [vmem:[%s2 + $0x20] sm:$0xff]
  %v619 = vld [vmem:[%s2 + $0x28] sm:$0xff]
  %v620 = vld [vmem:[%s2 + $0x30] sm:$0xff]
  %v621 = vld [vmem:[%s2 + $0x38] sm:$0xff]
  %v622 = vld [vmem:[%s2 + $0x40] sm:$0xff]
  %v623 = vld [vmem:[%s2 + $0x48] sm:$0xff]
  %v624 = vld [vmem:[%s2 + $0x50] sm:$0xff]
  %v625 = vld [vmem:[%s2 + $0x58] sm:$0xff]
  %v626 = vld [vmem:[%s2 + $0x60] sm:$0xff]
  %v627 = vld [vmem:[%s2 + $0x68] sm:$0xff]
  %v628 = vld [vmem:[%s2 + $0x70] sm:$0xff]
  %v629 = vld [vmem:[%s2 + $0x78] sm:$0xff]
  %s630 = scalar_lea.vmem %s1, 128
  %v631 = vld [vmem:[%s630] sm:$0xff]
  %v632 = vld [vmem:[%s630 + $0x8] sm:$0xff]
  %v633 = vld [vmem:[%s630 + $0x10] sm:$0xff]
  %v634 = vld [vmem:[%s630 + $0x18] sm:$0xff]
  %v635 = vld [vmem:[%s630 + $0x20] sm:$0xff]
  %v636 = vld [vmem:[%s630 + $0x28] sm:$0xff]
  %v637 = vld [vmem:[%s630 + $0x30] sm:$0xff]
  %v638 = vld [vmem:[%s630 + $0x38] sm:$0xff]
  %v639 = vld [vmem:[%s630 + $0x40] sm:$0xff]
  %v640 = vld [vmem:[%s630 + $0x48] sm:$0xff]
  %v641 = vld [vmem:[%s630 + $0x50] sm:$0xff]
  %v642 = vld [vmem:[%s630 + $0x58] sm:$0xff]
  %v643 = vld [vmem:[%s630 + $0x60] sm:$0xff]
  %v644 = vld [vmem:[%s630 + $0x68] sm:$0xff]
  %v645 = vld [vmem:[%s630 + $0x70] sm:$0xff]
  %v646 = vld [vmem:[%s630 + $0x78] sm:$0xff]
  %v648 = vsel %vm69, %v631, 0
  %v651 = vsel %vm69, %v632, 0
  %v654 = vsel %vm69, %v633, 0
  %v657 = vsel %vm69, %v634, 0
  %v660 = vsel %vm69, %v635, 0
  %v663 = vsel %vm69, %v636, 0
  %v666 = vsel %vm69, %v637, 0
  %v669 = vsel %vm69, %v638, 0
  %v672 = vsel %vm69, %v639, 0
  %v675 = vsel %vm69, %v640, 0
  %v678 = vsel %vm69, %v641, 0
  %v681 = vsel %vm69, %v642, 0
  %v684 = vsel %vm69, %v643, 0
  %v687 = vsel %vm69, %v644, 0
  %v690 = vsel %vm69, %v645, 0
  %v693 = vsel %vm69, %v646, 0
  %695 = vmatprep.subr.mxu0 0.0
  %696 = vmatpush1.xpose.msra.mxu0 %v422
  %697 = vmatprep.subr.mxu0 0.0
  %698 = vmatpush1.xpose.msra.mxu0 %v425
  %699 = vmatprep.subr.mxu0 0.0
  %700 = vmatpush1.xpose.msra.mxu0 %v428
  %701 = vmatprep.subr.mxu0 0.0
  %702 = vmatpush1.xpose.msra.mxu0 %v431
  %703 = vmatprep.subr.mxu0 0.0
  %704 = vmatpush1.xpose.msra.mxu0 %v434
  %705 = vmatprep.subr.mxu0 0.0
  %706 = vmatpush1.xpose.msra.mxu0 %v437
  %707 = vmatprep.subr.mxu0 0.0
  %708 = vmatpush1.xpose.msra.mxu0 %v440
  %709 = vmatprep.subr.mxu0 0.0
  %710 = vmatpush1.xpose.msra.mxu0 %v443
  %711 = vmatprep.subr.mxu0 0.0
  %712 = vmatpush1.xpose.msra.mxu0 %v446
  %713 = vmatprep.subr.mxu0 0.0
  %714 = vmatpush1.xpose.msra.mxu0 %v449
  %715 = vmatprep.subr.mxu0 0.0
  %716 = vmatpush1.xpose.msra.mxu0 %v452
  %717 = vmatprep.subr.mxu0 0.0
  %718 = vmatpush1.xpose.msra.mxu0 %v455
  %719 = vmatprep.subr.mxu0 0.0
  %720 = vmatpush1.xpose.msra.mxu0 %v458
  %721 = vmatprep.subr.mxu0 0.0
  %722 = vmatpush1.xpose.msra.mxu0 %v461
  %723 = vmatprep.subr.mxu0 0.0
  %724 = vmatpush1.xpose.msra.mxu0 %v464
  %725 = vmatprep.subr.mxu0 0.0
  %726 = vmatpush1.xpose.msra.mxu0 %v467
  %727 = vmatprep.subr.mxu0 0.0
  %728 = vmatpush1.xpose.msra.mxu0 0.0
  %729 = vmatprep.subr.mxu0 0.0
  %730 = vmatpush1.xpose.msra.mxu0 0.0
  %731 = vmatprep.subr.mxu0 0.0
  %732 = vmatpush1.xpose.msra.mxu0 0.0
  %733 = vmatprep.subr.mxu0 0.0
  %734 = vmatpush1.xpose.msra.mxu0 0.0
  %735 = vmatprep.subr.mxu0 0.0
  %736 = vmatpush1.xpose.msra.mxu0 0.0
  %737 = vmatprep.subr.mxu0 0.0
  %738 = vmatpush1.xpose.msra.mxu0 0.0
  %739 = vmatprep.subr.mxu0 0.0
  %740 = vmatpush1.xpose.msra.mxu0 0.0
  %741 = vmatprep.subr.mxu0 0.0
  %742 = vmatpush1.xpose.msra.mxu0 0.0
  %743 = vmatprep.subr.mxu0 0.0
  %744 = vmatpush1.xpose.msra.mxu0 0.0
  %745 = vmatprep.subr.mxu0 0.0
  %746 = vmatpush1.xpose.msra.mxu0 0.0
  %747 = vmatprep.subr.mxu0 0.0
  %748 = vmatpush1.xpose.msra.mxu0 0.0
  %749 = vmatprep.subr.mxu0 0.0
  %750 = vmatpush1.xpose.msra.mxu0 0.0
  %751 = vmatprep.subr.mxu0 0.0
  %752 = vmatpush1.xpose.msra.mxu0 0.0
  %753 = vmatprep.subr.mxu0 0.0
  %754 = vmatpush1.xpose.msra.mxu0 0.0
  %755 = vmatprep.subr.mxu0 0.0
  %756 = vmatpush1.xpose.msra.mxu0 0.0
  %757 = vmatprep.subr.mxu0 0.0
  %758 = vmatpush1.xpose.msra.mxu0 0.0
  %759 = vmatprep.mubr.f32.mxu0 0.0
  %760 = vmatmul.mubr.f32.gmra.mrb[0].mxu0 %v648
  %v761 = vpop.f32.mrb[0].mxu0
  %v762 = vadd.f32 0.0, %v761
  %v763 = vpop.f32.mrb[0].mxu0
  %764 = vmatprep.mubr.f32.mxu0 0.0
  %765 = vmatmul.mubr.f32.gmra.mrb[0].mxu0 %v651
  %v766 = vpop.f32.mrb[0].mxu0
  %v767 = vadd.f32 0.0, %v766
  %v768 = vpop.f32.mrb[0].mxu0
  %769 = vmatprep.mubr.f32.mxu0 0.0
  %770 = vmatmul.mubr.f32.gmra.mrb[0].mxu0 %v654
  %v771 = vpop.f32.mrb[0].mxu0
  %v772 = vadd.f32 0.0, %v771
  %v773 = vpop.f32.mrb[0].mxu0
  %774 = vmatprep.mubr.f32.mxu0 0.0
  %775 = vmatmul.mubr.f32.gmra.mrb[0].mxu0 %v657
  %v776 = vpop.f32.mrb[0].mxu0
  %v777 = vadd.f32 0.0, %v776
  %v778 = vpop.f32.mrb[0].mxu0
  %779 = vmatprep.mubr.f32.mxu0 0.0
  %780 = vmatmul.mubr.f32.gmra.mrb[0].mxu0 %v660
  %v781 = vpop.f32.mrb[0].mxu0
  %v782 = vadd.f32 0.0, %v781
  %v783 = vpop.f32.mrb[0].mxu0
  %784 = vmatprep.mubr.f32.mxu0 0.0
  %785 = vmatmul.mubr.f32.gmra.mrb[0].mxu0 %v663
  %v786 = vpop.f32.mrb[0].mxu0
  %v787 = vadd.f32 0.0, %v786
  %v788 = vpop.f32.mrb[0].mxu0
  %789 = vmatprep.mubr.f32.mxu0 0.0
  %790 = vmatmul.mubr.f32.gmra.mrb[0].mxu0 %v666
  %v791 = vpop.f32.mrb[0].mxu0
  %v792 = vadd.f32 0.0, %v791
  %v793 = vpop.f32.mrb[0].mxu0
  %794 = vmatprep.mubr.f32.mxu0 0.0
  %795 = vmatmul.mubr.f32.gmra.mrb[0].mxu0 %v669
  %v796 = vpop.f32.mrb[0].mxu0
  %v797 = vadd.f32 0.0, %v796
  %v798 = vpop.f32.mrb[0].mxu0
  %799 = vmatprep.mubr.f32.mxu0 0.0
  %800 = vmatmul.mubr.f32.gmra.mrb[0].mxu0 %v672
  %v801 = vpop.f32.mrb[0].mxu0
  %v802 = vadd.f32 0.0, %v801
  %v803 = vpop.f32.mrb[0].mxu0
  %804 = vmatprep.mubr.f32.mxu0 0.0
  %805 = vmatmul.mubr.f32.gmra.mrb[0].mxu0 %v675
  %v806 = vpop.f32.mrb[0].mxu0
  %v807 = vadd.f32 0.0, %v806
  %v808 = vpop.f32.mrb[0].mxu0
  %809 = vmatprep.mubr.f32.mxu0 0.0
  %810 = vmatmul.mubr.f32.gmra.mrb[0].mxu0 %v678
  %v811 = vpop.f32.mrb[0].mxu0
  %v812 = vadd.f32 0.0, %v811
  %v813 = vpop.f32.mrb[0].mxu0
  %814 = vmatprep.mubr.f32.mxu0 0.0
  %815 = vmatmul.mubr.f32.gmra.mrb[0].mxu0 %v681
  %v816 = vpop.f32.mrb[0].mxu0
  %v817 = vadd.f32 0.0, %v816
  %v818 = vpop.f32.mrb[0].mxu0
  %819 = vmatprep.mubr.f32.mxu0 0.0
  %820 = vmatmul.mubr.f32.gmra.mrb[0].mxu0 %v684
  %v821 = vpop.f32.mrb[0].mxu0
  %v822 = vadd.f32 0.0, %v821
  %v823 = vpop.f32.mrb[0].mxu0
  %824 = vmatprep.mubr.f32.mxu0 0.0
  %825 = vmatmul.mubr.f32.gmra.mrb[0].mxu0 %v687
  %v826 = vpop.f32.mrb[0].mxu0
  %v827 = vadd.f32 0.0, %v826
  %v828 = vpop.f32.mrb[0].mxu0
  %829 = vmatprep.mubr.f32.mxu0 0.0
  %830 = vmatmul.mubr.f32.gmra.mrb[0].mxu0 %v690
  %v831 = vpop.f32.mrb[0].mxu0
  %v832 = vadd.f32 0.0, %v831
  %v833 = vpop.f32.mrb[0].mxu0
  %834 = vmatprep.mubr.f32.mxu0 0.0
  %835 = vmatmul.mubr.f32.gmra.mrb[0].mxu0 %v693
  %v836 = vpop.f32.mrb[0].mxu0
  %v837 = vadd.f32 0.0, %v836
  %v838 = vpop.f32.mrb[0].mxu0
  %839 = vdwg.mxu0
  %s840 = scalar_lea.vmem %s2, 128
  %v841 = vld [vmem:[%s840] sm:$0xff]
  %v842 = vld [vmem:[%s840 + $0x8] sm:$0xff]
  %v843 = vld [vmem:[%s840 + $0x10] sm:$0xff]
  %v844 = vld [vmem:[%s840 + $0x18] sm:$0xff]
  %v845 = vld [vmem:[%s840 + $0x20] sm:$0xff]
  %v846 = vld [vmem:[%s840 + $0x28] sm:$0xff]
  %v847 = vld [vmem:[%s840 + $0x30] sm:$0xff]
  %v848 = vld [vmem:[%s840 + $0x38] sm:$0xff]
  %v849 = vld [vmem:[%s840 + $0x40] sm:$0xff]
  %v850 = vld [vmem:[%s840 + $0x48] sm:$0xff]
  %v851 = vld [vmem:[%s840 + $0x50] sm:$0xff]
  %v852 = vld [vmem:[%s840 + $0x58] sm:$0xff]
  %v853 = vld [vmem:[%s840 + $0x60] sm:$0xff]
  %v854 = vld [vmem:[%s840 + $0x68] sm:$0xff]
  %v855 = vld [vmem:[%s840 + $0x70] sm:$0xff]
  %v856 = vld [vmem:[%s840 + $0x78] sm:$0xff]
  %857 = vmatprep.subr.mxu0 0.0
  %858 = vmatpush1.msra.mxu0 %v841
  %859 = vmatprep.subr.mxu0 0.0
  %860 = vmatpush1.msra.mxu0 %v842
  %861 = vmatprep.subr.mxu0 0.0
  %862 = vmatpush1.msra.mxu0 %v843
  %863 = vmatprep.subr.mxu0 0.0
  %864 = vmatpush1.msra.mxu0 %v844
  %865 = vmatprep.subr.mxu0 0.0
  %866 = vmatpush1.msra.mxu0 %v845
  %867 = vmatprep.subr.mxu0 0.0
  %868 = vmatpush1.msra.mxu0 %v846
  %869 = vmatprep.subr.mxu0 0.0
  %870 = vmatpush1.msra.mxu0 %v847
  %871 = vmatprep.subr.mxu0 0.0
  %872 = vmatpush1.msra.mxu0 %v848
  %873 = vmatprep.subr.mxu0 0.0
  %874 = vmatpush1.msra.mxu0 %v849
  %875 = vmatprep.subr.mxu0 0.0
  %876 = vmatpush1.msra.mxu0 %v850
  %877 = vmatprep.subr.mxu0 0.0
  %878 = vmatpush1.msra.mxu0 %v851
  %879 = vmatprep.subr.mxu0 0.0
  %880 = vmatpush1.msra.mxu0 %v852
  %881 = vmatprep.subr.mxu0 0.0
  %882 = vmatpush1.msra.mxu0 %v853
  %883 = vmatprep.subr.mxu0 0.0
  %884 = vmatpush1.msra.mxu0 %v854
  %885 = vmatprep.subr.mxu0 0.0
  %886 = vmatpush1.msra.mxu0 %v855
  %887 = vmatprep.subr.mxu0 0.0
  %888 = vmatpush1.msra.mxu0 %v856
  %889 = vmatprep.subr.mxu0 0.0
  %890 = vmatpush1.msra.mxu0 0.0
  %891 = vmatprep.subr.mxu0 0.0
  %892 = vmatpush1.msra.mxu0 0.0
  %893 = vmatprep.subr.mxu0 0.0
  %894 = vmatpush1.msra.mxu0 0.0
  %895 = vmatprep.subr.mxu0 0.0
  %896 = vmatpush1.msra.mxu0 0.0
  %897 = vmatprep.subr.mxu0 0.0
  %898 = vmatpush1.msra.mxu0 0.0
  %899 = vmatprep.subr.mxu0 0.0
  %900 = vmatpush1.msra.mxu0 0.0
  %901 = vmatprep.subr.mxu0 0.0
  %902 = vmatpush1.msra.mxu0 0.0
  %903 = vmatprep.subr.mxu0 0.0
  %904 = vmatpush1.msra.mxu0 0.0
  %905 = vmatprep.subr.mxu0 0.0
  %906 = vmatpush1.msra.mxu0 0.0
  %907 = vmatprep.subr.mxu0 0.0
  %908 = vmatpush1.msra.mxu0 0.0
  %909 = vmatprep.subr.mxu0 0.0
  %910 = vmatpush1.msra.mxu0 0.0
  %911 = vmatprep.subr.mxu0 0.0
  %912 = vmatpush1.msra.mxu0 0.0
  %913 = vmatprep.subr.mxu0 0.0
  %914 = vmatpush1.msra.mxu0 0.0
  %915 = vmatprep.subr.mxu0 0.0
  %916 = vmatpush1.msra.mxu0 0.0
  %917 = vmatprep.subr.mxu0 0.0
  %918 = vmatpush1.msra.mxu0 0.0
  %919 = vmatprep.subr.mxu0 0.0
  %920 = vmatpush1.msra.mxu0 0.0
  %921 = vmatprep.mubr.f32.mxu0 0.0
  %922 = vmatmul.mubr.f32.gmra.mrb[0].mxu0 %v762
  %v923 = vpop.f32.mrb[0].mxu0
  %v924 = vadd.f32 0.0, %v923
  %v925 = vpop.f32.mrb[0].mxu0
  %926 = vmatprep.mubr.f32.mxu0 0.0
  %927 = vmatmul.mubr.f32.gmra.mrb[0].mxu0 %v767
  %v928 = vpop.f32.mrb[0].mxu0
  %v929 = vadd.f32 0.0, %v928
  %v930 = vpop.f32.mrb[0].mxu0
  %931 = vmatprep.mubr.f32.mxu0 0.0
  %932 = vmatmul.mubr.f32.gmra.mrb[0].mxu0 %v772
  %v933 = vpop.f32.mrb[0].mxu0
  %v934 = vadd.f32 0.0, %v933
  %v935 = vpop.f32.mrb[0].mxu0
  %936 = vmatprep.mubr.f32.mxu0 0.0
  %937 = vmatmul.mubr.f32.gmra.mrb[0].mxu0 %v777
  %v938 = vpop.f32.mrb[0].mxu0
  %v939 = vadd.f32 0.0, %v938
  %v940 = vpop.f32.mrb[0].mxu0
  %941 = vmatprep.mubr.f32.mxu0 0.0
  %942 = vmatmul.mubr.f32.gmra.mrb[0].mxu0 %v782
  %v943 = vpop.f32.mrb[0].mxu0
  %v944 = vadd.f32 0.0, %v943
  %v945 = vpop.f32.mrb[0].mxu0
  %946 = vmatprep.mubr.f32.mxu0 0.0
  %947 = vmatmul.mubr.f32.gmra.mrb[0].mxu0 %v787
  %v948 = vpop.f32.mrb[0].mxu0
  %v949 = vadd.f32 0.0, %v948
  %v950 = vpop.f32.mrb[0].mxu0
  %951 = vmatprep.mubr.f32.mxu0 0.0
  %952 = vmatmul.mubr.f32.gmra.mrb[0].mxu0 %v792
  %v953 = vpop.f32.mrb[0].mxu0
  %v954 = vadd.f32 0.0, %v953
  %v955 = vpop.f32.mrb[0].mxu0
  %956 = vmatprep.mubr.f32.mxu0 0.0
  %957 = vmatmul.mubr.f32.gmra.mrb[0].mxu0 %v797
  %v958 = vpop.f32.mrb[0].mxu0
  %v959 = vadd.f32 0.0, %v958
  %v960 = vpop.f32.mrb[0].mxu0
  %961 = vmatprep.mubr.f32.mxu0 0.0
  %962 = vmatmul.mubr.f32.gmra.mrb[0].mxu0 %v802
  %v963 = vpop.f32.mrb[0].mxu0
  %v964 = vadd.f32 0.0, %v963
  %v965 = vpop.f32.mrb[0].mxu0
  %966 = vmatprep.mubr.f32.mxu0 0.0
  %967 = vmatmul.mubr.f32.gmra.mrb[0].mxu0 %v807
  %v968 = vpop.f32.mrb[0].mxu0
  %v969 = vadd.f32 0.0, %v968
  %v970 = vpop.f32.mrb[0].mxu0
  %971 = vmatprep.mubr.f32.mxu0 0.0
  %972 = vmatmul.mubr.f32.gmra.mrb[0].mxu0 %v812
  %v973 = vpop.f32.mrb[0].mxu0
  %v974 = vadd.f32 0.0, %v973
  %v975 = vpop.f32.mrb[0].mxu0
  %976 = vmatprep.mubr.f32.mxu0 0.0
  %977 = vmatmul.mubr.f32.gmra.mrb[0].mxu0 %v817
  %v978 = vpop.f32.mrb[0].mxu0
  %v979 = vadd.f32 0.0, %v978
  %v980 = vpop.f32.mrb[0].mxu0
  %981 = vmatprep.mubr.f32.mxu0 0.0
  %982 = vmatmul.mubr.f32.gmra.mrb[0].mxu0 %v822
  %v983 = vpop.f32.mrb[0].mxu0
  %v984 = vadd.f32 0.0, %v983
  %v985 = vpop.f32.mrb[0].mxu0
  %986 = vmatprep.mubr.f32.mxu0 0.0
  %987 = vmatmul.mubr.f32.gmra.mrb[0].mxu0 %v827
  %v988 = vpop.f32.mrb[0].mxu0
  %v989 = vadd.f32 0.0, %v988
  %v990 = vpop.f32.mrb[0].mxu0
  %991 = vmatprep.mubr.f32.mxu0 0.0
  %992 = vmatmul.mubr.f32.gmra.mrb[0].mxu0 %v832
  %v993 = vpop.f32.mrb[0].mxu0
  %v994 = vadd.f32 0.0, %v993
  %v995 = vpop.f32.mrb[0].mxu0
  %996 = vmatprep.mubr.f32.mxu0 0.0
  %997 = vmatmul.mubr.f32.gmra.mrb[0].mxu0 %v837
  %v998 = vpop.f32.mrb[0].mxu0
  %v999 = vadd.f32 0.0, %v998
  %v1000 = vpop.f32.mrb[0].mxu0
  %1001 = vdwg.mxu0
  %1002 = vmatprep.subr.mxu0 0.0
  %1003 = vmatpush1.msra.mxu0 %v614
  %1004 = vmatprep.subr.mxu0 0.0
  %1005 = vmatpush1.msra.mxu0 %v615
  %1006 = vmatprep.subr.mxu0 0.0
  %1007 = vmatpush1.msra.mxu0 %v616
  %1008 = vmatprep.subr.mxu0 0.0
  %1009 = vmatpush1.msra.mxu0 %v617
  %1010 = vmatprep.subr.mxu0 0.0
  %1011 = vmatpush1.msra.mxu0 %v618
  %1012 = vmatprep.subr.mxu0 0.0
  %1013 = vmatpush1.msra.mxu0 %v619
  %1014 = vmatprep.subr.mxu0 0.0
  %1015 = vmatpush1.msra.mxu0 %v620
  %1016 = vmatprep.subr.mxu0 0.0
  %1017 = vmatpush1.msra.mxu0 %v621
  %1018 = vmatprep.subr.mxu0 0.0
  %1019 = vmatpush1.msra.mxu0 %v622
  %1020 = vmatprep.subr.mxu0 0.0
  %1021 = vmatpush1.msra.mxu0 %v623
  %1022 = vmatprep.subr.mxu0 0.0
  %1023 = vmatpush1.msra.mxu0 %v624
  %1024 = vmatprep.subr.mxu0 0.0
  %1025 = vmatpush1.msra.mxu0 %v625
  %1026 = vmatprep.subr.mxu0 0.0
  %1027 = vmatpush1.msra.mxu0 %v626
  %1028 = vmatprep.subr.mxu0 0.0
  %1029 = vmatpush1.msra.mxu0 %v627
  %1030 = vmatprep.subr.mxu0 0.0
  %1031 = vmatpush1.msra.mxu0 %v628
  %1032 = vmatprep.subr.mxu0 0.0
  %1033 = vmatpush1.msra.mxu0 %v629
  %1034 = vmatprep.subr.mxu0 0.0
  %1035 = vmatpush1.msra.mxu0 0.0
  %1036 = vmatprep.subr.mxu0 0.0
  %1037 = vmatpush1.msra.mxu0 0.0
  %1038 = vmatprep.subr.mxu0 0.0
  %1039 = vmatpush1.msra.mxu0 0.0
  %1040 = vmatprep.subr.mxu0 0.0
  %1041 = vmatpush1.msra.mxu0 0.0
  %1042 = vmatprep.subr.mxu0 0.0
  %1043 = vmatpush1.msra.mxu0 0.0
  %1044 = vmatprep.subr.mxu0 0.0
  %1045 = vmatpush1.msra.mxu0 0.0
  %1046 = vmatprep.subr.mxu0 0.0
  %1047 = vmatpush1.msra.mxu0 0.0
  %1048 = vmatprep.subr.mxu0 0.0
  %1049 = vmatpush1.msra.mxu0 0.0
  %1050 = vmatprep.subr.mxu0 0.0
  %1051 = vmatpush1.msra.mxu0 0.0
  %1052 = vmatprep.subr.mxu0 0.0
  %1053 = vmatpush1.msra.mxu0 0.0
  %1054 = vmatprep.subr.mxu0 0.0
  %1055 = vmatpush1.msra.mxu0 0.0
  %1056 = vmatprep.subr.mxu0 0.0
  %1057 = vmatpush1.msra.mxu0 0.0
  %1058 = vmatprep.subr.mxu0 0.0
  %1059 = vmatpush1.msra.mxu0 0.0
  %1060 = vmatprep.subr.mxu0 0.0
  %1061 = vmatpush1.msra.mxu0 0.0
  %1062 = vmatprep.subr.mxu0 0.0
  %1063 = vmatpush1.msra.mxu0 0.0
  %1064 = vmatprep.subr.mxu0 0.0
  %1065 = vmatpush1.msra.mxu0 0.0
  %1066 = vmatprep.mubr.f32.mxu0 0.0
  %1067 = vmatmul.mubr.f32.gmra.mrb[0].mxu0 %v536
  %v1068 = vpop.f32.mrb[0].mxu0
  %v1069 = vadd.f32 %v924, %v1068
  %v1070 = vpop.f32.mrb[0].mxu0
  %1071 = vmatprep.mubr.f32.mxu0 0.0
  %1072 = vmatmul.mubr.f32.gmra.mrb[0].mxu0 %v541
  %v1073 = vpop.f32.mrb[0].mxu0
  %v1074 = vadd.f32 %v929, %v1073
  %v1075 = vpop.f32.mrb[0].mxu0
  %1076 = vmatprep.mubr.f32.mxu0 0.0
  %1077 = vmatmul.mubr.f32.gmra.mrb[0].mxu0 %v546
  %v1078 = vpop.f32.mrb[0].mxu0
  %v1079 = vadd.f32 %v934, %v1078
  %v1080 = vpop.f32.mrb[0].mxu0
  %1081 = vmatprep.mubr.f32.mxu0 0.0
  %1082 = vmatmul.mubr.f32.gmra.mrb[0].mxu0 %v551
  %v1083 = vpop.f32.mrb[0].mxu0
  %v1084 = vadd.f32 %v939, %v1083
  %v1085 = vpop.f32.mrb[0].mxu0
  %1086 = vmatprep.mubr.f32.mxu0 0.0
  %1087 = vmatmul.mubr.f32.gmra.mrb[0].mxu0 %v556
  %v1088 = vpop.f32.mrb[0].mxu0
  %v1089 = vadd.f32 %v944, %v1088
  %v1090 = vpop.f32.mrb[0].mxu0
  %1091 = vmatprep.mubr.f32.mxu0 0.0
  %1092 = vmatmul.mubr.f32.gmra.mrb[0].mxu0 %v561
  %v1093 = vpop.f32.mrb[0].mxu0
  %v1094 = vadd.f32 %v949, %v1093
  %v1095 = vpop.f32.mrb[0].mxu0
  %1096 = vmatprep.mubr.f32.mxu0 0.0
  %1097 = vmatmul.mubr.f32.gmra.mrb[0].mxu0 %v566
  %v1098 = vpop.f32.mrb[0].mxu0
  %v1099 = vadd.f32 %v954, %v1098
  %v1100 = vpop.f32.mrb[0].mxu0
  %1101 = vmatprep.mubr.f32.mxu0 0.0
  %1102 = vmatmul.mubr.f32.gmra.mrb[0].mxu0 %v571
  %v1103 = vpop.f32.mrb[0].mxu0
  %v1104 = vadd.f32 %v959, %v1103
  %v1105 = vpop.f32.mrb[0].mxu0
  %1106 = vmatprep.mubr.f32.mxu0 0.0
  %1107 = vmatmul.mubr.f32.gmra.mrb[0].mxu0 %v576
  %v1108 = vpop.f32.mrb[0].mxu0
  %v1109 = vadd.f32 %v964, %v1108
  %v1110 = vpop.f32.mrb[0].mxu0
  %1111 = vmatprep.mubr.f32.mxu0 0.0
  %1112 = vmatmul.mubr.f32.gmra.mrb[0].mxu0 %v581
  %v1113 = vpop.f32.mrb[0].mxu0
  %v1114 = vadd.f32 %v969, %v1113
  %v1115 = vpop.f32.mrb[0].mxu0
  %1116 = vmatprep.mubr.f32.mxu0 0.0
  %1117 = vmatmul.mubr.f32.gmra.mrb[0].mxu0 %v586
  %v1118 = vpop.f32.mrb[0].mxu0
  %v1119 = vadd.f32 %v974, %v1118
  %v1120 = vpop.f32.mrb[0].mxu0
  %1121 = vmatprep.mubr.f32.mxu0 0.0
  %1122 = vmatmul.mubr.f32.gmra.mrb[0].mxu0 %v591
  %v1123 = vpop.f32.mrb[0].mxu0
  %v1124 = vadd.f32 %v979, %v1123
  %v1125 = vpop.f32.mrb[0].mxu0
  %1126 = vmatprep.mubr.f32.mxu0 0.0
  %1127 = vmatmul.mubr.f32.gmra.mrb[0].mxu0 %v596
  %v1128 = vpop.f32.mrb[0].mxu0
  %v1129 = vadd.f32 %v984, %v1128
  %v1130 = vpop.f32.mrb[0].mxu0
  %1131 = vmatprep.mubr.f32.mxu0 0.0
  %1132 = vmatmul.mubr.f32.gmra.mrb[0].mxu0 %v601
  %v1133 = vpop.f32.mrb[0].mxu0
  %v1134 = vadd.f32 %v989, %v1133
  %v1135 = vpop.f32.mrb[0].mxu0
  %1136 = vmatprep.mubr.f32.mxu0 0.0
  %1137 = vmatmul.mubr.f32.gmra.mrb[0].mxu0 %v606
  %v1138 = vpop.f32.mrb[0].mxu0
  %v1139 = vadd.f32 %v994, %v1138
  %v1140 = vpop.f32.mrb[0].mxu0
  %1141 = vmatprep.mubr.f32.mxu0 0.0
  %1142 = vmatmul.mubr.f32.gmra.mrb[0].mxu0 %v611
  %v1143 = vpop.f32.mrb[0].mxu0
  %v1144 = vadd.f32 %v999, %v1143
  %v1145 = vpop.f32.mrb[0].mxu0
  %1146 = vdwg.mxu0
  %s1147 = scalar_lea.vmem %s1, 256
  %v1148 = vld [vmem:[%s1147] sm:$0xff]
  %v1149 = vld [vmem:[%s1147 + $0x8] sm:$0xff]
  %v1150 = vld [vmem:[%s1147 + $0x10] sm:$0xff]
  %v1151 = vld [vmem:[%s1147 + $0x18] sm:$0xff]
  %v1152 = vld [vmem:[%s1147 + $0x20] sm:$0xff]
  %v1153 = vld [vmem:[%s1147 + $0x28] sm:$0xff]
  %v1154 = vld [vmem:[%s1147 + $0x30] sm:$0xff]
  %v1155 = vld [vmem:[%s1147 + $0x38] sm:$0xff]
  %v1156 = vld [vmem:[%s1147 + $0x40] sm:$0xff]
  %v1157 = vld [vmem:[%s1147 + $0x48] sm:$0xff]
  %v1158 = vld [vmem:[%s1147 + $0x50] sm:$0xff]
  %v1159 = vld [vmem:[%s1147 + $0x58] sm:$0xff]
  %v1160 = vld [vmem:[%s1147 + $0x60] sm:$0xff]
  %v1161 = vld [vmem:[%s1147 + $0x68] sm:$0xff]
  %v1162 = vld [vmem:[%s1147 + $0x70] sm:$0xff]
  %v1163 = vld [vmem:[%s1147 + $0x78] sm:$0xff]
  %v1165 = vsel %vm69, %v1148, 0
  %v1168 = vsel %vm69, %v1149, 0
  %v1171 = vsel %vm69, %v1150, 0
  %v1174 = vsel %vm69, %v1151, 0
  %v1177 = vsel %vm69, %v1152, 0
  %v1180 = vsel %vm69, %v1153, 0
  %v1183 = vsel %vm69, %v1154, 0
  %v1186 = vsel %vm69, %v1155, 0
  %v1189 = vsel %vm69, %v1156, 0
  %v1192 = vsel %vm69, %v1157, 0
  %v1195 = vsel %vm69, %v1158, 0
  %v1198 = vsel %vm69, %v1159, 0
  %v1201 = vsel %vm69, %v1160, 0
  %v1204 = vsel %vm69, %v1161, 0
  %v1207 = vsel %vm69, %v1162, 0
  %v1210 = vsel %vm69, %v1163, 0
  %1212 = vmatprep.subr.mxu0 0.0
  %1213 = vmatpush1.xpose.msra.mxu0 %v422
  %1214 = vmatprep.subr.mxu0 0.0
  %1215 = vmatpush1.xpose.msra.mxu0 %v425
  %1216 = vmatprep.subr.mxu0 0.0
  %1217 = vmatpush1.xpose.msra.mxu0 %v428
  %1218 = vmatprep.subr.mxu0 0.0
  %1219 = vmatpush1.xpose.msra.mxu0 %v431
  %1220 = vmatprep.subr.mxu0 0.0
  %1221 = vmatpush1.xpose.msra.mxu0 %v434
  %1222 = vmatprep.subr.mxu0 0.0
  %1223 = vmatpush1.xpose.msra.mxu0 %v437
  %1224 = vmatprep.subr.mxu0 0.0
  %1225 = vmatpush1.xpose.msra.mxu0 %v440
  %1226 = vmatprep.subr.mxu0 0.0
  %1227 = vmatpush1.xpose.msra.mxu0 %v443
  %1228 = vmatprep.subr.mxu0 0.0
  %1229 = vmatpush1.xpose.msra.mxu0 %v446
  %1230 = vmatprep.subr.mxu0 0.0
  %1231 = vmatpush1.xpose.msra.mxu0 %v449
  %1232 = vmatprep.subr.mxu0 0.0
  %1233 = vmatpush1.xpose.msra.mxu0 %v452
  %1234 = vmatprep.subr.mxu0 0.0
  %1235 = vmatpush1.xpose.msra.mxu0 %v455
  %1236 = vmatprep.subr.mxu0 0.0
  %1237 = vmatpush1.xpose.msra.mxu0 %v458
  %1238 = vmatprep.subr.mxu0 0.0
  %1239 = vmatpush1.xpose.msra.mxu0 %v461
  %1240 = vmatprep.subr.mxu0 0.0
  %1241 = vmatpush1.xpose.msra.mxu0 %v464
  %1242 = vmatprep.subr.mxu0 0.0
  %1243 = vmatpush1.xpose.msra.mxu0 %v467
  %1244 = vmatprep.subr.mxu0 0.0
  %1245 = vmatpush1.xpose.msra.mxu0 0.0
  %1246 = vmatprep.subr.mxu0 0.0
  %1247 = vmatpush1.xpose.msra.mxu0 0.0
  %1248 = vmatprep.subr.mxu0 0.0
  %1249 = vmatpush1.xpose.msra.mxu0 0.0
  %1250 = vmatprep.subr.mxu0 0.0
  %1251 = vmatpush1.xpose.msra.mxu0 0.0
  %1252 = vmatprep.subr.mxu0 0.0
  %1253 = vmatpush1.xpose.msra.mxu0 0.0
  %1254 = vmatprep.subr.mxu0 0.0
  %1255 = vmatpush1.xpose.msra.mxu0 0.0
  %1256 = vmatprep.subr.mxu0 0.0
  %1257 = vmatpush1.xpose.msra.mxu0 0.0
  %1258 = vmatprep.subr.mxu0 0.0
  %1259 = vmatpush1.xpose.msra.mxu0 0.0
  %1260 = vmatprep.subr.mxu0 0.0
  %1261 = vmatpush1.xpose.msra.mxu0 0.0
  %1262 = vmatprep.subr.mxu0 0.0
  %1263 = vmatpush1.xpose.msra.mxu0 0.0
  %1264 = vmatprep.subr.mxu0 0.0
  %1265 = vmatpush1.xpose.msra.mxu0 0.0
  %1266 = vmatprep.subr.mxu0 0.0
  %1267 = vmatpush1.xpose.msra.mxu0 0.0
  %1268 = vmatprep.subr.mxu0 0.0
  %1269 = vmatpush1.xpose.msra.mxu0 0.0
  %1270 = vmatprep.subr.mxu0 0.0
  %1271 = vmatpush1.xpose.msra.mxu0 0.0
  %1272 = vmatprep.subr.mxu0 0.0
  %1273 = vmatpush1.xpose.msra.mxu0 0.0
  %1274 = vmatprep.subr.mxu0 0.0
  %1275 = vmatpush1.xpose.msra.mxu0 0.0
  %1276 = vmatprep.mubr.f32.mxu0 0.0
  %1277 = vmatmul.mubr.f32.gmra.mrb[0].mxu0 %v1165
  %v1278 = vpop.f32.mrb[0].mxu0
  %v1279 = vadd.f32 0.0, %v1278
  %v1280 = vpop.f32.mrb[0].mxu0
  %1281 = vmatprep.mubr.f32.mxu0 0.0
  %1282 = vmatmul.mubr.f32.gmra.mrb[0].mxu0 %v1168
  %v1283 = vpop.f32.mrb[0].mxu0
  %v1284 = vadd.f32 0.0, %v1283
  %v1285 = vpop.f32.mrb[0].mxu0
  %1286 = vmatprep.mubr.f32.mxu0 0.0
  %1287 = vmatmul.mubr.f32.gmra.mrb[0].mxu0 %v1171
  %v1288 = vpop.f32.mrb[0].mxu0
  %v1289 = vadd.f32 0.0, %v1288
  %v1290 = vpop.f32.mrb[0].mxu0
  %1291 = vmatprep.mubr.f32.mxu0 0.0
  %1292 = vmatmul.mubr.f32.gmra.mrb[0].mxu0 %v1174
  %v1293 = vpop.f32.mrb[0].mxu0
  %v1294 = vadd.f32 0.0, %v1293
  %v1295 = vpop.f32.mrb[0].mxu0
  %1296 = vmatprep.mubr.f32.mxu0 0.0
  %1297 = vmatmul.mubr.f32.gmra.mrb[0].mxu0 %v1177
  %v1298 = vpop.f32.mrb[0].mxu0
  %v1299 = vadd.f32 0.0, %v1298
  %v1300 = vpop.f32.mrb[0].mxu0
  %1301 = vmatprep.mubr.f32.mxu0 0.0
  %1302 = vmatmul.mubr.f32.gmra.mrb[0].mxu0 %v1180
  %v1303 = vpop.f32.mrb[0].mxu0
  %v1304 = vadd.f32 0.0, %v1303
  %v1305 = vpop.f32.mrb[0].mxu0
  %1306 = vmatprep.mubr.f32.mxu0 0.0
  %1307 = vmatmul.mubr.f32.gmra.mrb[0].mxu0 %v1183
  %v1308 = vpop.f32.mrb[0].mxu0
  %v1309 = vadd.f32 0.0, %v1308
  %v1310 = vpop.f32.mrb[0].mxu0
  %1311 = vmatprep.mubr.f32.mxu0 0.0
  %1312 = vmatmul.mubr.f32.gmra.mrb[0].mxu0 %v1186
  %v1313 = vpop.f32.mrb[0].mxu0
  %v1314 = vadd.f32 0.0, %v1313
  %v1315 = vpop.f32.mrb[0].mxu0
  %1316 = vmatprep.mubr.f32.mxu0 0.0
  %1317 = vmatmul.mubr.f32.gmra.mrb[0].mxu0 %v1189
  %v1318 = vpop.f32.mrb[0].mxu0
  %v1319 = vadd.f32 0.0, %v1318
  %v1320 = vpop.f32.mrb[0].mxu0
  %1321 = vmatprep.mubr.f32.mxu0 0.0
  %1322 = vmatmul.mubr.f32.gmra.mrb[0].mxu0 %v1192
  %v1323 = vpop.f32.mrb[0].mxu0
  %v1324 = vadd.f32 0.0, %v1323
  %v1325 = vpop.f32.mrb[0].mxu0
  %1326 = vmatprep.mubr.f32.mxu0 0.0
  %1327 = vmatmul.mubr.f32.gmra.mrb[0].mxu0 %v1195
  %v1328 = vpop.f32.mrb[0].mxu0
  %v1329 = vadd.f32 0.0, %v1328
  %v1330 = vpop.f32.mrb[0].mxu0
  %1331 = vmatprep.mubr.f32.mxu0 0.0
  %1332 = vmatmul.mubr.f32.gmra.mrb[0].mxu0 %v1198
  %v1333 = vpop.f32.mrb[0].mxu0
  %v1334 = vadd.f32 0.0, %v1333
  %v1335 = vpop.f32.mrb[0].mxu0
  %1336 = vmatprep.mubr.f32.mxu0 0.0
  %1337 = vmatmul.mubr.f32.gmra.mrb[0].mxu0 %v1201
  %v1338 = vpop.f32.mrb[0].mxu0
  %v1339 = vadd.f32 0.0, %v1338
  %v1340 = vpop.f32.mrb[0].mxu0
  %1341 = vmatprep.mubr.f32.mxu0 0.0
  %1342 = vmatmul.mubr.f32.gmra.mrb[0].mxu0 %v1204
  %v1343 = vpop.f32.mrb[0].mxu0
  %v1344 = vadd.f32 0.0, %v1343
  %v1345 = vpop.f32.mrb[0].mxu0
  %1346 = vmatprep.mubr.f32.mxu0 0.0
  %1347 = vmatmul.mubr.f32.gmra.mrb[0].mxu0 %v1207
  %v1348 = vpop.f32.mrb[0].mxu0
  %v1349 = vadd.f32 0.0, %v1348
  %v1350 = vpop.f32.mrb[0].mxu0
  %1351 = vmatprep.mubr.f32.mxu0 0.0
  %1352 = vmatmul.mubr.f32.gmra.mrb[0].mxu0 %v1210
  %v1353 = vpop.f32.mrb[0].mxu0
  %v1354 = vadd.f32 0.0, %v1353
  %v1355 = vpop.f32.mrb[0].mxu0
  %1356 = vdwg.mxu0
  %s1357 = scalar_lea.vmem %s2, 256
  %v1358 = vld [vmem:[%s1357] sm:$0xff]
  %v1359 = vld [vmem:[%s1357 + $0x8] sm:$0xff]
  %v1360 = vld [vmem:[%s1357 + $0x10] sm:$0xff]
  %v1361 = vld [vmem:[%s1357 + $0x18] sm:$0xff]
  %v1362 = vld [vmem:[%s1357 + $0x20] sm:$0xff]
  %v1363 = vld [vmem:[%s1357 + $0x28] sm:$0xff]
  %v1364 = vld [vmem:[%s1357 + $0x30] sm:$0xff]
  %v1365 = vld [vmem:[%s1357 + $0x38] sm:$0xff]
  %v1366 = vld [vmem:[%s1357 + $0x40] sm:$0xff]
  %v1367 = vld [vmem:[%s1357 + $0x48] sm:$0xff]
  %v1368 = vld [vmem:[%s1357 + $0x50] sm:$0xff]
  %v1369 = vld [vmem:[%s1357 + $0x58] sm:$0xff]
  %v1370 = vld [vmem:[%s1357 + $0x60] sm:$0xff]
  %v1371 = vld [vmem:[%s1357 + $0x68] sm:$0xff]
  %v1372 = vld [vmem:[%s1357 + $0x70] sm:$0xff]
  %v1373 = vld [vmem:[%s1357 + $0x78] sm:$0xff]
  %1374 = vmatprep.subr.mxu0 0.0
  %1375 = vmatpush1.msra.mxu0 %v1358
  %1376 = vmatprep.subr.mxu0 0.0
  %1377 = vmatpush1.msra.mxu0 %v1359
  %1378 = vmatprep.subr.mxu0 0.0
  %1379 = vmatpush1.msra.mxu0 %v1360
  %1380 = vmatprep.subr.mxu0 0.0
  %1381 = vmatpush1.msra.mxu0 %v1361
  %1382 = vmatprep.subr.mxu0 0.0
  %1383 = vmatpush1.msra.mxu0 %v1362
  %1384 = vmatprep.subr.mxu0 0.0
  %1385 = vmatpush1.msra.mxu0 %v1363
  %1386 = vmatprep.subr.mxu0 0.0
  %1387 = vmatpush1.msra.mxu0 %v1364
  %1388 = vmatprep.subr.mxu0 0.0
  %1389 = vmatpush1.msra.mxu0 %v1365
  %1390 = vmatprep.subr.mxu0 0.0
  %1391 = vmatpush1.msra.mxu0 %v1366
  %1392 = vmatprep.subr.mxu0 0.0
  %1393 = vmatpush1.msra.mxu0 %v1367
  %1394 = vmatprep.subr.mxu0 0.0
  %1395 = vmatpush1.msra.mxu0 %v1368
  %1396 = vmatprep.subr.mxu0 0.0
  %1397 = vmatpush1.msra.mxu0 %v1369
  %1398 = vmatprep.subr.mxu0 0.0
  %1399 = vmatpush1.msra.mxu0 %v1370
  %1400 = vmatprep.subr.mxu0 0.0
  %1401 = vmatpush1.msra.mxu0 %v1371
  %1402 = vmatprep.subr.mxu0 0.0
  %1403 = vmatpush1.msra.mxu0 %v1372
  %1404 = vmatprep.subr.mxu0 0.0
  %1405 = vmatpush1.msra.mxu0 %v1373
  %1406 = vmatprep.subr.mxu0 0.0
  %1407 = vmatpush1.msra.mxu0 0.0
  %1408 = vmatprep.subr.mxu0 0.0
  %1409 = vmatpush1.msra.mxu0 0.0
  %1410 = vmatprep.subr.mxu0 0.0
  %1411 = vmatpush1.msra.mxu0 0.0
  %1412 = vmatprep.subr.mxu0 0.0
  %1413 = vmatpush1.msra.mxu0 0.0
  %1414 = vmatprep.subr.mxu0 0.0
  %1415 = vmatpush1.msra.mxu0 0.0
  %1416 = vmatprep.subr.mxu0 0.0
  %1417 = vmatpush1.msra.mxu0 0.0
  %1418 = vmatprep.subr.mxu0 0.0
  %1419 = vmatpush1.msra.mxu0 0.0
  %1420 = vmatprep.subr.mxu0 0.0
  %1421 = vmatpush1.msra.mxu0 0.0
  %1422 = vmatprep.subr.mxu0 0.0
  %1423 = vmatpush1.msra.mxu0 0.0
  %1424 = vmatprep.subr.mxu0 0.0
  %1425 = vmatpush1.msra.mxu0 0.0
  %1426 = vmatprep.subr.mxu0 0.0
  %1427 = vmatpush1.msra.mxu0 0.0
  %1428 = vmatprep.subr.mxu0 0.0
  %1429 = vmatpush1.msra.mxu0 0.0
  %1430 = vmatprep.subr.mxu0 0.0
  %1431 = vmatpush1.msra.mxu0 0.0
  %1432 = vmatprep.subr.mxu0 0.0
  %1433 = vmatpush1.msra.mxu0 0.0
  %1434 = vmatprep.subr.mxu0 0.0
  %1435 = vmatpush1.msra.mxu0 0.0
  %1436 = vmatprep.subr.mxu0 0.0
  %1437 = vmatpush1.msra.mxu0 0.0
  %1438 = vmatprep.mubr.f32.mxu0 0.0
  %1439 = vmatmul.mubr.f32.gmra.mrb[0].mxu0 %v1279
  %v1440 = vpop.f32.mrb[0].mxu0
  %v1441 = vadd.f32 0.0, %v1440
  %v1442 = vpop.f32.mrb[0].mxu0
  %1443 = vmatprep.mubr.f32.mxu0 0.0
  %1444 = vmatmul.mubr.f32.gmra.mrb[0].mxu0 %v1284
  %v1445 = vpop.f32.mrb[0].mxu0
  %v1446 = vadd.f32 0.0, %v1445
  %v1447 = vpop.f32.mrb[0].mxu0
  %1448 = vmatprep.mubr.f32.mxu0 0.0
  %1449 = vmatmul.mubr.f32.gmra.mrb[0].mxu0 %v1289
  %v1450 = vpop.f32.mrb[0].mxu0
  %v1451 = vadd.f32 0.0, %v1450
  %v1452 = vpop.f32.mrb[0].mxu0
  %1453 = vmatprep.mubr.f32.mxu0 0.0
  %1454 = vmatmul.mubr.f32.gmra.mrb[0].mxu0 %v1294
  %v1455 = vpop.f32.mrb[0].mxu0
  %v1456 = vadd.f32 0.0, %v1455
  %v1457 = vpop.f32.mrb[0].mxu0
  %1458 = vmatprep.mubr.f32.mxu0 0.0
  %1459 = vmatmul.mubr.f32.gmra.mrb[0].mxu0 %v1299
  %v1460 = vpop.f32.mrb[0].mxu0
  %v1461 = vadd.f32 0.0, %v1460
  %v1462 = vpop.f32.mrb[0].mxu0
  %1463 = vmatprep.mubr.f32.mxu0 0.0
  %1464 = vmatmul.mubr.f32.gmra.mrb[0].mxu0 %v1304
  %v1465 = vpop.f32.mrb[0].mxu0
  %v1466 = vadd.f32 0.0, %v1465
  %v1467 = vpop.f32.mrb[0].mxu0
  %1468 = vmatprep.mubr.f32.mxu0 0.0
  %1469 = vmatmul.mubr.f32.gmra.mrb[0].mxu0 %v1309
  %v1470 = vpop.f32.mrb[0].mxu0
  %v1471 = vadd.f32 0.0, %v1470
  %v1472 = vpop.f32.mrb[0].mxu0
  %1473 = vmatprep.mubr.f32.mxu0 0.0
  %1474 = vmatmul.mubr.f32.gmra.mrb[0].mxu0 %v1314
  %v1475 = vpop.f32.mrb[0].mxu0
  %v1476 = vadd.f32 0.0, %v1475
  %v1477 = vpop.f32.mrb[0].mxu0
  %1478 = vmatprep.mubr.f32.mxu0 0.0
  %1479 = vmatmul.mubr.f32.gmra.mrb[0].mxu0 %v1319
  %v1480 = vpop.f32.mrb[0].mxu0
  %v1481 = vadd.f32 0.0, %v1480
  %v1482 = vpop.f32.mrb[0].mxu0
  %1483 = vmatprep.mubr.f32.mxu0 0.0
  %1484 = vmatmul.mubr.f32.gmra.mrb[0].mxu0 %v1324
  %v1485 = vpop.f32.mrb[0].mxu0
  %v1486 = vadd.f32 0.0, %v1485
  %v1487 = vpop.f32.mrb[0].mxu0
  %1488 = vmatprep.mubr.f32.mxu0 0.0
  %1489 = vmatmul.mubr.f32.gmra.mrb[0].mxu0 %v1329
  %v1490 = vpop.f32.mrb[0].mxu0
  %v1491 = vadd.f32 0.0, %v1490
  %v1492 = vpop.f32.mrb[0].mxu0
  %1493 = vmatprep.mubr.f32.mxu0 0.0
  %1494 = vmatmul.mubr.f32.gmra.mrb[0].mxu0 %v1334
  %v1495 = vpop.f32.mrb[0].mxu0
  %v1496 = vadd.f32 0.0, %v1495
  %v1497 = vpop.f32.mrb[0].mxu0
  %1498 = vmatprep.mubr.f32.mxu0 0.0
  %1499 = vmatmul.mubr.f32.gmra.mrb[0].mxu0 %v1339
  %v1500 = vpop.f32.mrb[0].mxu0
  %v1501 = vadd.f32 0.0, %v1500
  %v1502 = vpop.f32.mrb[0].mxu0
  %1503 = vmatprep.mubr.f32.mxu0 0.0
  %1504 = vmatmul.mubr.f32.gmra.mrb[0].mxu0 %v1344
  %v1505 = vpop.f32.mrb[0].mxu0
  %v1506 = vadd.f32 0.0, %v1505
  %v1507 = vpop.f32.mrb[0].mxu0
  %1508 = vmatprep.mubr.f32.mxu0 0.0
  %1509 = vmatmul.mubr.f32.gmra.mrb[0].mxu0 %v1349
  %v1510 = vpop.f32.mrb[0].mxu0
  %v1511 = vadd.f32 0.0, %v1510
  %v1512 = vpop.f32.mrb[0].mxu0
  %1513 = vmatprep.mubr.f32.mxu0 0.0
  %1514 = vmatmul.mubr.f32.gmra.mrb[0].mxu0 %v1354
  %v1515 = vpop.f32.mrb[0].mxu0
  %v1516 = vadd.f32 0.0, %v1515
  %v1517 = vpop.f32.mrb[0].mxu0
  %1518 = vdwg.mxu0
  %v1519 = vadd.f32 %v1069, %v1441
  %v1520 = vadd.f32 %v1074, %v1446
  %v1521 = vadd.f32 %v1079, %v1451
  %v1522 = vadd.f32 %v1084, %v1456
  %v1523 = vadd.f32 %v1089, %v1461
  %v1524 = vadd.f32 %v1094, %v1466
  %v1525 = vadd.f32 %v1099, %v1471
  %v1526 = vadd.f32 %v1104, %v1476
  %v1527 = vadd.f32 %v1109, %v1481
  %v1528 = vadd.f32 %v1114, %v1486
  %v1529 = vadd.f32 %v1119, %v1491
  %v1530 = vadd.f32 %v1124, %v1496
  %v1531 = vadd.f32 %v1129, %v1501
  %v1532 = vadd.f32 %v1134, %v1506
  %v1533 = vadd.f32 %v1139, %v1511
  %v1534 = vadd.f32 %v1144, %v1516
  %s1535 = scalar_lea.vmem %s1, 384
  %v1536 = vld [vmem:[%s1535] sm:$0xff]
  %v1537 = vld [vmem:[%s1535 + $0x8] sm:$0xff]
  %v1538 = vld [vmem:[%s1535 + $0x10] sm:$0xff]
  %v1539 = vld [vmem:[%s1535 + $0x18] sm:$0xff]
  %v1540 = vld [vmem:[%s1535 + $0x20] sm:$0xff]
  %v1541 = vld [vmem:[%s1535 + $0x28] sm:$0xff]
  %v1542 = vld [vmem:[%s1535 + $0x30] sm:$0xff]
  %v1543 = vld [vmem:[%s1535 + $0x38] sm:$0xff]
  %v1544 = vld [vmem:[%s1535 + $0x40] sm:$0xff]
  %v1545 = vld [vmem:[%s1535 + $0x48] sm:$0xff]
  %v1546 = vld [vmem:[%s1535 + $0x50] sm:$0xff]
  %v1547 = vld [vmem:[%s1535 + $0x58] sm:$0xff]
  %v1548 = vld [vmem:[%s1535 + $0x60] sm:$0xff]
  %v1549 = vld [vmem:[%s1535 + $0x68] sm:$0xff]
  %v1550 = vld [vmem:[%s1535 + $0x70] sm:$0xff]
  %v1551 = vld [vmem:[%s1535 + $0x78] sm:$0xff]
  %v1553 = vsel %vm69, %v1536, 0
  %v1556 = vsel %vm69, %v1537, 0
  %v1559 = vsel %vm69, %v1538, 0
  %v1562 = vsel %vm69, %v1539, 0
  %v1565 = vsel %vm69, %v1540, 0
  %v1568 = vsel %vm69, %v1541, 0
  %v1571 = vsel %vm69, %v1542, 0
  %v1574 = vsel %vm69, %v1543, 0
  %v1577 = vsel %vm69, %v1544, 0
  %v1580 = vsel %vm69, %v1545, 0
  %v1583 = vsel %vm69, %v1546, 0
  %v1586 = vsel %vm69, %v1547, 0
  %v1589 = vsel %vm69, %v1548, 0
  %v1592 = vsel %vm69, %v1549, 0
  %v1595 = vsel %vm69, %v1550, 0
  %v1598 = vsel %vm69, %v1551, 0
  %1600 = vmatprep.subr.mxu0 0.0
  %1601 = vmatpush1.xpose.msra.mxu0 %v422
  %1602 = vmatprep.subr.mxu0 0.0
  %1603 = vmatpush1.xpose.msra.mxu0 %v425
  %1604 = vmatprep.subr.mxu0 0.0
  %1605 = vmatpush1.xpose.msra.mxu0 %v428
  %1606 = vmatprep.subr.mxu0 0.0
  %1607 = vmatpush1.xpose.msra.mxu0 %v431
  %1608 = vmatprep.subr.mxu0 0.0
  %1609 = vmatpush1.xpose.msra.mxu0 %v434
  %1610 = vmatprep.subr.mxu0 0.0
  %1611 = vmatpush1.xpose.msra.mxu0 %v437
  %1612 = vmatprep.subr.mxu0 0.0
  %1613 = vmatpush1.xpose.msra.mxu0 %v440
  %1614 = vmatprep.subr.mxu0 0.0
  %1615 = vmatpush1.xpose.msra.mxu0 %v443
  %1616 = vmatprep.subr.mxu0 0.0
  %1617 = vmatpush1.xpose.msra.mxu0 %v446
  %1618 = vmatprep.subr.mxu0 0.0
  %1619 = vmatpush1.xpose.msra.mxu0 %v449
  %1620 = vmatprep.subr.mxu0 0.0
  %1621 = vmatpush1.xpose.msra.mxu0 %v452
  %1622 = vmatprep.subr.mxu0 0.0
  %1623 = vmatpush1.xpose.msra.mxu0 %v455
  %1624 = vmatprep.subr.mxu0 0.0
  %1625 = vmatpush1.xpose.msra.mxu0 %v458
  %1626 = vmatprep.subr.mxu0 0.0
  %1627 = vmatpush1.xpose.msra.mxu0 %v461
  %1628 = vmatprep.subr.mxu0 0.0
  %1629 = vmatpush1.xpose.msra.mxu0 %v464
  %1630 = vmatprep.subr.mxu0 0.0
  %1631 = vmatpush1.xpose.msra.mxu0 %v467
  %1632 = vmatprep.subr.mxu0 0.0
  %1633 = vmatpush1.xpose.msra.mxu0 0.0
  %1634 = vmatprep.subr.mxu0 0.0
  %1635 = vmatpush1.xpose.msra.mxu0 0.0
  %1636 = vmatprep.subr.mxu0 0.0
  %1637 = vmatpush1.xpose.msra.mxu0 0.0
  %1638 = vmatprep.subr.mxu0 0.0
  %1639 = vmatpush1.xpose.msra.mxu0 0.0
  %1640 = vmatprep.subr.mxu0 0.0
  %1641 = vmatpush1.xpose.msra.mxu0 0.0
  %1642 = vmatprep.subr.mxu0 0.0
  %1643 = vmatpush1.xpose.msra.mxu0 0.0
  %1644 = vmatprep.subr.mxu0 0.0
  %1645 = vmatpush1.xpose.msra.mxu0 0.0
  %1646 = vmatprep.subr.mxu0 0.0
  %1647 = vmatpush1.xpose.msra.mxu0 0.0
  %1648 = vmatprep.subr.mxu0 0.0
  %1649 = vmatpush1.xpose.msra.mxu0 0.0
  %1650 = vmatprep.subr.mxu0 0.0
  %1651 = vmatpush1.xpose.msra.mxu0 0.0
  %1652 = vmatprep.subr.mxu0 0.0
  %1653 = vmatpush1.xpose.msra.mxu0 0.0
  %1654 = vmatprep.subr.mxu0 0.0
  %1655 = vmatpush1.xpose.msra.mxu0 0.0
  %1656 = vmatprep.subr.mxu0 0.0
  %1657 = vmatpush1.xpose.msra.mxu0 0.0
  %1658 = vmatprep.subr.mxu0 0.0
  %1659 = vmatpush1.xpose.msra.mxu0 0.0
  %1660 = vmatprep.subr.mxu0 0.0
  %1661 = vmatpush1.xpose.msra.mxu0 0.0
  %1662 = vmatprep.subr.mxu0 0.0
  %1663 = vmatpush1.xpose.msra.mxu0 0.0
  %1664 = vmatprep.mubr.f32.mxu0 0.0
  %1665 = vmatmul.mubr.f32.gmra.mrb[0].mxu0 %v1553
  %v1666 = vpop.f32.mrb[0].mxu0
  %v1667 = vadd.f32 0.0, %v1666
  %v1668 = vpop.f32.mrb[0].mxu0
  %1669 = vmatprep.mubr.f32.mxu0 0.0
  %1670 = vmatmul.mubr.f32.gmra.mrb[0].mxu0 %v1556
  %v1671 = vpop.f32.mrb[0].mxu0
  %v1672 = vadd.f32 0.0, %v1671
  %v1673 = vpop.f32.mrb[0].mxu0
  %1674 = vmatprep.mubr.f32.mxu0 0.0
  %1675 = vmatmul.mubr.f32.gmra.mrb[0].mxu0 %v1559
  %v1676 = vpop.f32.mrb[0].mxu0
  %v1677 = vadd.f32 0.0, %v1676
  %v1678 = vpop.f32.mrb[0].mxu0
  %1679 = vmatprep.mubr.f32.mxu0 0.0
  %1680 = vmatmul.mubr.f32.gmra.mrb[0].mxu0 %v1562
  %v1681 = vpop.f32.mrb[0].mxu0
  %v1682 = vadd.f32 0.0, %v1681
  %v1683 = vpop.f32.mrb[0].mxu0
  %1684 = vmatprep.mubr.f32.mxu0 0.0
  %1685 = vmatmul.mubr.f32.gmra.mrb[0].mxu0 %v1565
  %v1686 = vpop.f32.mrb[0].mxu0
  %v1687 = vadd.f32 0.0, %v1686
  %v1688 = vpop.f32.mrb[0].mxu0
  %1689 = vmatprep.mubr.f32.mxu0 0.0
  %1690 = vmatmul.mubr.f32.gmra.mrb[0].mxu0 %v1568
  %v1691 = vpop.f32.mrb[0].mxu0
  %v1692 = vadd.f32 0.0, %v1691
  %v1693 = vpop.f32.mrb[0].mxu0
  %1694 = vmatprep.mubr.f32.mxu0 0.0
  %1695 = vmatmul.mubr.f32.gmra.mrb[0].mxu0 %v1571
  %v1696 = vpop.f32.mrb[0].mxu0
  %v1697 = vadd.f32 0.0, %v1696
  %v1698 = vpop.f32.mrb[0].mxu0
  %1699 = vmatprep.mubr.f32.mxu0 0.0
  %1700 = vmatmul.mubr.f32.gmra.mrb[0].mxu0 %v1574
  %v1701 = vpop.f32.mrb[0].mxu0
  %v1702 = vadd.f32 0.0, %v1701
  %v1703 = vpop.f32.mrb[0].mxu0
  %1704 = vmatprep.mubr.f32.mxu0 0.0
  %1705 = vmatmul.mubr.f32.gmra.mrb[0].mxu0 %v1577
  %v1706 = vpop.f32.mrb[0].mxu0
  %v1707 = vadd.f32 0.0, %v1706
  %v1708 = vpop.f32.mrb[0].mxu0
  %1709 = vmatprep.mubr.f32.mxu0 0.0
  %1710 = vmatmul.mubr.f32.gmra.mrb[0].mxu0 %v1580
  %v1711 = vpop.f32.mrb[0].mxu0
  %v1712 = vadd.f32 0.0, %v1711
  %v1713 = vpop.f32.mrb[0].mxu0
  %1714 = vmatprep.mubr.f32.mxu0 0.0
  %1715 = vmatmul.mubr.f32.gmra.mrb[0].mxu0 %v1583
  %v1716 = vpop.f32.mrb[0].mxu0
  %v1717 = vadd.f32 0.0, %v1716
  %v1718 = vpop.f32.mrb[0].mxu0
  %1719 = vmatprep.mubr.f32.mxu0 0.0
  %1720 = vmatmul.mubr.f32.gmra.mrb[0].mxu0 %v1586
  %v1721 = vpop.f32.mrb[0].mxu0
  %v1722 = vadd.f32 0.0, %v1721
  %v1723 = vpop.f32.mrb[0].mxu0
  %1724 = vmatprep.mubr.f32.mxu0 0.0
  %1725 = vmatmul.mubr.f32.gmra.mrb[0].mxu0 %v1589
  %v1726 = vpop.f32.mrb[0].mxu0
  %v1727 = vadd.f32 0.0, %v1726
  %v1728 = vpop.f32.mrb[0].mxu0
  %1729 = vmatprep.mubr.f32.mxu0 0.0
  %1730 = vmatmul.mubr.f32.gmra.mrb[0].mxu0 %v1592
  %v1731 = vpop.f32.mrb[0].mxu0
  %v1732 = vadd.f32 0.0, %v1731
  %v1733 = vpop.f32.mrb[0].mxu0
  %1734 = vmatprep.mubr.f32.mxu0 0.0
  %1735 = vmatmul.mubr.f32.gmra.mrb[0].mxu0 %v1595
  %v1736 = vpop.f32.mrb[0].mxu0
  %v1737 = vadd.f32 0.0, %v1736
  %v1738 = vpop.f32.mrb[0].mxu0
  %1739 = vmatprep.mubr.f32.mxu0 0.0
  %1740 = vmatmul.mubr.f32.gmra.mrb[0].mxu0 %v1598
  %v1741 = vpop.f32.mrb[0].mxu0
  %v1742 = vadd.f32 0.0, %v1741
  %v1743 = vpop.f32.mrb[0].mxu0
  %1744 = vdwg.mxu0
  %s1745 = scalar_lea.vmem %s2, 384
  %v1746 = vld [vmem:[%s1745] sm:$0xff]
  %v1747 = vld [vmem:[%s1745 + $0x8] sm:$0xff]
  %v1748 = vld [vmem:[%s1745 + $0x10] sm:$0xff]
  %v1749 = vld [vmem:[%s1745 + $0x18] sm:$0xff]
  %v1750 = vld [vmem:[%s1745 + $0x20] sm:$0xff]
  %v1751 = vld [vmem:[%s1745 + $0x28] sm:$0xff]
  %v1752 = vld [vmem:[%s1745 + $0x30] sm:$0xff]
  %v1753 = vld [vmem:[%s1745 + $0x38] sm:$0xff]
  %v1754 = vld [vmem:[%s1745 + $0x40] sm:$0xff]
  %v1755 = vld [vmem:[%s1745 + $0x48] sm:$0xff]
  %v1756 = vld [vmem:[%s1745 + $0x50] sm:$0xff]
  %v1757 = vld [vmem:[%s1745 + $0x58] sm:$0xff]
  %v1758 = vld [vmem:[%s1745 + $0x60] sm:$0xff]
  %v1759 = vld [vmem:[%s1745 + $0x68] sm:$0xff]
  %v1760 = vld [vmem:[%s1745 + $0x70] sm:$0xff]
  %v1761 = vld [vmem:[%s1745 + $0x78] sm:$0xff]
  %1762 = vmatprep.subr.mxu0 0.0
  %1763 = vmatpush1.msra.mxu0 %v1746
  %1764 = vmatprep.subr.mxu0 0.0
  %1765 = vmatpush1.msra.mxu0 %v1747
  %1766 = vmatprep.subr.mxu0 0.0
  %1767 = vmatpush1.msra.mxu0 %v1748
  %1768 = vmatprep.subr.mxu0 0.0
  %1769 = vmatpush1.msra.mxu0 %v1749
  %1770 = vmatprep.subr.mxu0 0.0
  %1771 = vmatpush1.msra.mxu0 %v1750
  %1772 = vmatprep.subr.mxu0 0.0
  %1773 = vmatpush1.msra.mxu0 %v1751
  %1774 = vmatprep.subr.mxu0 0.0
  %1775 = vmatpush1.msra.mxu0 %v1752
  %1776 = vmatprep.subr.mxu0 0.0
  %1777 = vmatpush1.msra.mxu0 %v1753
  %1778 = vmatprep.subr.mxu0 0.0
  %1779 = vmatpush1.msra.mxu0 %v1754
  %1780 = vmatprep.subr.mxu0 0.0
  %1781 = vmatpush1.msra.mxu0 %v1755
  %1782 = vmatprep.subr.mxu0 0.0
  %1783 = vmatpush1.msra.mxu0 %v1756
  %1784 = vmatprep.subr.mxu0 0.0
  %1785 = vmatpush1.msra.mxu0 %v1757
  %1786 = vmatprep.subr.mxu0 0.0
  %1787 = vmatpush1.msra.mxu0 %v1758
  %1788 = vmatprep.subr.mxu0 0.0
  %1789 = vmatpush1.msra.mxu0 %v1759
  %1790 = vmatprep.subr.mxu0 0.0
  %1791 = vmatpush1.msra.mxu0 %v1760
  %1792 = vmatprep.subr.mxu0 0.0
  %1793 = vmatpush1.msra.mxu0 %v1761
  %1794 = vmatprep.subr.mxu0 0.0
  %1795 = vmatpush1.msra.mxu0 0.0
  %1796 = vmatprep.subr.mxu0 0.0
  %1797 = vmatpush1.msra.mxu0 0.0
  %1798 = vmatprep.subr.mxu0 0.0
  %1799 = vmatpush1.msra.mxu0 0.0
  %1800 = vmatprep.subr.mxu0 0.0
  %1801 = vmatpush1.msra.mxu0 0.0
  %1802 = vmatprep.subr.mxu0 0.0
  %1803 = vmatpush1.msra.mxu0 0.0
  %1804 = vmatprep.subr.mxu0 0.0
  %1805 = vmatpush1.msra.mxu0 0.0
  %1806 = vmatprep.subr.mxu0 0.0
  %1807 = vmatpush1.msra.mxu0 0.0
  %1808 = vmatprep.subr.mxu0 0.0
  %1809 = vmatpush1.msra.mxu0 0.0
  %1810 = vmatprep.subr.mxu0 0.0
  %1811 = vmatpush1.msra.mxu0 0.0
  %1812 = vmatprep.subr.mxu0 0.0
  %1813 = vmatpush1.msra.mxu0 0.0
  %1814 = vmatprep.subr.mxu0 0.0
  %1815 = vmatpush1.msra.mxu0 0.0
  %1816 = vmatprep.subr.mxu0 0.0
  %1817 = vmatpush1.msra.mxu0 0.0
  %1818 = vmatprep.subr.mxu0 0.0
  %1819 = vmatpush1.msra.mxu0 0.0
  %1820 = vmatprep.subr.mxu0 0.0
  %1821 = vmatpush1.msra.mxu0 0.0
  %1822 = vmatprep.subr.mxu0 0.0
  %1823 = vmatpush1.msra.mxu0 0.0
  %1824 = vmatprep.subr.mxu0 0.0
  %1825 = vmatpush1.msra.mxu0 0.0
  %1826 = vmatprep.mubr.f32.mxu0 0.0
  %1827 = vmatmul.mubr.f32.gmra.mrb[0].mxu0 %v1667
  %v1828 = vpop.f32.mrb[0].mxu0
  %v1829 = vadd.f32 0.0, %v1828
  %v1830 = vpop.f32.mrb[0].mxu0
  %1831 = vmatprep.mubr.f32.mxu0 0.0
  %1832 = vmatmul.mubr.f32.gmra.mrb[0].mxu0 %v1672
  %v1833 = vpop.f32.mrb[0].mxu0
  %v1834 = vadd.f32 0.0, %v1833
  %v1835 = vpop.f32.mrb[0].mxu0
  %1836 = vmatprep.mubr.f32.mxu0 0.0
  %1837 = vmatmul.mubr.f32.gmra.mrb[0].mxu0 %v1677
  %v1838 = vpop.f32.mrb[0].mxu0
  %v1839 = vadd.f32 0.0, %v1838
  %v1840 = vpop.f32.mrb[0].mxu0
  %1841 = vmatprep.mubr.f32.mxu0 0.0
  %1842 = vmatmul.mubr.f32.gmra.mrb[0].mxu0 %v1682
  %v1843 = vpop.f32.mrb[0].mxu0
  %v1844 = vadd.f32 0.0, %v1843
  %v1845 = vpop.f32.mrb[0].mxu0
  %1846 = vmatprep.mubr.f32.mxu0 0.0
  %1847 = vmatmul.mubr.f32.gmra.mrb[0].mxu0 %v1687
  %v1848 = vpop.f32.mrb[0].mxu0
  %v1849 = vadd.f32 0.0, %v1848
  %v1850 = vpop.f32.mrb[0].mxu0
  %1851 = vmatprep.mubr.f32.mxu0 0.0
  %1852 = vmatmul.mubr.f32.gmra.mrb[0].mxu0 %v1692
  %v1853 = vpop.f32.mrb[0].mxu0
  %v1854 = vadd.f32 0.0, %v1853
  %v1855 = vpop.f32.mrb[0].mxu0
  %1856 = vmatprep.mubr.f32.mxu0 0.0
  %1857 = vmatmul.mubr.f32.gmra.mrb[0].mxu0 %v1697
  %v1858 = vpop.f32.mrb[0].mxu0
  %v1859 = vadd.f32 0.0, %v1858
  %v1860 = vpop.f32.mrb[0].mxu0
  %1861 = vmatprep.mubr.f32.mxu0 0.0
  %1862 = vmatmul.mubr.f32.gmra.mrb[0].mxu0 %v1702
  %v1863 = vpop.f32.mrb[0].mxu0
  %v1864 = vadd.f32 0.0, %v1863
  %v1865 = vpop.f32.mrb[0].mxu0
  %1866 = vmatprep.mubr.f32.mxu0 0.0
  %1867 = vmatmul.mubr.f32.gmra.mrb[0].mxu0 %v1707
  %v1868 = vpop.f32.mrb[0].mxu0
  %v1869 = vadd.f32 0.0, %v1868
  %v1870 = vpop.f32.mrb[0].mxu0
  %1871 = vmatprep.mubr.f32.mxu0 0.0
  %1872 = vmatmul.mubr.f32.gmra.mrb[0].mxu0 %v1712
  %v1873 = vpop.f32.mrb[0].mxu0
  %v1874 = vadd.f32 0.0, %v1873
  %v1875 = vpop.f32.mrb[0].mxu0
  %1876 = vmatprep.mubr.f32.mxu0 0.0
  %1877 = vmatmul.mubr.f32.gmra.mrb[0].mxu0 %v1717
  %v1878 = vpop.f32.mrb[0].mxu0
  %v1879 = vadd.f32 0.0, %v1878
  %v1880 = vpop.f32.mrb[0].mxu0
  %1881 = vmatprep.mubr.f32.mxu0 0.0
  %1882 = vmatmul.mubr.f32.gmra.mrb[0].mxu0 %v1722
  %v1883 = vpop.f32.mrb[0].mxu0
  %v1884 = vadd.f32 0.0, %v1883
  %v1885 = vpop.f32.mrb[0].mxu0
  %1886 = vmatprep.mubr.f32.mxu0 0.0
  %1887 = vmatmul.mubr.f32.gmra.mrb[0].mxu0 %v1727
  %v1888 = vpop.f32.mrb[0].mxu0
  %v1889 = vadd.f32 0.0, %v1888
  %v1890 = vpop.f32.mrb[0].mxu0
  %1891 = vmatprep.mubr.f32.mxu0 0.0
  %1892 = vmatmul.mubr.f32.gmra.mrb[0].mxu0 %v1732
  %v1893 = vpop.f32.mrb[0].mxu0
  %v1894 = vadd.f32 0.0, %v1893
  %v1895 = vpop.f32.mrb[0].mxu0
  %1896 = vmatprep.mubr.f32.mxu0 0.0
  %1897 = vmatmul.mubr.f32.gmra.mrb[0].mxu0 %v1737
  %v1898 = vpop.f32.mrb[0].mxu0
  %v1899 = vadd.f32 0.0, %v1898
  %v1900 = vpop.f32.mrb[0].mxu0
  %1901 = vmatprep.mubr.f32.mxu0 0.0
  %1902 = vmatmul.mubr.f32.gmra.mrb[0].mxu0 %v1742
  %v1903 = vpop.f32.mrb[0].mxu0
  %v1904 = vadd.f32 0.0, %v1903
  %v1905 = vpop.f32.mrb[0].mxu0
  %1906 = vdwg.mxu0
  %v1907 = vadd.f32 %v1519, %v1829
  %v1908 = vadd.f32 %v1520, %v1834
  %v1909 = vadd.f32 %v1521, %v1839
  %v1910 = vadd.f32 %v1522, %v1844
  %v1911 = vadd.f32 %v1523, %v1849
  %v1912 = vadd.f32 %v1524, %v1854
  %v1913 = vadd.f32 %v1525, %v1859
  %v1914 = vadd.f32 %v1526, %v1864
  %v1915 = vadd.f32 %v1527, %v1869
  %v1916 = vadd.f32 %v1528, %v1874
  %v1917 = vadd.f32 %v1529, %v1879
  %v1918 = vadd.f32 %v1530, %v1884
  %v1919 = vadd.f32 %v1531, %v1889
  %v1920 = vadd.f32 %v1532, %v1894
  %v1921 = vadd.f32 %v1533, %v1899
  %v1922 = vadd.f32 %v1534, %v1904
  %v1923 = vld [vmem:[%s6] sm:$0x1]
  %v1925 = vlaneseq
  %v1926 = vshrl.u32 %v1925, 7
  %v1927 = vsub.s32 0, %v1926
  %v1928 = vrot.slane %v1923, %v1927
  %v1930 = vadd.f32 %v1907, %v1928
  %v1931 = vadd.f32 %v1908, %v1928
  %v1932 = vadd.f32 %v1909, %v1928
  %v1933 = vadd.f32 %v1910, %v1928
  %v1934 = vadd.f32 %v1911, %v1928
  %v1935 = vadd.f32 %v1912, %v1928
  %v1936 = vadd.f32 %v1913, %v1928
  %v1937 = vadd.f32 %v1914, %v1928
  %v1938 = vadd.f32 %v1915, %v1928
  %v1939 = vadd.f32 %v1916, %v1928
  %v1940 = vadd.f32 %v1917, %v1928
  %v1941 = vadd.f32 %v1918, %v1928
  %v1942 = vadd.f32 %v1919, %v1928
  %v1943 = vadd.f32 %v1920, %v1928
  %v1944 = vadd.f32 %v1921, %v1928
  %v1945 = vadd.f32 %v1922, %v1928
  %v1946 = vmul.f32 %v1930, 0.35355338
  %v1947 = vmul.f32 %v1931, 0.35355338
  %v1948 = vmul.f32 %v1932, 0.35355338
  %v1949 = vmul.f32 %v1933, 0.35355338
  %v1950 = vmul.f32 %v1934, 0.35355338
  %v1951 = vmul.f32 %v1935, 0.35355338
  %v1952 = vmul.f32 %v1936, 0.35355338
  %v1953 = vmul.f32 %v1937, 0.35355338
  %v1954 = vmul.f32 %v1938, 0.35355338
  %v1955 = vmul.f32 %v1939, 0.35355338
  %v1956 = vmul.f32 %v1940, 0.35355338
  %v1957 = vmul.f32 %v1941, 0.35355338
  %v1958 = vmul.f32 %v1942, 0.35355338
  %v1959 = vmul.f32 %v1943, 0.35355338
  %v1960 = vmul.f32 %v1944, 0.35355338
  %v1961 = vmul.f32 %v1945, 0.35355338
  %v1962 = vlaneseq
  %v1963 = vand.u32 %v1962, 127
  %vm1964 = vcmp.ge.s32.totalorder %v1963, 0
  %vm1965 = vcmp.lt.s32.totalorder %v1963, 8
  %vm1966 = vmand %vm1964, %vm1965
  %v1967 = vsel %vm1966, 1, 0
  %v1968 = vcvt.s32.f32 %v1967
  %vm1969 = vcmp.ge.s32.totalorder %v1963, 8
  %vm1970 = vcmp.lt.s32.totalorder %v1963, 16
  %vm1971 = vmand %vm1969, %vm1970
  %v1972 = vsel %vm1971, 1, 0
  %v1973 = vcvt.s32.f32 %v1972
  %vm1974 = vcmp.ge.s32.totalorder %v1963, 16
  %vm1975 = vcmp.lt.s32.totalorder %v1963, 24
  %vm1976 = vmand %vm1974, %vm1975
  %v1977 = vsel %vm1976, 1, 0
  %v1978 = vcvt.s32.f32 %v1977
  %vm1979 = vcmp.ge.s32.totalorder %v1963, 24
  %vm1980 = vcmp.lt.s32.totalorder %v1963, 32
  %vm1981 = vmand %vm1979, %vm1980
  %v1982 = vsel %vm1981, 1, 0
  %v1983 = vcvt.s32.f32 %v1982
  %v1984 = vmul.f32 %v1946, %v1968
  %v1985 = vmul.f32 %v1947, %v1968
  %v1986 = vmul.f32 %v1948, %v1968
  %v1987 = vmul.f32 %v1949, %v1968
  %v1988 = vmul.f32 %v1950, %v1968
  %v1989 = vmul.f32 %v1951, %v1968
  %v1990 = vmul.f32 %v1952, %v1968
  %v1991 = vmul.f32 %v1953, %v1968
  %v1992 = vmul.f32 %v1954, %v1968
  %v1993 = vmul.f32 %v1955, %v1968
  %v1994 = vmul.f32 %v1956, %v1968
  %v1995 = vmul.f32 %v1957, %v1968
  %v1996 = vmul.f32 %v1958, %v1968
  %v1997 = vmul.f32 %v1959, %v1968
  %v1998 = vmul.f32 %v1960, %v1968
  %v1999 = vmul.f32 %v1961, %v1968
  %v2000 = vmul.f32 %v1946, %v1973
  %v2001 = vmul.f32 %v1947, %v1973
  %v2002 = vmul.f32 %v1948, %v1973
  %v2003 = vmul.f32 %v1949, %v1973
  %v2004 = vmul.f32 %v1950, %v1973
  %v2005 = vmul.f32 %v1951, %v1973
  %v2006 = vmul.f32 %v1952, %v1973
  %v2007 = vmul.f32 %v1953, %v1973
  %v2008 = vmul.f32 %v1954, %v1973
  %v2009 = vmul.f32 %v1955, %v1973
  %v2010 = vmul.f32 %v1956, %v1973
  %v2011 = vmul.f32 %v1957, %v1973
  %v2012 = vmul.f32 %v1958, %v1973
  %v2013 = vmul.f32 %v1959, %v1973
  %v2014 = vmul.f32 %v1960, %v1973
  %v2015 = vmul.f32 %v1961, %v1973
  %v2016 = vmul.f32 %v1946, %v1978
  %v2017 = vmul.f32 %v1947, %v1978
  %v2018 = vmul.f32 %v1948, %v1978
  %v2019 = vmul.f32 %v1949, %v1978
  %v2020 = vmul.f32 %v1950, %v1978
  %v2021 = vmul.f32 %v1951, %v1978
  %v2022 = vmul.f32 %v1952, %v1978
  %v2023 = vmul.f32 %v1953, %v1978
  %v2024 = vmul.f32 %v1954, %v1978
  %v2025 = vmul.f32 %v1955, %v1978
  %v2026 = vmul.f32 %v1956, %v1978
  %v2027 = vmul.f32 %v1957, %v1978
  %v2028 = vmul.f32 %v1958, %v1978
  %v2029 = vmul.f32 %v1959, %v1978
  %v2030 = vmul.f32 %v1960, %v1978
  %v2031 = vmul.f32 %v1961, %v1978
  %v2032 = vmul.f32 %v1946, %v1983
  %v2033 = vmul.f32 %v1947, %v1983
  %v2034 = vmul.f32 %v1948, %v1983
  %v2035 = vmul.f32 %v1949, %v1983
  %v2036 = vmul.f32 %v1950, %v1983
  %v2037 = vmul.f32 %v1951, %v1983
  %v2038 = vmul.f32 %v1952, %v1983
  %v2039 = vmul.f32 %v1953, %v1983
  %v2040 = vmul.f32 %v1954, %v1983
  %v2041 = vmul.f32 %v1955, %v1983
  %v2042 = vmul.f32 %v1956, %v1983
  %v2043 = vmul.f32 %v1957, %v1983
  %v2044 = vmul.f32 %v1958, %v1983
  %v2045 = vmul.f32 %v1959, %v1983
  %v2046 = vmul.f32 %v1960, %v1983
  %v2047 = vmul.f32 %v1961, %v1983
  %v2048 = vld [vmem:[%s7] sm:$0xff]
  %v2049 = vld [vmem:[%s7 + $0x8] sm:$0xff]
  %v2050 = vld [vmem:[%s7 + $0x10] sm:$0xff]
  %v2051 = vld [vmem:[%s7 + $0x18] sm:$0xff]
  %v2052 = vld [vmem:[%s7 + $0x20] sm:$0xff]
  %v2053 = vld [vmem:[%s7 + $0x28] sm:$0xff]
  %v2054 = vld [vmem:[%s7 + $0x30] sm:$0xff]
  %v2055 = vld [vmem:[%s7 + $0x38] sm:$0xff]
  %v2056 = vld [vmem:[%s7 + $0x40] sm:$0xff]
  %v2057 = vld [vmem:[%s7 + $0x48] sm:$0xff]
  %v2058 = vld [vmem:[%s7 + $0x50] sm:$0xff]
  %v2059 = vld [vmem:[%s7 + $0x58] sm:$0xff]
  %v2060 = vld [vmem:[%s7 + $0x60] sm:$0xff]
  %v2061 = vld [vmem:[%s7 + $0x68] sm:$0xff]
  %v2062 = vld [vmem:[%s7 + $0x70] sm:$0xff]
  %v2063 = vld [vmem:[%s7 + $0x78] sm:$0xff]
  %v2064 = vld [vmem:[%s7 + $0x80] sm:$0xff]
  %v2065 = vld [vmem:[%s7 + $0x88] sm:$0xff]
  %v2066 = vld [vmem:[%s7 + $0x90] sm:$0xff]
  %v2067 = vld [vmem:[%s7 + $0x98] sm:$0xff]
  %v2068 = vld [vmem:[%s7 + $0xa0] sm:$0xff]
  %v2069 = vld [vmem:[%s7 + $0xa8] sm:$0xff]
  %v2070 = vld [vmem:[%s7 + $0xb0] sm:$0xff]
  %v2071 = vld [vmem:[%s7 + $0xb8] sm:$0xff]
  %v2072 = vld [vmem:[%s7 + $0xc0] sm:$0xff]
  %v2073 = vld [vmem:[%s7 + $0xc8] sm:$0xff]
  %v2074 = vld [vmem:[%s7 + $0xd0] sm:$0xff]
  %v2075 = vld [vmem:[%s7 + $0xd8] sm:$0xff]
  %v2076 = vld [vmem:[%s7 + $0xe0] sm:$0xff]
  %v2077 = vld [vmem:[%s7 + $0xe8] sm:$0xff]
  %v2078 = vld [vmem:[%s7 + $0xf0] sm:$0xff]
  %v2079 = vld [vmem:[%s7 + $0xf8] sm:$0xff]
  %v2080 = vld [vmem:[%s7 + $0x100] sm:$0xff]
  %v2081 = vld [vmem:[%s7 + $0x108] sm:$0xff]
  %v2082 = vld [vmem:[%s7 + $0x110] sm:$0xff]
  %v2083 = vld [vmem:[%s7 + $0x118] sm:$0xff]
  %v2084 = vld [vmem:[%s7 + $0x120] sm:$0xff]
  %v2085 = vld [vmem:[%s7 + $0x128] sm:$0xff]
  %v2086 = vld [vmem:[%s7 + $0x130] sm:$0xff]
  %v2087 = vld [vmem:[%s7 + $0x138] sm:$0xff]
  %v2088 = vld [vmem:[%s7 + $0x140] sm:$0xff]
  %v2089 = vld [vmem:[%s7 + $0x148] sm:$0xff]
  %v2090 = vld [vmem:[%s7 + $0x150] sm:$0xff]
  %v2091 = vld [vmem:[%s7 + $0x158] sm:$0xff]
  %v2092 = vld [vmem:[%s7 + $0x160] sm:$0xff]
  %v2093 = vld [vmem:[%s7 + $0x168] sm:$0xff]
  %v2094 = vld [vmem:[%s7 + $0x170] sm:$0xff]
  %v2095 = vld [vmem:[%s7 + $0x178] sm:$0xff]
  %v2096 = vld [vmem:[%s7 + $0x180] sm:$0xff]
  %v2097 = vld [vmem:[%s7 + $0x188] sm:$0xff]
  %v2098 = vld [vmem:[%s7 + $0x190] sm:$0xff]
  %v2099 = vld [vmem:[%s7 + $0x198] sm:$0xff]
  %v2100 = vld [vmem:[%s7 + $0x1a0] sm:$0xff]
  %v2101 = vld [vmem:[%s7 + $0x1a8] sm:$0xff]
  %v2102 = vld [vmem:[%s7 + $0x1b0] sm:$0xff]
  %v2103 = vld [vmem:[%s7 + $0x1b8] sm:$0xff]
  %v2104 = vld [vmem:[%s7 + $0x1c0] sm:$0xff]
  %v2105 = vld [vmem:[%s7 + $0x1c8] sm:$0xff]
  %v2106 = vld [vmem:[%s7 + $0x1d0] sm:$0xff]
  %v2107 = vld [vmem:[%s7 + $0x1d8] sm:$0xff]
  %v2108 = vld [vmem:[%s7 + $0x1e0] sm:$0xff]
  %v2109 = vld [vmem:[%s7 + $0x1e8] sm:$0xff]
  %v2110 = vld [vmem:[%s7 + $0x1f0] sm:$0xff]
  %v2111 = vld [vmem:[%s7 + $0x1f8] sm:$0xff]
  %2128 = vrot.lane.b32.xlu0 %v1930, 96
  %v2129 = vpop.permute.xlu0 %2128
  %2130 = vrot.lane.b32.xlu0 %v1931, 96
  %v2131 = vpop.permute.xlu0 %2130
  %2132 = vrot.lane.b32.xlu0 %v1932, 96
  %v2133 = vpop.permute.xlu0 %2132
  %2134 = vrot.lane.b32.xlu0 %v1933, 96
  %v2135 = vpop.permute.xlu0 %2134
  %2136 = vrot.lane.b32.xlu0 %v1934, 96
  %v2137 = vpop.permute.xlu0 %2136
  %2138 = vrot.lane.b32.xlu0 %v1935, 96
  %v2139 = vpop.permute.xlu0 %2138
  %2140 = vrot.lane.b32.xlu0 %v1936, 96
  %v2141 = vpop.permute.xlu0 %2140
  %2142 = vrot.lane.b32.xlu0 %v1937, 96
  %v2143 = vpop.permute.xlu0 %2142
  %2144 = vrot.lane.b32.xlu0 %v1938, 96
  %v2145 = vpop.permute.xlu0 %2144
  %2146 = vrot.lane.b32.xlu0 %v1939, 96
  %v2147 = vpop.permute.xlu0 %2146
  %2148 = vrot.lane.b32.xlu0 %v1940, 96
  %v2149 = vpop.permute.xlu0 %2148
  %2150 = vrot.lane.b32.xlu0 %v1941, 96
  %v2151 = vpop.permute.xlu0 %2150
  %2152 = vrot.lane.b32.xlu0 %v1942, 96
  %v2153 = vpop.permute.xlu0 %2152
  %2154 = vrot.lane.b32.xlu0 %v1943, 96
  %v2155 = vpop.permute.xlu0 %2154
  %2156 = vrot.lane.b32.xlu0 %v1944, 96
  %v2157 = vpop.permute.xlu0 %2156
  %2158 = vrot.lane.b32.xlu0 %v1945, 96
  %v2159 = vpop.permute.xlu0 %2158
  %v2161 = vsel %vm69, %v1984, 0
  %v2164 = vsel %vm69, %v1985, 0
  %v2167 = vsel %vm69, %v1986, 0
  %v2170 = vsel %vm69, %v1987, 0
  %v2173 = vsel %vm69, %v1988, 0
  %v2176 = vsel %vm69, %v1989, 0
  %v2179 = vsel %vm69, %v1990, 0
  %v2182 = vsel %vm69, %v1991, 0
  %v2185 = vsel %vm69, %v1992, 0
  %v2188 = vsel %vm69, %v1993, 0
  %v2191 = vsel %vm69, %v1994, 0
  %v2194 = vsel %vm69, %v1995, 0
  %v2197 = vsel %vm69, %v1996, 0
  %v2200 = vsel %vm69, %v1997, 0
  %v2203 = vsel %vm69, %v1998, 0
  %v2206 = vsel %vm69, %v1999, 0
  %v2209 = vsel %vm69, %v2000, 0
  %v2212 = vsel %vm69, %v2001, 0
  %v2215 = vsel %vm69, %v2002, 0
  %v2218 = vsel %vm69, %v2003, 0
  %v2221 = vsel %vm69, %v2004, 0
  %v2224 = vsel %vm69, %v2005, 0
  %v2227 = vsel %vm69, %v2006, 0
  %v2230 = vsel %vm69, %v2007, 0
  %v2233 = vsel %vm69, %v2008, 0
  %v2236 = vsel %vm69, %v2009, 0
  %v2239 = vsel %vm69, %v2010, 0
  %v2242 = vsel %vm69, %v2011, 0
  %v2245 = vsel %vm69, %v2012, 0
  %v2248 = vsel %vm69, %v2013, 0
  %v2251 = vsel %vm69, %v2014, 0
  %v2254 = vsel %vm69, %v2015, 0
  %v2257 = vsel %vm69, %v2016, 0
  %v2260 = vsel %vm69, %v2017, 0
  %v2263 = vsel %vm69, %v2018, 0
  %v2266 = vsel %vm69, %v2019, 0
  %v2269 = vsel %vm69, %v2020, 0
  %v2272 = vsel %vm69, %v2021, 0
  %v2275 = vsel %vm69, %v2022, 0
  %v2278 = vsel %vm69, %v2023, 0
  %v2281 = vsel %vm69, %v2024, 0
  %v2284 = vsel %vm69, %v2025, 0
  %v2287 = vsel %vm69, %v2026, 0
  %v2290 = vsel %vm69, %v2027, 0
  %v2293 = vsel %vm69, %v2028, 0
  %v2296 = vsel %vm69, %v2029, 0
  %v2299 = vsel %vm69, %v2030, 0
  %v2302 = vsel %vm69, %v2031, 0
  %v2305 = vsel %vm69, %v2032, 0
  %v2308 = vsel %vm69, %v2033, 0
  %v2311 = vsel %vm69, %v2034, 0
  %v2314 = vsel %vm69, %v2035, 0
  %v2317 = vsel %vm69, %v2036, 0
  %v2320 = vsel %vm69, %v2037, 0
  %v2323 = vsel %vm69, %v2038, 0
  %v2326 = vsel %vm69, %v2039, 0
  %v2329 = vsel %vm69, %v2040, 0
  %v2332 = vsel %vm69, %v2041, 0
  %v2335 = vsel %vm69, %v2042, 0
  %v2338 = vsel %vm69, %v2043, 0
  %v2341 = vsel %vm69, %v2044, 0
  %v2344 = vsel %vm69, %v2045, 0
  %v2347 = vsel %vm69, %v2046, 0
  %v2350 = vsel %vm69, %v2047, 0
  %v2352 = vsel %vm69, %v2129, 0
  %v2354 = vsel %vm69, %v2131, 0
  %v2356 = vsel %vm69, %v2133, 0
  %v2358 = vsel %vm69, %v2135, 0
  %v2360 = vsel %vm69, %v2137, 0
  %v2362 = vsel %vm69, %v2139, 0
  %v2364 = vsel %vm69, %v2141, 0
  %v2366 = vsel %vm69, %v2143, 0
  %v2368 = vsel %vm69, %v2145, 0
  %v2370 = vsel %vm69, %v2147, 0
  %v2372 = vsel %vm69, %v2149, 0
  %v2374 = vsel %vm69, %v2151, 0
  %v2376 = vsel %vm69, %v2153, 0
  %v2378 = vsel %vm69, %v2155, 0
  %v2380 = vsel %vm69, %v2157, 0
  %v2382 = vsel %vm69, %v2159, 0
  %2384 = vmatprep.subr.mxu0 0.0
  %2385 = vmatpush1.xpose.msra.mxu0 %v2352
  %2386 = vmatprep.subr.mxu0 0.0
  %2387 = vmatpush1.xpose.msra.mxu0 %v2354
  %2388 = vmatprep.subr.mxu0 0.0
  %2389 = vmatpush1.xpose.msra.mxu0 %v2356
  %2390 = vmatprep.subr.mxu0 0.0
  %2391 = vmatpush1.xpose.msra.mxu0 %v2358
  %2392 = vmatprep.subr.mxu0 0.0
  %2393 = vmatpush1.xpose.msra.mxu0 %v2360
  %2394 = vmatprep.subr.mxu0 0.0
  %2395 = vmatpush1.xpose.msra.mxu0 %v2362
  %2396 = vmatprep.subr.mxu0 0.0
  %2397 = vmatpush1.xpose.msra.mxu0 %v2364
  %2398 = vmatprep.subr.mxu0 0.0
  %2399 = vmatpush1.xpose.msra.mxu0 %v2366
  %2400 = vmatprep.subr.mxu0 0.0
  %2401 = vmatpush1.xpose.msra.mxu0 %v2368
  %2402 = vmatprep.subr.mxu0 0.0
  %2403 = vmatpush1.xpose.msra.mxu0 %v2370
  %2404 = vmatprep.subr.mxu0 0.0
  %2405 = vmatpush1.xpose.msra.mxu0 %v2372
  %2406 = vmatprep.subr.mxu0 0.0
  %2407 = vmatpush1.xpose.msra.mxu0 %v2374
  %2408 = vmatprep.subr.mxu0 0.0
  %2409 = vmatpush1.xpose.msra.mxu0 %v2376
  %2410 = vmatprep.subr.mxu0 0.0
  %2411 = vmatpush1.xpose.msra.mxu0 %v2378
  %2412 = vmatprep.subr.mxu0 0.0
  %2413 = vmatpush1.xpose.msra.mxu0 %v2380
  %2414 = vmatprep.subr.mxu0 0.0
  %2415 = vmatpush1.xpose.msra.mxu0 %v2382
  %2416 = vmatprep.subr.mxu0 0.0
  %2417 = vmatpush1.xpose.msra.mxu0 0.0
  %2418 = vmatprep.subr.mxu0 0.0
  %2419 = vmatpush1.xpose.msra.mxu0 0.0
  %2420 = vmatprep.subr.mxu0 0.0
  %2421 = vmatpush1.xpose.msra.mxu0 0.0
  %2422 = vmatprep.subr.mxu0 0.0
  %2423 = vmatpush1.xpose.msra.mxu0 0.0
  %2424 = vmatprep.subr.mxu0 0.0
  %2425 = vmatpush1.xpose.msra.mxu0 0.0
  %2426 = vmatprep.subr.mxu0 0.0
  %2427 = vmatpush1.xpose.msra.mxu0 0.0
  %2428 = vmatprep.subr.mxu0 0.0
  %2429 = vmatpush1.xpose.msra.mxu0 0.0
  %2430 = vmatprep.subr.mxu0 0.0
  %2431 = vmatpush1.xpose.msra.mxu0 0.0
  %2432 = vmatprep.subr.mxu0 0.0
  %2433 = vmatpush1.xpose.msra.mxu0 0.0
  %2434 = vmatprep.subr.mxu0 0.0
  %2435 = vmatpush1.xpose.msra.mxu0 0.0
  %2436 = vmatprep.subr.mxu0 0.0
  %2437 = vmatpush1.xpose.msra.mxu0 0.0
  %2438 = vmatprep.subr.mxu0 0.0
  %2439 = vmatpush1.xpose.msra.mxu0 0.0
  %2440 = vmatprep.subr.mxu0 0.0
  %2441 = vmatpush1.xpose.msra.mxu0 0.0
  %2442 = vmatprep.subr.mxu0 0.0
  %2443 = vmatpush1.xpose.msra.mxu0 0.0
  %2444 = vmatprep.subr.mxu0 0.0
  %2445 = vmatpush1.xpose.msra.mxu0 0.0
  %2446 = vmatprep.subr.mxu0 0.0
  %2447 = vmatpush1.xpose.msra.mxu0 0.0
  %2448 = vmatprep.mubr.f32.mxu0 0.0
  %2449 = vmatmul.mubr.f32.gmra.mrb[0].mxu0 %v2161
  %v2450 = vpop.f32.mrb[0].mxu0
  %v2451 = vadd.f32 %v2048, %v2450
  %v2452 = vpop.f32.mrb[0].mxu0
  %2453 = vmatprep.mubr.f32.mxu0 0.0
  %2454 = vmatmul.mubr.f32.gmra.mrb[0].mxu0 %v2164
  %v2455 = vpop.f32.mrb[0].mxu0
  %v2456 = vadd.f32 %v2049, %v2455
  %v2457 = vpop.f32.mrb[0].mxu0
  %2458 = vmatprep.mubr.f32.mxu0 0.0
  %2459 = vmatmul.mubr.f32.gmra.mrb[0].mxu0 %v2167
  %v2460 = vpop.f32.mrb[0].mxu0
  %v2461 = vadd.f32 %v2050, %v2460
  %v2462 = vpop.f32.mrb[0].mxu0
  %2463 = vmatprep.mubr.f32.mxu0 0.0
  %2464 = vmatmul.mubr.f32.gmra.mrb[0].mxu0 %v2170
  %v2465 = vpop.f32.mrb[0].mxu0
  %v2466 = vadd.f32 %v2051, %v2465
  %v2467 = vpop.f32.mrb[0].mxu0
  %2468 = vmatprep.mubr.f32.mxu0 0.0
  %2469 = vmatmul.mubr.f32.gmra.mrb[0].mxu0 %v2173
  %v2470 = vpop.f32.mrb[0].mxu0
  %v2471 = vadd.f32 %v2052, %v2470
  %v2472 = vpop.f32.mrb[0].mxu0
  %2473 = vmatprep.mubr.f32.mxu0 0.0
  %2474 = vmatmul.mubr.f32.gmra.mrb[0].mxu0 %v2176
  %v2475 = vpop.f32.mrb[0].mxu0
  %v2476 = vadd.f32 %v2053, %v2475
  %v2477 = vpop.f32.mrb[0].mxu0
  %2478 = vmatprep.mubr.f32.mxu0 0.0
  %2479 = vmatmul.mubr.f32.gmra.mrb[0].mxu0 %v2179
  %v2480 = vpop.f32.mrb[0].mxu0
  %v2481 = vadd.f32 %v2054, %v2480
  %v2482 = vpop.f32.mrb[0].mxu0
  %2483 = vmatprep.mubr.f32.mxu0 0.0
  %2484 = vmatmul.mubr.f32.gmra.mrb[0].mxu0 %v2182
  %v2485 = vpop.f32.mrb[0].mxu0
  %v2486 = vadd.f32 %v2055, %v2485
  %v2487 = vpop.f32.mrb[0].mxu0
  %2488 = vmatprep.mubr.f32.mxu0 0.0
  %2489 = vmatmul.mubr.f32.gmra.mrb[0].mxu0 %v2185
  %v2490 = vpop.f32.mrb[0].mxu0
  %v2491 = vadd.f32 %v2056, %v2490
  %v2492 = vpop.f32.mrb[0].mxu0
  %2493 = vmatprep.mubr.f32.mxu0 0.0
  %2494 = vmatmul.mubr.f32.gmra.mrb[0].mxu0 %v2188
  %v2495 = vpop.f32.mrb[0].mxu0
  %v2496 = vadd.f32 %v2057, %v2495
  %v2497 = vpop.f32.mrb[0].mxu0
  %2498 = vmatprep.mubr.f32.mxu0 0.0
  %2499 = vmatmul.mubr.f32.gmra.mrb[0].mxu0 %v2191
  %v2500 = vpop.f32.mrb[0].mxu0
  %v2501 = vadd.f32 %v2058, %v2500
  %v2502 = vpop.f32.mrb[0].mxu0
  %2503 = vmatprep.mubr.f32.mxu0 0.0
  %2504 = vmatmul.mubr.f32.gmra.mrb[0].mxu0 %v2194
  %v2505 = vpop.f32.mrb[0].mxu0
  %v2506 = vadd.f32 %v2059, %v2505
  %v2507 = vpop.f32.mrb[0].mxu0
  %2508 = vmatprep.mubr.f32.mxu0 0.0
  %2509 = vmatmul.mubr.f32.gmra.mrb[0].mxu0 %v2197
  %v2510 = vpop.f32.mrb[0].mxu0
  %v2511 = vadd.f32 %v2060, %v2510
  %v2512 = vpop.f32.mrb[0].mxu0
  %2513 = vmatprep.mubr.f32.mxu0 0.0
  %2514 = vmatmul.mubr.f32.gmra.mrb[0].mxu0 %v2200
  %v2515 = vpop.f32.mrb[0].mxu0
  %v2516 = vadd.f32 %v2061, %v2515
  %v2517 = vpop.f32.mrb[0].mxu0
  %2518 = vmatprep.mubr.f32.mxu0 0.0
  %2519 = vmatmul.mubr.f32.gmra.mrb[0].mxu0 %v2203
  %v2520 = vpop.f32.mrb[0].mxu0
  %v2521 = vadd.f32 %v2062, %v2520
  %v2522 = vpop.f32.mrb[0].mxu0
  %2523 = vmatprep.mubr.f32.mxu0 0.0
  %2524 = vmatmul.mubr.f32.gmra.mrb[0].mxu0 %v2206
  %v2525 = vpop.f32.mrb[0].mxu0
  %v2526 = vadd.f32 %v2063, %v2525
  %v2527 = vpop.f32.mrb[0].mxu0
  %2528 = vmatprep.mubr.f32.mxu0 0.0
  %2529 = vmatmul.mubr.f32.gmra.mrb[0].mxu0 %v2209
  %v2530 = vpop.f32.mrb[0].mxu0
  %v2531 = vadd.f32 %v2064, %v2530
  %v2532 = vpop.f32.mrb[0].mxu0
  %2533 = vmatprep.mubr.f32.mxu0 0.0
  %2534 = vmatmul.mubr.f32.gmra.mrb[0].mxu0 %v2212
  %v2535 = vpop.f32.mrb[0].mxu0
  %v2536 = vadd.f32 %v2065, %v2535
  %v2537 = vpop.f32.mrb[0].mxu0
  %2538 = vmatprep.mubr.f32.mxu0 0.0
  %2539 = vmatmul.mubr.f32.gmra.mrb[0].mxu0 %v2215
  %v2540 = vpop.f32.mrb[0].mxu0
  %v2541 = vadd.f32 %v2066, %v2540
  %v2542 = vpop.f32.mrb[0].mxu0
  %2543 = vmatprep.mubr.f32.mxu0 0.0
  %2544 = vmatmul.mubr.f32.gmra.mrb[0].mxu0 %v2218
  %v2545 = vpop.f32.mrb[0].mxu0
  %v2546 = vadd.f32 %v2067, %v2545
  %v2547 = vpop.f32.mrb[0].mxu0
  %2548 = vmatprep.mubr.f32.mxu0 0.0
  %2549 = vmatmul.mubr.f32.gmra.mrb[0].mxu0 %v2221
  %v2550 = vpop.f32.mrb[0].mxu0
  %v2551 = vadd.f32 %v2068, %v2550
  %v2552 = vpop.f32.mrb[0].mxu0
  %2553 = vmatprep.mubr.f32.mxu0 0.0
  %2554 = vmatmul.mubr.f32.gmra.mrb[0].mxu0 %v2224
  %v2555 = vpop.f32.mrb[0].mxu0
  %v2556 = vadd.f32 %v2069, %v2555
  %v2557 = vpop.f32.mrb[0].mxu0
  %2558 = vmatprep.mubr.f32.mxu0 0.0
  %2559 = vmatmul.mubr.f32.gmra.mrb[0].mxu0 %v2227
  %v2560 = vpop.f32.mrb[0].mxu0
  %v2561 = vadd.f32 %v2070, %v2560
  %v2562 = vpop.f32.mrb[0].mxu0
  %2563 = vmatprep.mubr.f32.mxu0 0.0
  %2564 = vmatmul.mubr.f32.gmra.mrb[0].mxu0 %v2230
  %v2565 = vpop.f32.mrb[0].mxu0
  %v2566 = vadd.f32 %v2071, %v2565
  %v2567 = vpop.f32.mrb[0].mxu0
  %2568 = vmatprep.mubr.f32.mxu0 0.0
  %2569 = vmatmul.mubr.f32.gmra.mrb[0].mxu0 %v2233
  %v2570 = vpop.f32.mrb[0].mxu0
  %v2571 = vadd.f32 %v2072, %v2570
  %v2572 = vpop.f32.mrb[0].mxu0
  %2573 = vmatprep.mubr.f32.mxu0 0.0
  %2574 = vmatmul.mubr.f32.gmra.mrb[0].mxu0 %v2236
  %v2575 = vpop.f32.mrb[0].mxu0
  %v2576 = vadd.f32 %v2073, %v2575
  %v2577 = vpop.f32.mrb[0].mxu0
  %2578 = vmatprep.mubr.f32.mxu0 0.0
  %2579 = vmatmul.mubr.f32.gmra.mrb[0].mxu0 %v2239
  %v2580 = vpop.f32.mrb[0].mxu0
  %v2581 = vadd.f32 %v2074, %v2580
  %v2582 = vpop.f32.mrb[0].mxu0
  %2583 = vmatprep.mubr.f32.mxu0 0.0
  %2584 = vmatmul.mubr.f32.gmra.mrb[0].mxu0 %v2242
  %v2585 = vpop.f32.mrb[0].mxu0
  %v2586 = vadd.f32 %v2075, %v2585
  %v2587 = vpop.f32.mrb[0].mxu0
  %2588 = vmatprep.mubr.f32.mxu0 0.0
  %2589 = vmatmul.mubr.f32.gmra.mrb[0].mxu0 %v2245
  %v2590 = vpop.f32.mrb[0].mxu0
  %v2591 = vadd.f32 %v2076, %v2590
  %v2592 = vpop.f32.mrb[0].mxu0
  %2593 = vmatprep.mubr.f32.mxu0 0.0
  %2594 = vmatmul.mubr.f32.gmra.mrb[0].mxu0 %v2248
  %v2595 = vpop.f32.mrb[0].mxu0
  %v2596 = vadd.f32 %v2077, %v2595
  %v2597 = vpop.f32.mrb[0].mxu0
  %2598 = vmatprep.mubr.f32.mxu0 0.0
  %2599 = vmatmul.mubr.f32.gmra.mrb[0].mxu0 %v2251
  %v2600 = vpop.f32.mrb[0].mxu0
  %v2601 = vadd.f32 %v2078, %v2600
  %v2602 = vpop.f32.mrb[0].mxu0
  %2603 = vmatprep.mubr.f32.mxu0 0.0
  %2604 = vmatmul.mubr.f32.gmra.mrb[0].mxu0 %v2254
  %v2605 = vpop.f32.mrb[0].mxu0
  %v2606 = vadd.f32 %v2079, %v2605
  %v2607 = vpop.f32.mrb[0].mxu0
  %2608 = vmatprep.mubr.f32.mxu0 0.0
  %2609 = vmatmul.mubr.f32.gmra.mrb[0].mxu0 %v2257
  %v2610 = vpop.f32.mrb[0].mxu0
  %v2611 = vadd.f32 %v2080, %v2610
  %v2612 = vpop.f32.mrb[0].mxu0
  %2613 = vmatprep.mubr.f32.mxu0 0.0
  %2614 = vmatmul.mubr.f32.gmra.mrb[0].mxu0 %v2260
  %v2615 = vpop.f32.mrb[0].mxu0
  %v2616 = vadd.f32 %v2081, %v2615
  %v2617 = vpop.f32.mrb[0].mxu0
  %2618 = vmatprep.mubr.f32.mxu0 0.0
  %2619 = vmatmul.mubr.f32.gmra.mrb[0].mxu0 %v2263
  %v2620 = vpop.f32.mrb[0].mxu0
  %v2621 = vadd.f32 %v2082, %v2620
  %v2622 = vpop.f32.mrb[0].mxu0
  %2623 = vmatprep.mubr.f32.mxu0 0.0
  %2624 = vmatmul.mubr.f32.gmra.mrb[0].mxu0 %v2266
  %v2625 = vpop.f32.mrb[0].mxu0
  %v2626 = vadd.f32 %v2083, %v2625
  %v2627 = vpop.f32.mrb[0].mxu0
  %2628 = vmatprep.mubr.f32.mxu0 0.0
  %2629 = vmatmul.mubr.f32.gmra.mrb[0].mxu0 %v2269
  %v2630 = vpop.f32.mrb[0].mxu0
  %v2631 = vadd.f32 %v2084, %v2630
  %v2632 = vpop.f32.mrb[0].mxu0
  %2633 = vmatprep.mubr.f32.mxu0 0.0
  %2634 = vmatmul.mubr.f32.gmra.mrb[0].mxu0 %v2272
  %v2635 = vpop.f32.mrb[0].mxu0
  %v2636 = vadd.f32 %v2085, %v2635
  %v2637 = vpop.f32.mrb[0].mxu0
  %2638 = vmatprep.mubr.f32.mxu0 0.0
  %2639 = vmatmul.mubr.f32.gmra.mrb[0].mxu0 %v2275
  %v2640 = vpop.f32.mrb[0].mxu0
  %v2641 = vadd.f32 %v2086, %v2640
  %v2642 = vpop.f32.mrb[0].mxu0
  %2643 = vmatprep.mubr.f32.mxu0 0.0
  %2644 = vmatmul.mubr.f32.gmra.mrb[0].mxu0 %v2278
  %v2645 = vpop.f32.mrb[0].mxu0
  %v2646 = vadd.f32 %v2087, %v2645
  %v2647 = vpop.f32.mrb[0].mxu0
  %2648 = vmatprep.mubr.f32.mxu0 0.0
  %2649 = vmatmul.mubr.f32.gmra.mrb[0].mxu0 %v2281
  %v2650 = vpop.f32.mrb[0].mxu0
  %v2651 = vadd.f32 %v2088, %v2650
  %v2652 = vpop.f32.mrb[0].mxu0
  %2653 = vmatprep.mubr.f32.mxu0 0.0
  %2654 = vmatmul.mubr.f32.gmra.mrb[0].mxu0 %v2284
  %v2655 = vpop.f32.mrb[0].mxu0
  %v2656 = vadd.f32 %v2089, %v2655
  %v2657 = vpop.f32.mrb[0].mxu0
  %2658 = vmatprep.mubr.f32.mxu0 0.0
  %2659 = vmatmul.mubr.f32.gmra.mrb[0].mxu0 %v2287
  %v2660 = vpop.f32.mrb[0].mxu0
  %v2661 = vadd.f32 %v2090, %v2660
  %v2662 = vpop.f32.mrb[0].mxu0
  %2663 = vmatprep.mubr.f32.mxu0 0.0
  %2664 = vmatmul.mubr.f32.gmra.mrb[0].mxu0 %v2290
  %v2665 = vpop.f32.mrb[0].mxu0
  %v2666 = vadd.f32 %v2091, %v2665
  %v2667 = vpop.f32.mrb[0].mxu0
  %2668 = vmatprep.mubr.f32.mxu0 0.0
  %2669 = vmatmul.mubr.f32.gmra.mrb[0].mxu0 %v2293
  %v2670 = vpop.f32.mrb[0].mxu0
  %v2671 = vadd.f32 %v2092, %v2670
  %v2672 = vpop.f32.mrb[0].mxu0
  %2673 = vmatprep.mubr.f32.mxu0 0.0
  %2674 = vmatmul.mubr.f32.gmra.mrb[0].mxu0 %v2296
  %v2675 = vpop.f32.mrb[0].mxu0
  %v2676 = vadd.f32 %v2093, %v2675
  %v2677 = vpop.f32.mrb[0].mxu0
  %2678 = vmatprep.mubr.f32.mxu0 0.0
  %2679 = vmatmul.mubr.f32.gmra.mrb[0].mxu0 %v2299
  %v2680 = vpop.f32.mrb[0].mxu0
  %v2681 = vadd.f32 %v2094, %v2680
  %v2682 = vpop.f32.mrb[0].mxu0
  %2683 = vmatprep.mubr.f32.mxu0 0.0
  %2684 = vmatmul.mubr.f32.gmra.mrb[0].mxu0 %v2302
  %v2685 = vpop.f32.mrb[0].mxu0
  %v2686 = vadd.f32 %v2095, %v2685
  %v2687 = vpop.f32.mrb[0].mxu0
  %2688 = vmatprep.mubr.f32.mxu0 0.0
  %2689 = vmatmul.mubr.f32.gmra.mrb[0].mxu0 %v2305
  %v2690 = vpop.f32.mrb[0].mxu0
  %v2691 = vadd.f32 %v2096, %v2690
  %v2692 = vpop.f32.mrb[0].mxu0
  %2693 = vmatprep.mubr.f32.mxu0 0.0
  %2694 = vmatmul.mubr.f32.gmra.mrb[0].mxu0 %v2308
  %v2695 = vpop.f32.mrb[0].mxu0
  %v2696 = vadd.f32 %v2097, %v2695
  %v2697 = vpop.f32.mrb[0].mxu0
  %2698 = vmatprep.mubr.f32.mxu0 0.0
  %2699 = vmatmul.mubr.f32.gmra.mrb[0].mxu0 %v2311
  %v2700 = vpop.f32.mrb[0].mxu0
  %v2701 = vadd.f32 %v2098, %v2700
  %v2702 = vpop.f32.mrb[0].mxu0
  %2703 = vmatprep.mubr.f32.mxu0 0.0
  %2704 = vmatmul.mubr.f32.gmra.mrb[0].mxu0 %v2314
  %v2705 = vpop.f32.mrb[0].mxu0
  %v2706 = vadd.f32 %v2099, %v2705
  %v2707 = vpop.f32.mrb[0].mxu0
  %2708 = vmatprep.mubr.f32.mxu0 0.0
  %2709 = vmatmul.mubr.f32.gmra.mrb[0].mxu0 %v2317
  %v2710 = vpop.f32.mrb[0].mxu0
  %v2711 = vadd.f32 %v2100, %v2710
  %v2712 = vpop.f32.mrb[0].mxu0
  %2713 = vmatprep.mubr.f32.mxu0 0.0
  %2714 = vmatmul.mubr.f32.gmra.mrb[0].mxu0 %v2320
  %v2715 = vpop.f32.mrb[0].mxu0
  %v2716 = vadd.f32 %v2101, %v2715
  %v2717 = vpop.f32.mrb[0].mxu0
  %2718 = vmatprep.mubr.f32.mxu0 0.0
  %2719 = vmatmul.mubr.f32.gmra.mrb[0].mxu0 %v2323
  %v2720 = vpop.f32.mrb[0].mxu0
  %v2721 = vadd.f32 %v2102, %v2720
  %v2722 = vpop.f32.mrb[0].mxu0
  %2723 = vmatprep.mubr.f32.mxu0 0.0
  %2724 = vmatmul.mubr.f32.gmra.mrb[0].mxu0 %v2326
  %v2725 = vpop.f32.mrb[0].mxu0
  %v2726 = vadd.f32 %v2103, %v2725
  %v2727 = vpop.f32.mrb[0].mxu0
  %2728 = vmatprep.mubr.f32.mxu0 0.0
  %2729 = vmatmul.mubr.f32.gmra.mrb[0].mxu0 %v2329
  %v2730 = vpop.f32.mrb[0].mxu0
  %v2731 = vadd.f32 %v2104, %v2730
  %v2732 = vpop.f32.mrb[0].mxu0
  %2733 = vmatprep.mubr.f32.mxu0 0.0
  %2734 = vmatmul.mubr.f32.gmra.mrb[0].mxu0 %v2332
  %v2735 = vpop.f32.mrb[0].mxu0
  %v2736 = vadd.f32 %v2105, %v2735
  %v2737 = vpop.f32.mrb[0].mxu0
  %2738 = vmatprep.mubr.f32.mxu0 0.0
  %2739 = vmatmul.mubr.f32.gmra.mrb[0].mxu0 %v2335
  %v2740 = vpop.f32.mrb[0].mxu0
  %v2741 = vadd.f32 %v2106, %v2740
  %v2742 = vpop.f32.mrb[0].mxu0
  %2743 = vmatprep.mubr.f32.mxu0 0.0
  %2744 = vmatmul.mubr.f32.gmra.mrb[0].mxu0 %v2338
  %v2745 = vpop.f32.mrb[0].mxu0
  %v2746 = vadd.f32 %v2107, %v2745
  %v2747 = vpop.f32.mrb[0].mxu0
  %2748 = vmatprep.mubr.f32.mxu0 0.0
  %2749 = vmatmul.mubr.f32.gmra.mrb[0].mxu0 %v2341
  %v2750 = vpop.f32.mrb[0].mxu0
  %v2751 = vadd.f32 %v2108, %v2750
  %v2752 = vpop.f32.mrb[0].mxu0
  %2753 = vmatprep.mubr.f32.mxu0 0.0
  %2754 = vmatmul.mubr.f32.gmra.mrb[0].mxu0 %v2344
  %v2755 = vpop.f32.mrb[0].mxu0
  %v2756 = vadd.f32 %v2109, %v2755
  %v2757 = vpop.f32.mrb[0].mxu0
  %2758 = vmatprep.mubr.f32.mxu0 0.0
  %2759 = vmatmul.mubr.f32.gmra.mrb[0].mxu0 %v2347
  %v2760 = vpop.f32.mrb[0].mxu0
  %v2761 = vadd.f32 %v2110, %v2760
  %v2762 = vpop.f32.mrb[0].mxu0
  %2763 = vmatprep.mubr.f32.mxu0 0.0
  %2764 = vmatmul.mubr.f32.gmra.mrb[0].mxu0 %v2350
  %v2765 = vpop.f32.mrb[0].mxu0
  %v2766 = vadd.f32 %v2111, %v2765
  %v2767 = vpop.f32.mrb[0].mxu0
  %2768 = vdwg.mxu0
  %2769 = vmax.xlane.f32.xlu0 %v2451
  %v2770 = vpop.xlane.xlu0 %2769
  %2771 = vmax.xlane.f32.xlu0 %v2456
  %v2772 = vpop.xlane.xlu0 %2771
  %2773 = vmax.xlane.f32.xlu0 %v2461
  %v2774 = vpop.xlane.xlu0 %2773
  %2775 = vmax.xlane.f32.xlu0 %v2466
  %v2776 = vpop.xlane.xlu0 %2775
  %2777 = vmax.xlane.f32.xlu0 %v2471
  %v2778 = vpop.xlane.xlu0 %2777
  %2779 = vmax.xlane.f32.xlu0 %v2476
  %v2780 = vpop.xlane.xlu0 %2779
  %2781 = vmax.xlane.f32.xlu0 %v2481
  %v2782 = vpop.xlane.xlu0 %2781
  %2783 = vmax.xlane.f32.xlu0 %v2486
  %v2784 = vpop.xlane.xlu0 %2783
  %2785 = vmax.xlane.f32.xlu0 %v2491
  %v2786 = vpop.xlane.xlu0 %2785
  %2787 = vmax.xlane.f32.xlu0 %v2496
  %v2788 = vpop.xlane.xlu0 %2787
  %2789 = vmax.xlane.f32.xlu0 %v2501
  %v2790 = vpop.xlane.xlu0 %2789
  %2791 = vmax.xlane.f32.xlu0 %v2506
  %v2792 = vpop.xlane.xlu0 %2791
  %2793 = vmax.xlane.f32.xlu0 %v2511
  %v2794 = vpop.xlane.xlu0 %2793
  %2795 = vmax.xlane.f32.xlu0 %v2516
  %v2796 = vpop.xlane.xlu0 %2795
  %2797 = vmax.xlane.f32.xlu0 %v2521
  %v2798 = vpop.xlane.xlu0 %2797
  %2799 = vmax.xlane.f32.xlu0 %v2526
  %v2800 = vpop.xlane.xlu0 %2799
  %2801 = vmax.xlane.f32.xlu0 %v2531
  %v2802 = vpop.xlane.xlu0 %2801
  %2803 = vmax.xlane.f32.xlu0 %v2536
  %v2804 = vpop.xlane.xlu0 %2803
  %2805 = vmax.xlane.f32.xlu0 %v2541
  %v2806 = vpop.xlane.xlu0 %2805
  %2807 = vmax.xlane.f32.xlu0 %v2546
  %v2808 = vpop.xlane.xlu0 %2807
  %2809 = vmax.xlane.f32.xlu0 %v2551
  %v2810 = vpop.xlane.xlu0 %2809
  %2811 = vmax.xlane.f32.xlu0 %v2556
  %v2812 = vpop.xlane.xlu0 %2811
  %2813 = vmax.xlane.f32.xlu0 %v2561
  %v2814 = vpop.xlane.xlu0 %2813
  %2815 = vmax.xlane.f32.xlu0 %v2566
  %v2816 = vpop.xlane.xlu0 %2815
  %2817 = vmax.xlane.f32.xlu0 %v2571
  %v2818 = vpop.xlane.xlu0 %2817
  %2819 = vmax.xlane.f32.xlu0 %v2576
  %v2820 = vpop.xlane.xlu0 %2819
  %2821 = vmax.xlane.f32.xlu0 %v2581
  %v2822 = vpop.xlane.xlu0 %2821
  %2823 = vmax.xlane.f32.xlu0 %v2586
  %v2824 = vpop.xlane.xlu0 %2823
  %2825 = vmax.xlane.f32.xlu0 %v2591
  %v2826 = vpop.xlane.xlu0 %2825
  %2827 = vmax.xlane.f32.xlu0 %v2596
  %v2828 = vpop.xlane.xlu0 %2827
  %2829 = vmax.xlane.f32.xlu0 %v2601
  %v2830 = vpop.xlane.xlu0 %2829
  %2831 = vmax.xlane.f32.xlu0 %v2606
  %v2832 = vpop.xlane.xlu0 %2831
  %2833 = vmax.xlane.f32.xlu0 %v2611
  %v2834 = vpop.xlane.xlu0 %2833
  %2835 = vmax.xlane.f32.xlu0 %v2616
  %v2836 = vpop.xlane.xlu0 %2835
  %2837 = vmax.xlane.f32.xlu0 %v2621
  %v2838 = vpop.xlane.xlu0 %2837
  %2839 = vmax.xlane.f32.xlu0 %v2626
  %v2840 = vpop.xlane.xlu0 %2839
  %2841 = vmax.xlane.f32.xlu0 %v2631
  %v2842 = vpop.xlane.xlu0 %2841
  %2843 = vmax.xlane.f32.xlu0 %v2636
  %v2844 = vpop.xlane.xlu0 %2843
  %2845 = vmax.xlane.f32.xlu0 %v2641
  %v2846 = vpop.xlane.xlu0 %2845
  %2847 = vmax.xlane.f32.xlu0 %v2646
  %v2848 = vpop.xlane.xlu0 %2847
  %2849 = vmax.xlane.f32.xlu0 %v2651
  %v2850 = vpop.xlane.xlu0 %2849
  %2851 = vmax.xlane.f32.xlu0 %v2656
  %v2852 = vpop.xlane.xlu0 %2851
  %2853 = vmax.xlane.f32.xlu0 %v2661
  %v2854 = vpop.xlane.xlu0 %2853
  %2855 = vmax.xlane.f32.xlu0 %v2666
  %v2856 = vpop.xlane.xlu0 %2855
  %2857 = vmax.xlane.f32.xlu0 %v2671
  %v2858 = vpop.xlane.xlu0 %2857
  %2859 = vmax.xlane.f32.xlu0 %v2676
  %v2860 = vpop.xlane.xlu0 %2859
  %2861 = vmax.xlane.f32.xlu0 %v2681
  %v2862 = vpop.xlane.xlu0 %2861
  %2863 = vmax.xlane.f32.xlu0 %v2686
  %v2864 = vpop.xlane.xlu0 %2863
  %2865 = vmax.xlane.f32.xlu0 %v2691
  %v2866 = vpop.xlane.xlu0 %2865
  %2867 = vmax.xlane.f32.xlu0 %v2696
  %v2868 = vpop.xlane.xlu0 %2867
  %2869 = vmax.xlane.f32.xlu0 %v2701
  %v2870 = vpop.xlane.xlu0 %2869
  %2871 = vmax.xlane.f32.xlu0 %v2706
  %v2872 = vpop.xlane.xlu0 %2871
  %2873 = vmax.xlane.f32.xlu0 %v2711
  %v2874 = vpop.xlane.xlu0 %2873
  %2875 = vmax.xlane.f32.xlu0 %v2716
  %v2876 = vpop.xlane.xlu0 %2875
  %2877 = vmax.xlane.f32.xlu0 %v2721
  %v2878 = vpop.xlane.xlu0 %2877
  %2879 = vmax.xlane.f32.xlu0 %v2726
  %v2880 = vpop.xlane.xlu0 %2879
  %2881 = vmax.xlane.f32.xlu0 %v2731
  %v2882 = vpop.xlane.xlu0 %2881
  %2883 = vmax.xlane.f32.xlu0 %v2736
  %v2884 = vpop.xlane.xlu0 %2883
  %2885 = vmax.xlane.f32.xlu0 %v2741
  %v2886 = vpop.xlane.xlu0 %2885
  %2887 = vmax.xlane.f32.xlu0 %v2746
  %v2888 = vpop.xlane.xlu0 %2887
  %2889 = vmax.xlane.f32.xlu0 %v2751
  %v2890 = vpop.xlane.xlu0 %2889
  %2891 = vmax.xlane.f32.xlu0 %v2756
  %v2892 = vpop.xlane.xlu0 %2891
  %2893 = vmax.xlane.f32.xlu0 %v2761
  %v2894 = vpop.xlane.xlu0 %2893
  %2895 = vmax.xlane.f32.xlu0 %v2766
  %v2896 = vpop.xlane.xlu0 %2895
  %v2897 = vsub.f32 %v2451, %v2770
  %v2898 = vsub.f32 %v2456, %v2772
  %v2899 = vsub.f32 %v2461, %v2774
  %v2900 = vsub.f32 %v2466, %v2776
  %v2901 = vsub.f32 %v2471, %v2778
  %v2902 = vsub.f32 %v2476, %v2780
  %v2903 = vsub.f32 %v2481, %v2782
  %v2904 = vsub.f32 %v2486, %v2784
  %v2905 = vsub.f32 %v2491, %v2786
  %v2906 = vsub.f32 %v2496, %v2788
  %v2907 = vsub.f32 %v2501, %v2790
  %v2908 = vsub.f32 %v2506, %v2792
  %v2909 = vsub.f32 %v2511, %v2794
  %v2910 = vsub.f32 %v2516, %v2796
  %v2911 = vsub.f32 %v2521, %v2798
  %v2912 = vsub.f32 %v2526, %v2800
  %v2913 = vsub.f32 %v2531, %v2802
  %v2914 = vsub.f32 %v2536, %v2804
  %v2915 = vsub.f32 %v2541, %v2806
  %v2916 = vsub.f32 %v2546, %v2808
  %v2917 = vsub.f32 %v2551, %v2810
  %v2918 = vsub.f32 %v2556, %v2812
  %v2919 = vsub.f32 %v2561, %v2814
  %v2920 = vsub.f32 %v2566, %v2816
  %v2921 = vsub.f32 %v2571, %v2818
  %v2922 = vsub.f32 %v2576, %v2820
  %v2923 = vsub.f32 %v2581, %v2822
  %v2924 = vsub.f32 %v2586, %v2824
  %v2925 = vsub.f32 %v2591, %v2826
  %v2926 = vsub.f32 %v2596, %v2828
  %v2927 = vsub.f32 %v2601, %v2830
  %v2928 = vsub.f32 %v2606, %v2832
  %v2929 = vsub.f32 %v2611, %v2834
  %v2930 = vsub.f32 %v2616, %v2836
  %v2931 = vsub.f32 %v2621, %v2838
  %v2932 = vsub.f32 %v2626, %v2840
  %v2933 = vsub.f32 %v2631, %v2842
  %v2934 = vsub.f32 %v2636, %v2844
  %v2935 = vsub.f32 %v2641, %v2846
  %v2936 = vsub.f32 %v2646, %v2848
  %v2937 = vsub.f32 %v2651, %v2850
  %v2938 = vsub.f32 %v2656, %v2852
  %v2939 = vsub.f32 %v2661, %v2854
  %v2940 = vsub.f32 %v2666, %v2856
  %v2941 = vsub.f32 %v2671, %v2858
  %v2942 = vsub.f32 %v2676, %v2860
  %v2943 = vsub.f32 %v2681, %v2862
  %v2944 = vsub.f32 %v2686, %v2864
  %v2945 = vsub.f32 %v2691, %v2866
  %v2946 = vsub.f32 %v2696, %v2868
  %v2947 = vsub.f32 %v2701, %v2870
  %v2948 = vsub.f32 %v2706, %v2872
  %v2949 = vsub.f32 %v2711, %v2874
  %v2950 = vsub.f32 %v2716, %v2876
  %v2951 = vsub.f32 %v2721, %v2878
  %v2952 = vsub.f32 %v2726, %v2880
  %v2953 = vsub.f32 %v2731, %v2882
  %v2954 = vsub.f32 %v2736, %v2884
  %v2955 = vsub.f32 %v2741, %v2886
  %v2956 = vsub.f32 %v2746, %v2888
  %v2957 = vsub.f32 %v2751, %v2890
  %v2958 = vsub.f32 %v2756, %v2892
  %v2959 = vsub.f32 %v2761, %v2894
  %v2960 = vsub.f32 %v2766, %v2896
  %v2961 = vmul.f32 %v2897, 1.442695
  %v2962 = vpow.pop %v2961
  %v2963 = vmul.f32 %v2898, 1.442695
  %v2964 = vpow.pop %v2963
  %v2965 = vmul.f32 %v2899, 1.442695
  %v2966 = vpow.pop %v2965
  %v2967 = vmul.f32 %v2900, 1.442695
  %v2968 = vpow.pop %v2967
  %v2969 = vmul.f32 %v2901, 1.442695
  %v2970 = vpow.pop %v2969
  %v2971 = vmul.f32 %v2902, 1.442695
  %v2972 = vpow.pop %v2971
  %v2973 = vmul.f32 %v2903, 1.442695
  %v2974 = vpow.pop %v2973
  %v2975 = vmul.f32 %v2904, 1.442695
  %v2976 = vpow.pop %v2975
  %v2977 = vmul.f32 %v2905, 1.442695
  %v2978 = vpow.pop %v2977
  %v2979 = vmul.f32 %v2906, 1.442695
  %v2980 = vpow.pop %v2979
  %v2981 = vmul.f32 %v2907, 1.442695
  %v2982 = vpow.pop %v2981
  %v2983 = vmul.f32 %v2908, 1.442695
  %v2984 = vpow.pop %v2983
  %v2985 = vmul.f32 %v2909, 1.442695
  %v2986 = vpow.pop %v2985
  %v2987 = vmul.f32 %v2910, 1.442695
  %v2988 = vpow.pop %v2987
  %v2989 = vmul.f32 %v2911, 1.442695
  %v2990 = vpow.pop %v2989
  %v2991 = vmul.f32 %v2912, 1.442695
  %v2992 = vpow.pop %v2991
  %v2993 = vmul.f32 %v2913, 1.442695
  %v2994 = vpow.pop %v2993
  %v2995 = vmul.f32 %v2914, 1.442695
  %v2996 = vpow.pop %v2995
  %v2997 = vmul.f32 %v2915, 1.442695
  %v2998 = vpow.pop %v2997
  %v2999 = vmul.f32 %v2916, 1.442695
  %v3000 = vpow.pop %v2999
  %v3001 = vmul.f32 %v2917, 1.442695
  %v3002 = vpow.pop %v3001
  %v3003 = vmul.f32 %v2918, 1.442695
  %v3004 = vpow.pop %v3003
  %v3005 = vmul.f32 %v2919, 1.442695
  %v3006 = vpow.pop %v3005
  %v3007 = vmul.f32 %v2920, 1.442695
  %v3008 = vpow.pop %v3007
  %v3009 = vmul.f32 %v2921, 1.442695
  %v3010 = vpow.pop %v3009
  %v3011 = vmul.f32 %v2922, 1.442695
  %v3012 = vpow.pop %v3011
  %v3013 = vmul.f32 %v2923, 1.442695
  %v3014 = vpow.pop %v3013
  %v3015 = vmul.f32 %v2924, 1.442695
  %v3016 = vpow.pop %v3015
  %v3017 = vmul.f32 %v2925, 1.442695
  %v3018 = vpow.pop %v3017
  %v3019 = vmul.f32 %v2926, 1.442695
  %v3020 = vpow.pop %v3019
  %v3021 = vmul.f32 %v2927, 1.442695
  %v3022 = vpow.pop %v3021
  %v3023 = vmul.f32 %v2928, 1.442695
  %v3024 = vpow.pop %v3023
  %v3025 = vmul.f32 %v2929, 1.442695
  %v3026 = vpow.pop %v3025
  %v3027 = vmul.f32 %v2930, 1.442695
  %v3028 = vpow.pop %v3027
  %v3029 = vmul.f32 %v2931, 1.442695
  %v3030 = vpow.pop %v3029
  %v3031 = vmul.f32 %v2932, 1.442695
  %v3032 = vpow.pop %v3031
  %v3033 = vmul.f32 %v2933, 1.442695
  %v3034 = vpow.pop %v3033
  %v3035 = vmul.f32 %v2934, 1.442695
  %v3036 = vpow.pop %v3035
  %v3037 = vmul.f32 %v2935, 1.442695
  %v3038 = vpow.pop %v3037
  %v3039 = vmul.f32 %v2936, 1.442695
  %v3040 = vpow.pop %v3039
  %v3041 = vmul.f32 %v2937, 1.442695
  %v3042 = vpow.pop %v3041
  %v3043 = vmul.f32 %v2938, 1.442695
  %v3044 = vpow.pop %v3043
  %v3045 = vmul.f32 %v2939, 1.442695
  %v3046 = vpow.pop %v3045
  %v3047 = vmul.f32 %v2940, 1.442695
  %v3048 = vpow.pop %v3047
  %v3049 = vmul.f32 %v2941, 1.442695
  %v3050 = vpow.pop %v3049
  %v3051 = vmul.f32 %v2942, 1.442695
  %v3052 = vpow.pop %v3051
  %v3053 = vmul.f32 %v2943, 1.442695
  %v3054 = vpow.pop %v3053
  %v3055 = vmul.f32 %v2944, 1.442695
  %v3056 = vpow.pop %v3055
  %v3057 = vmul.f32 %v2945, 1.442695
  %v3058 = vpow.pop %v3057
  %v3059 = vmul.f32 %v2946, 1.442695
  %v3060 = vpow.pop %v3059
  %v3061 = vmul.f32 %v2947, 1.442695
  %v3062 = vpow.pop %v3061
  %v3063 = vmul.f32 %v2948, 1.442695
  %v3064 = vpow.pop %v3063
  %v3065 = vmul.f32 %v2949, 1.442695
  %v3066 = vpow.pop %v3065
  %v3067 = vmul.f32 %v2950, 1.442695
  %v3068 = vpow.pop %v3067
  %v3069 = vmul.f32 %v2951, 1.442695
  %v3070 = vpow.pop %v3069
  %v3071 = vmul.f32 %v2952, 1.442695
  %v3072 = vpow.pop %v3071
  %v3073 = vmul.f32 %v2953, 1.442695
  %v3074 = vpow.pop %v3073
  %v3075 = vmul.f32 %v2954, 1.442695
  %v3076 = vpow.pop %v3075
  %v3077 = vmul.f32 %v2955, 1.442695
  %v3078 = vpow.pop %v3077
  %v3079 = vmul.f32 %v2956, 1.442695
  %v3080 = vpow.pop %v3079
  %v3081 = vmul.f32 %v2957, 1.442695
  %v3082 = vpow.pop %v3081
  %v3083 = vmul.f32 %v2958, 1.442695
  %v3084 = vpow.pop %v3083
  %v3085 = vmul.f32 %v2959, 1.442695
  %v3086 = vpow.pop %v3085
  %v3087 = vmul.f32 %v2960, 1.442695
  %v3088 = vpow.pop %v3087
  %3089 = vadd.xlane.f32.xlu0 %v2962
  %v3090 = vpop.xlane.xlu0 %3089
  %3091 = vadd.xlane.f32.xlu0 %v2964
  %v3092 = vpop.xlane.xlu0 %3091
  %3093 = vadd.xlane.f32.xlu0 %v2966
  %v3094 = vpop.xlane.xlu0 %3093
  %3095 = vadd.xlane.f32.xlu0 %v2968
  %v3096 = vpop.xlane.xlu0 %3095
  %3097 = vadd.xlane.f32.xlu0 %v2970
  %v3098 = vpop.xlane.xlu0 %3097
  %3099 = vadd.xlane.f32.xlu0 %v2972
  %v3100 = vpop.xlane.xlu0 %3099
  %3101 = vadd.xlane.f32.xlu0 %v2974
  %v3102 = vpop.xlane.xlu0 %3101
  %3103 = vadd.xlane.f32.xlu0 %v2976
  %v3104 = vpop.xlane.xlu0 %3103
  %3105 = vadd.xlane.f32.xlu0 %v2978
  %v3106 = vpop.xlane.xlu0 %3105
  %3107 = vadd.xlane.f32.xlu0 %v2980
  %v3108 = vpop.xlane.xlu0 %3107
  %3109 = vadd.xlane.f32.xlu0 %v2982
  %v3110 = vpop.xlane.xlu0 %3109
  %3111 = vadd.xlane.f32.xlu0 %v2984
  %v3112 = vpop.xlane.xlu0 %3111
  %3113 = vadd.xlane.f32.xlu0 %v2986
  %v3114 = vpop.xlane.xlu0 %3113
  %3115 = vadd.xlane.f32.xlu0 %v2988
  %v3116 = vpop.xlane.xlu0 %3115
  %3117 = vadd.xlane.f32.xlu0 %v2990
  %v3118 = vpop.xlane.xlu0 %3117
  %3119 = vadd.xlane.f32.xlu0 %v2992
  %v3120 = vpop.xlane.xlu0 %3119
  %3121 = vadd.xlane.f32.xlu0 %v2994
  %v3122 = vpop.xlane.xlu0 %3121
  %3123 = vadd.xlane.f32.xlu0 %v2996
  %v3124 = vpop.xlane.xlu0 %3123
  %3125 = vadd.xlane.f32.xlu0 %v2998
  %v3126 = vpop.xlane.xlu0 %3125
  %3127 = vadd.xlane.f32.xlu0 %v3000
  %v3128 = vpop.xlane.xlu0 %3127
  %3129 = vadd.xlane.f32.xlu0 %v3002
  %v3130 = vpop.xlane.xlu0 %3129
  %3131 = vadd.xlane.f32.xlu0 %v3004
  %v3132 = vpop.xlane.xlu0 %3131
  %3133 = vadd.xlane.f32.xlu0 %v3006
  %v3134 = vpop.xlane.xlu0 %3133
  %3135 = vadd.xlane.f32.xlu0 %v3008
  %v3136 = vpop.xlane.xlu0 %3135
  %3137 = vadd.xlane.f32.xlu0 %v3010
  %v3138 = vpop.xlane.xlu0 %3137
  %3139 = vadd.xlane.f32.xlu0 %v3012
  %v3140 = vpop.xlane.xlu0 %3139
  %3141 = vadd.xlane.f32.xlu0 %v3014
  %v3142 = vpop.xlane.xlu0 %3141
  %3143 = vadd.xlane.f32.xlu0 %v3016
  %v3144 = vpop.xlane.xlu0 %3143
  %3145 = vadd.xlane.f32.xlu0 %v3018
  %v3146 = vpop.xlane.xlu0 %3145
  %3147 = vadd.xlane.f32.xlu0 %v3020
  %v3148 = vpop.xlane.xlu0 %3147
  %3149 = vadd.xlane.f32.xlu0 %v3022
  %v3150 = vpop.xlane.xlu0 %3149
  %3151 = vadd.xlane.f32.xlu0 %v3024
  %v3152 = vpop.xlane.xlu0 %3151
  %3153 = vadd.xlane.f32.xlu0 %v3026
  %v3154 = vpop.xlane.xlu0 %3153
  %3155 = vadd.xlane.f32.xlu0 %v3028
  %v3156 = vpop.xlane.xlu0 %3155
  %3157 = vadd.xlane.f32.xlu0 %v3030
  %v3158 = vpop.xlane.xlu0 %3157
  %3159 = vadd.xlane.f32.xlu0 %v3032
  %v3160 = vpop.xlane.xlu0 %3159
  %3161 = vadd.xlane.f32.xlu0 %v3034
  %v3162 = vpop.xlane.xlu0 %3161
  %3163 = vadd.xlane.f32.xlu0 %v3036
  %v3164 = vpop.xlane.xlu0 %3163
  %3165 = vadd.xlane.f32.xlu0 %v3038
  %v3166 = vpop.xlane.xlu0 %3165
  %3167 = vadd.xlane.f32.xlu0 %v3040
  %v3168 = vpop.xlane.xlu0 %3167
  %3169 = vadd.xlane.f32.xlu0 %v3042
  %v3170 = vpop.xlane.xlu0 %3169
  %3171 = vadd.xlane.f32.xlu0 %v3044
  %v3172 = vpop.xlane.xlu0 %3171
  %3173 = vadd.xlane.f32.xlu0 %v3046
  %v3174 = vpop.xlane.xlu0 %3173
  %3175 = vadd.xlane.f32.xlu0 %v3048
  %v3176 = vpop.xlane.xlu0 %3175
  %3177 = vadd.xlane.f32.xlu0 %v3050
  %v3178 = vpop.xlane.xlu0 %3177
  %3179 = vadd.xlane.f32.xlu0 %v3052
  %v3180 = vpop.xlane.xlu0 %3179
  %3181 = vadd.xlane.f32.xlu0 %v3054
  %v3182 = vpop.xlane.xlu0 %3181
  %3183 = vadd.xlane.f32.xlu0 %v3056
  %v3184 = vpop.xlane.xlu0 %3183
  %3185 = vadd.xlane.f32.xlu0 %v3058
  %v3186 = vpop.xlane.xlu0 %3185
  %3187 = vadd.xlane.f32.xlu0 %v3060
  %v3188 = vpop.xlane.xlu0 %3187
  %3189 = vadd.xlane.f32.xlu0 %v3062
  %v3190 = vpop.xlane.xlu0 %3189
  %3191 = vadd.xlane.f32.xlu0 %v3064
  %v3192 = vpop.xlane.xlu0 %3191
  %3193 = vadd.xlane.f32.xlu0 %v3066
  %v3194 = vpop.xlane.xlu0 %3193
  %3195 = vadd.xlane.f32.xlu0 %v3068
  %v3196 = vpop.xlane.xlu0 %3195
  %3197 = vadd.xlane.f32.xlu0 %v3070
  %v3198 = vpop.xlane.xlu0 %3197
  %3199 = vadd.xlane.f32.xlu0 %v3072
  %v3200 = vpop.xlane.xlu0 %3199
  %3201 = vadd.xlane.f32.xlu0 %v3074
  %v3202 = vpop.xlane.xlu0 %3201
  %3203 = vadd.xlane.f32.xlu0 %v3076
  %v3204 = vpop.xlane.xlu0 %3203
  %3205 = vadd.xlane.f32.xlu0 %v3078
  %v3206 = vpop.xlane.xlu0 %3205
  %3207 = vadd.xlane.f32.xlu0 %v3080
  %v3208 = vpop.xlane.xlu0 %3207
  %3209 = vadd.xlane.f32.xlu0 %v3082
  %v3210 = vpop.xlane.xlu0 %3209
  %3211 = vadd.xlane.f32.xlu0 %v3084
  %v3212 = vpop.xlane.xlu0 %3211
  %3213 = vadd.xlane.f32.xlu0 %v3086
  %v3214 = vpop.xlane.xlu0 %3213
  %3215 = vadd.xlane.f32.xlu0 %v3088
  %v3216 = vpop.xlane.xlu0 %3215
  %v3217 = vrcp.pop %v3090
  %v3218 = vrcp.pop %v3092
  %v3219 = vrcp.pop %v3094
  %v3220 = vrcp.pop %v3096
  %v3221 = vrcp.pop %v3098
  %v3222 = vrcp.pop %v3100
  %v3223 = vrcp.pop %v3102
  %v3224 = vrcp.pop %v3104
  %v3225 = vrcp.pop %v3106
  %v3226 = vrcp.pop %v3108
  %v3227 = vrcp.pop %v3110
  %v3228 = vrcp.pop %v3112
  %v3229 = vrcp.pop %v3114
  %v3230 = vrcp.pop %v3116
  %v3231 = vrcp.pop %v3118
  %v3232 = vrcp.pop %v3120
  %v3233 = vrcp.pop %v3122
  %v3234 = vrcp.pop %v3124
  %v3235 = vrcp.pop %v3126
  %v3236 = vrcp.pop %v3128
  %v3237 = vrcp.pop %v3130
  %v3238 = vrcp.pop %v3132
  %v3239 = vrcp.pop %v3134
  %v3240 = vrcp.pop %v3136
  %v3241 = vrcp.pop %v3138
  %v3242 = vrcp.pop %v3140
  %v3243 = vrcp.pop %v3142
  %v3244 = vrcp.pop %v3144
  %v3245 = vrcp.pop %v3146
  %v3246 = vrcp.pop %v3148
  %v3247 = vrcp.pop %v3150
  %v3248 = vrcp.pop %v3152
  %v3249 = vrcp.pop %v3154
  %v3250 = vrcp.pop %v3156
  %v3251 = vrcp.pop %v3158
  %v3252 = vrcp.pop %v3160
  %v3253 = vrcp.pop %v3162
  %v3254 = vrcp.pop %v3164
  %v3255 = vrcp.pop %v3166
  %v3256 = vrcp.pop %v3168
  %v3257 = vrcp.pop %v3170
  %v3258 = vrcp.pop %v3172
  %v3259 = vrcp.pop %v3174
  %v3260 = vrcp.pop %v3176
  %v3261 = vrcp.pop %v3178
  %v3262 = vrcp.pop %v3180
  %v3263 = vrcp.pop %v3182
  %v3264 = vrcp.pop %v3184
  %v3265 = vrcp.pop %v3186
  %v3266 = vrcp.pop %v3188
  %v3267 = vrcp.pop %v3190
  %v3268 = vrcp.pop %v3192
  %v3269 = vrcp.pop %v3194
  %v3270 = vrcp.pop %v3196
  %v3271 = vrcp.pop %v3198
  %v3272 = vrcp.pop %v3200
  %v3273 = vrcp.pop %v3202
  %v3274 = vrcp.pop %v3204
  %v3275 = vrcp.pop %v3206
  %v3276 = vrcp.pop %v3208
  %v3277 = vrcp.pop %v3210
  %v3278 = vrcp.pop %v3212
  %v3279 = vrcp.pop %v3214
  %v3280 = vrcp.pop %v3216
  %v3281 = vmul.f32 %v2962, %v3217
  %v3282 = vmul.f32 %v2964, %v3218
  %v3283 = vmul.f32 %v2966, %v3219
  %v3284 = vmul.f32 %v2968, %v3220
  %v3285 = vmul.f32 %v2970, %v3221
  %v3286 = vmul.f32 %v2972, %v3222
  %v3287 = vmul.f32 %v2974, %v3223
  %v3288 = vmul.f32 %v2976, %v3224
  %v3289 = vmul.f32 %v2978, %v3225
  %v3290 = vmul.f32 %v2980, %v3226
  %v3291 = vmul.f32 %v2982, %v3227
  %v3292 = vmul.f32 %v2984, %v3228
  %v3293 = vmul.f32 %v2986, %v3229
  %v3294 = vmul.f32 %v2988, %v3230
  %v3295 = vmul.f32 %v2990, %v3231
  %v3296 = vmul.f32 %v2992, %v3232
  %v3297 = vmul.f32 %v2994, %v3233
  %v3298 = vmul.f32 %v2996, %v3234
  %v3299 = vmul.f32 %v2998, %v3235
  %v3300 = vmul.f32 %v3000, %v3236
  %v3301 = vmul.f32 %v3002, %v3237
  %v3302 = vmul.f32 %v3004, %v3238
  %v3303 = vmul.f32 %v3006, %v3239
  %v3304 = vmul.f32 %v3008, %v3240
  %v3305 = vmul.f32 %v3010, %v3241
  %v3306 = vmul.f32 %v3012, %v3242
  %v3307 = vmul.f32 %v3014, %v3243
  %v3308 = vmul.f32 %v3016, %v3244
  %v3309 = vmul.f32 %v3018, %v3245
  %v3310 = vmul.f32 %v3020, %v3246
  %v3311 = vmul.f32 %v3022, %v3247
  %v3312 = vmul.f32 %v3024, %v3248
  %v3313 = vmul.f32 %v3026, %v3249
  %v3314 = vmul.f32 %v3028, %v3250
  %v3315 = vmul.f32 %v3030, %v3251
  %v3316 = vmul.f32 %v3032, %v3252
  %v3317 = vmul.f32 %v3034, %v3253
  %v3318 = vmul.f32 %v3036, %v3254
  %v3319 = vmul.f32 %v3038, %v3255
  %v3320 = vmul.f32 %v3040, %v3256
  %v3321 = vmul.f32 %v3042, %v3257
  %v3322 = vmul.f32 %v3044, %v3258
  %v3323 = vmul.f32 %v3046, %v3259
  %v3324 = vmul.f32 %v3048, %v3260
  %v3325 = vmul.f32 %v3050, %v3261
  %v3326 = vmul.f32 %v3052, %v3262
  %v3327 = vmul.f32 %v3054, %v3263
  %v3328 = vmul.f32 %v3056, %v3264
  %v3329 = vmul.f32 %v3058, %v3265
  %v3330 = vmul.f32 %v3060, %v3266
  %v3331 = vmul.f32 %v3062, %v3267
  %v3332 = vmul.f32 %v3064, %v3268
  %v3333 = vmul.f32 %v3066, %v3269
  %v3334 = vmul.f32 %v3068, %v3270
  %v3335 = vmul.f32 %v3070, %v3271
  %v3336 = vmul.f32 %v3072, %v3272
  %v3337 = vmul.f32 %v3074, %v3273
  %v3338 = vmul.f32 %v3076, %v3274
  %v3339 = vmul.f32 %v3078, %v3275
  %v3340 = vmul.f32 %v3080, %v3276
  %v3341 = vmul.f32 %v3082, %v3277
  %v3342 = vmul.f32 %v3084, %v3278
  %v3343 = vmul.f32 %v3086, %v3279
  %v3344 = vmul.f32 %v3088, %v3280
  %3345 = vrot.lane.b32.xlu0 %v1930, 64
  %v3346 = vpop.permute.xlu0 %3345
  %3347 = vrot.lane.b32.xlu0 %v1931, 64
  %v3348 = vpop.permute.xlu0 %3347
  %3349 = vrot.lane.b32.xlu0 %v1932, 64
  %v3350 = vpop.permute.xlu0 %3349
  %3351 = vrot.lane.b32.xlu0 %v1933, 64
  %v3352 = vpop.permute.xlu0 %3351
  %3353 = vrot.lane.b32.xlu0 %v1934, 64
  %v3354 = vpop.permute.xlu0 %3353
  %3355 = vrot.lane.b32.xlu0 %v1935, 64
  %v3356 = vpop.permute.xlu0 %3355
  %3357 = vrot.lane.b32.xlu0 %v1936, 64
  %v3358 = vpop.permute.xlu0 %3357
  %3359 = vrot.lane.b32.xlu0 %v1937, 64
  %v3360 = vpop.permute.xlu0 %3359
  %3361 = vrot.lane.b32.xlu0 %v1938, 64
  %v3362 = vpop.permute.xlu0 %3361
  %3363 = vrot.lane.b32.xlu0 %v1939, 64
  %v3364 = vpop.permute.xlu0 %3363
  %3365 = vrot.lane.b32.xlu0 %v1940, 64
  %v3366 = vpop.permute.xlu0 %3365
  %3367 = vrot.lane.b32.xlu0 %v1941, 64
  %v3368 = vpop.permute.xlu0 %3367
  %3369 = vrot.lane.b32.xlu0 %v1942, 64
  %v3370 = vpop.permute.xlu0 %3369
  %3371 = vrot.lane.b32.xlu0 %v1943, 64
  %v3372 = vpop.permute.xlu0 %3371
  %3373 = vrot.lane.b32.xlu0 %v1944, 64
  %v3374 = vpop.permute.xlu0 %3373
  %3375 = vrot.lane.b32.xlu0 %v1945, 64
  %v3376 = vpop.permute.xlu0 %3375
  %3393 = vmatprep.subr.mxu0 0.0
  %3394 = vmatpush1.msra.mxu0 %v3346
  %3395 = vmatprep.subr.mxu0 0.0
  %3396 = vmatpush1.msra.mxu0 %v3348
  %3397 = vmatprep.subr.mxu0 0.0
  %3398 = vmatpush1.msra.mxu0 %v3350
  %3399 = vmatprep.subr.mxu0 0.0
  %3400 = vmatpush1.msra.mxu0 %v3352
  %3401 = vmatprep.subr.mxu0 0.0
  %3402 = vmatpush1.msra.mxu0 %v3354
  %3403 = vmatprep.subr.mxu0 0.0
  %3404 = vmatpush1.msra.mxu0 %v3356
  %3405 = vmatprep.subr.mxu0 0.0
  %3406 = vmatpush1.msra.mxu0 %v3358
  %3407 = vmatprep.subr.mxu0 0.0
  %3408 = vmatpush1.msra.mxu0 %v3360
  %3409 = vmatprep.subr.mxu0 0.0
  %3410 = vmatpush1.msra.mxu0 %v3362
  %3411 = vmatprep.subr.mxu0 0.0
  %3412 = vmatpush1.msra.mxu0 %v3364
  %3413 = vmatprep.subr.mxu0 0.0
  %3414 = vmatpush1.msra.mxu0 %v3366
  %3415 = vmatprep.subr.mxu0 0.0
  %3416 = vmatpush1.msra.mxu0 %v3368
  %3417 = vmatprep.subr.mxu0 0.0
  %3418 = vmatpush1.msra.mxu0 %v3370
  %3419 = vmatprep.subr.mxu0 0.0
  %3420 = vmatpush1.msra.mxu0 %v3372
  %3421 = vmatprep.subr.mxu0 0.0
  %3422 = vmatpush1.msra.mxu0 %v3374
  %3423 = vmatprep.subr.mxu0 0.0
  %3424 = vmatpush1.msra.mxu0 %v3376
  %3425 = vmatprep.subr.mxu0 0.0
  %3426 = vmatpush1.msra.mxu0 0.0
  %3427 = vmatprep.subr.mxu0 0.0
  %3428 = vmatpush1.msra.mxu0 0.0
  %3429 = vmatprep.subr.mxu0 0.0
  %3430 = vmatpush1.msra.mxu0 0.0
  %3431 = vmatprep.subr.mxu0 0.0
  %3432 = vmatpush1.msra.mxu0 0.0
  %3433 = vmatprep.subr.mxu0 0.0
  %3434 = vmatpush1.msra.mxu0 0.0
  %3435 = vmatprep.subr.mxu0 0.0
  %3436 = vmatpush1.msra.mxu0 0.0
  %3437 = vmatprep.subr.mxu0 0.0
  %3438 = vmatpush1.msra.mxu0 0.0
  %3439 = vmatprep.subr.mxu0 0.0
  %3440 = vmatpush1.msra.mxu0 0.0
  %3441 = vmatprep.subr.mxu0 0.0
  %3442 = vmatpush1.msra.mxu0 0.0
  %3443 = vmatprep.subr.mxu0 0.0
  %3444 = vmatpush1.msra.mxu0 0.0
  %3445 = vmatprep.subr.mxu0 0.0
  %3446 = vmatpush1.msra.mxu0 0.0
  %3447 = vmatprep.subr.mxu0 0.0
  %3448 = vmatpush1.msra.mxu0 0.0
  %3449 = vmatprep.subr.mxu0 0.0
  %3450 = vmatpush1.msra.mxu0 0.0
  %3451 = vmatprep.subr.mxu0 0.0
  %3452 = vmatpush1.msra.mxu0 0.0
  %3453 = vmatprep.subr.mxu0 0.0
  %3454 = vmatpush1.msra.mxu0 0.0
  %3455 = vmatprep.subr.mxu0 0.0
  %3456 = vmatpush1.msra.mxu0 0.0
  %3457 = vmatprep.mubr.f32.mxu0 0.0
  %3458 = vmatmul.mubr.f32.gmra.mrb[0].mxu0 %v3281
  %v3459 = vpop.f32.mrb[0].mxu0
  %v3460 = vadd.f32 0.0, %v3459
  %v3461 = vpop.f32.mrb[0].mxu0
  %3462 = vmatprep.mubr.f32.mxu0 0.0
  %3463 = vmatmul.mubr.f32.gmra.mrb[0].mxu0 %v3282
  %v3464 = vpop.f32.mrb[0].mxu0
  %v3465 = vadd.f32 0.0, %v3464
  %v3466 = vpop.f32.mrb[0].mxu0
  %3467 = vmatprep.mubr.f32.mxu0 0.0
  %3468 = vmatmul.mubr.f32.gmra.mrb[0].mxu0 %v3283
  %v3469 = vpop.f32.mrb[0].mxu0
  %v3470 = vadd.f32 0.0, %v3469
  %v3471 = vpop.f32.mrb[0].mxu0
  %3472 = vmatprep.mubr.f32.mxu0 0.0
  %3473 = vmatmul.mubr.f32.gmra.mrb[0].mxu0 %v3284
  %v3474 = vpop.f32.mrb[0].mxu0
  %v3475 = vadd.f32 0.0, %v3474
  %v3476 = vpop.f32.mrb[0].mxu0
  %3477 = vmatprep.mubr.f32.mxu0 0.0
  %3478 = vmatmul.mubr.f32.gmra.mrb[0].mxu0 %v3285
  %v3479 = vpop.f32.mrb[0].mxu0
  %v3480 = vadd.f32 0.0, %v3479
  %v3481 = vpop.f32.mrb[0].mxu0
  %3482 = vmatprep.mubr.f32.mxu0 0.0
  %3483 = vmatmul.mubr.f32.gmra.mrb[0].mxu0 %v3286
  %v3484 = vpop.f32.mrb[0].mxu0
  %v3485 = vadd.f32 0.0, %v3484
  %v3486 = vpop.f32.mrb[0].mxu0
  %3487 = vmatprep.mubr.f32.mxu0 0.0
  %3488 = vmatmul.mubr.f32.gmra.mrb[0].mxu0 %v3287
  %v3489 = vpop.f32.mrb[0].mxu0
  %v3490 = vadd.f32 0.0, %v3489
  %v3491 = vpop.f32.mrb[0].mxu0
  %3492 = vmatprep.mubr.f32.mxu0 0.0
  %3493 = vmatmul.mubr.f32.gmra.mrb[0].mxu0 %v3288
  %v3494 = vpop.f32.mrb[0].mxu0
  %v3495 = vadd.f32 0.0, %v3494
  %v3496 = vpop.f32.mrb[0].mxu0
  %3497 = vmatprep.mubr.f32.mxu0 0.0
  %3498 = vmatmul.mubr.f32.gmra.mrb[0].mxu0 %v3289
  %v3499 = vpop.f32.mrb[0].mxu0
  %v3500 = vadd.f32 0.0, %v3499
  %v3501 = vpop.f32.mrb[0].mxu0
  %3502 = vmatprep.mubr.f32.mxu0 0.0
  %3503 = vmatmul.mubr.f32.gmra.mrb[0].mxu0 %v3290
  %v3504 = vpop.f32.mrb[0].mxu0
  %v3505 = vadd.f32 0.0, %v3504
  %v3506 = vpop.f32.mrb[0].mxu0
  %3507 = vmatprep.mubr.f32.mxu0 0.0
  %3508 = vmatmul.mubr.f32.gmra.mrb[0].mxu0 %v3291
  %v3509 = vpop.f32.mrb[0].mxu0
  %v3510 = vadd.f32 0.0, %v3509
  %v3511 = vpop.f32.mrb[0].mxu0
  %3512 = vmatprep.mubr.f32.mxu0 0.0
  %3513 = vmatmul.mubr.f32.gmra.mrb[0].mxu0 %v3292
  %v3514 = vpop.f32.mrb[0].mxu0
  %v3515 = vadd.f32 0.0, %v3514
  %v3516 = vpop.f32.mrb[0].mxu0
  %3517 = vmatprep.mubr.f32.mxu0 0.0
  %3518 = vmatmul.mubr.f32.gmra.mrb[0].mxu0 %v3293
  %v3519 = vpop.f32.mrb[0].mxu0
  %v3520 = vadd.f32 0.0, %v3519
  %v3521 = vpop.f32.mrb[0].mxu0
  %3522 = vmatprep.mubr.f32.mxu0 0.0
  %3523 = vmatmul.mubr.f32.gmra.mrb[0].mxu0 %v3294
  %v3524 = vpop.f32.mrb[0].mxu0
  %v3525 = vadd.f32 0.0, %v3524
  %v3526 = vpop.f32.mrb[0].mxu0
  %3527 = vmatprep.mubr.f32.mxu0 0.0
  %3528 = vmatmul.mubr.f32.gmra.mrb[0].mxu0 %v3295
  %v3529 = vpop.f32.mrb[0].mxu0
  %v3530 = vadd.f32 0.0, %v3529
  %v3531 = vpop.f32.mrb[0].mxu0
  %3532 = vmatprep.mubr.f32.mxu0 0.0
  %3533 = vmatmul.mubr.f32.gmra.mrb[0].mxu0 %v3296
  %v3534 = vpop.f32.mrb[0].mxu0
  %v3535 = vadd.f32 0.0, %v3534
  %v3536 = vpop.f32.mrb[0].mxu0
  %3537 = vmatprep.mubr.f32.mxu0 0.0
  %3538 = vmatmul.mubr.f32.gmra.mrb[0].mxu0 %v3297
  %v3539 = vpop.f32.mrb[0].mxu0
  %v3540 = vadd.f32 0.0, %v3539
  %v3541 = vpop.f32.mrb[0].mxu0
  %3542 = vmatprep.mubr.f32.mxu0 0.0
  %3543 = vmatmul.mubr.f32.gmra.mrb[0].mxu0 %v3298
  %v3544 = vpop.f32.mrb[0].mxu0
  %v3545 = vadd.f32 0.0, %v3544
  %v3546 = vpop.f32.mrb[0].mxu0
  %3547 = vmatprep.mubr.f32.mxu0 0.0
  %3548 = vmatmul.mubr.f32.gmra.mrb[0].mxu0 %v3299
  %v3549 = vpop.f32.mrb[0].mxu0
  %v3550 = vadd.f32 0.0, %v3549
  %v3551 = vpop.f32.mrb[0].mxu0
  %3552 = vmatprep.mubr.f32.mxu0 0.0
  %3553 = vmatmul.mubr.f32.gmra.mrb[0].mxu0 %v3300
  %v3554 = vpop.f32.mrb[0].mxu0
  %v3555 = vadd.f32 0.0, %v3554
  %v3556 = vpop.f32.mrb[0].mxu0
  %3557 = vmatprep.mubr.f32.mxu0 0.0
  %3558 = vmatmul.mubr.f32.gmra.mrb[0].mxu0 %v3301
  %v3559 = vpop.f32.mrb[0].mxu0
  %v3560 = vadd.f32 0.0, %v3559
  %v3561 = vpop.f32.mrb[0].mxu0
  %3562 = vmatprep.mubr.f32.mxu0 0.0
  %3563 = vmatmul.mubr.f32.gmra.mrb[0].mxu0 %v3302
  %v3564 = vpop.f32.mrb[0].mxu0
  %v3565 = vadd.f32 0.0, %v3564
  %v3566 = vpop.f32.mrb[0].mxu0
  %3567 = vmatprep.mubr.f32.mxu0 0.0
  %3568 = vmatmul.mubr.f32.gmra.mrb[0].mxu0 %v3303
  %v3569 = vpop.f32.mrb[0].mxu0
  %v3570 = vadd.f32 0.0, %v3569
  %v3571 = vpop.f32.mrb[0].mxu0
  %3572 = vmatprep.mubr.f32.mxu0 0.0
  %3573 = vmatmul.mubr.f32.gmra.mrb[0].mxu0 %v3304
  %v3574 = vpop.f32.mrb[0].mxu0
  %v3575 = vadd.f32 0.0, %v3574
  %v3576 = vpop.f32.mrb[0].mxu0
  %3577 = vmatprep.mubr.f32.mxu0 0.0
  %3578 = vmatmul.mubr.f32.gmra.mrb[0].mxu0 %v3305
  %v3579 = vpop.f32.mrb[0].mxu0
  %v3580 = vadd.f32 0.0, %v3579
  %v3581 = vpop.f32.mrb[0].mxu0
  %3582 = vmatprep.mubr.f32.mxu0 0.0
  %3583 = vmatmul.mubr.f32.gmra.mrb[0].mxu0 %v3306
  %v3584 = vpop.f32.mrb[0].mxu0
  %v3585 = vadd.f32 0.0, %v3584
  %v3586 = vpop.f32.mrb[0].mxu0
  %3587 = vmatprep.mubr.f32.mxu0 0.0
  %3588 = vmatmul.mubr.f32.gmra.mrb[0].mxu0 %v3307
  %v3589 = vpop.f32.mrb[0].mxu0
  %v3590 = vadd.f32 0.0, %v3589
  %v3591 = vpop.f32.mrb[0].mxu0
  %3592 = vmatprep.mubr.f32.mxu0 0.0
  %3593 = vmatmul.mubr.f32.gmra.mrb[0].mxu0 %v3308
  %v3594 = vpop.f32.mrb[0].mxu0
  %v3595 = vadd.f32 0.0, %v3594
  %v3596 = vpop.f32.mrb[0].mxu0
  %3597 = vmatprep.mubr.f32.mxu0 0.0
  %3598 = vmatmul.mubr.f32.gmra.mrb[0].mxu0 %v3309
  %v3599 = vpop.f32.mrb[0].mxu0
  %v3600 = vadd.f32 0.0, %v3599
  %v3601 = vpop.f32.mrb[0].mxu0
  %3602 = vmatprep.mubr.f32.mxu0 0.0
  %3603 = vmatmul.mubr.f32.gmra.mrb[0].mxu0 %v3310
  %v3604 = vpop.f32.mrb[0].mxu0
  %v3605 = vadd.f32 0.0, %v3604
  %v3606 = vpop.f32.mrb[0].mxu0
  %3607 = vmatprep.mubr.f32.mxu0 0.0
  %3608 = vmatmul.mubr.f32.gmra.mrb[0].mxu0 %v3311
  %v3609 = vpop.f32.mrb[0].mxu0
  %v3610 = vadd.f32 0.0, %v3609
  %v3611 = vpop.f32.mrb[0].mxu0
  %3612 = vmatprep.mubr.f32.mxu0 0.0
  %3613 = vmatmul.mubr.f32.gmra.mrb[0].mxu0 %v3312
  %v3614 = vpop.f32.mrb[0].mxu0
  %v3615 = vadd.f32 0.0, %v3614
  %v3616 = vpop.f32.mrb[0].mxu0
  %3617 = vmatprep.mubr.f32.mxu0 0.0
  %3618 = vmatmul.mubr.f32.gmra.mrb[0].mxu0 %v3313
  %v3619 = vpop.f32.mrb[0].mxu0
  %v3620 = vadd.f32 0.0, %v3619
  %v3621 = vpop.f32.mrb[0].mxu0
  %3622 = vmatprep.mubr.f32.mxu0 0.0
  %3623 = vmatmul.mubr.f32.gmra.mrb[0].mxu0 %v3314
  %v3624 = vpop.f32.mrb[0].mxu0
  %v3625 = vadd.f32 0.0, %v3624
  %v3626 = vpop.f32.mrb[0].mxu0
  %3627 = vmatprep.mubr.f32.mxu0 0.0
  %3628 = vmatmul.mubr.f32.gmra.mrb[0].mxu0 %v3315
  %v3629 = vpop.f32.mrb[0].mxu0
  %v3630 = vadd.f32 0.0, %v3629
  %v3631 = vpop.f32.mrb[0].mxu0
  %3632 = vmatprep.mubr.f32.mxu0 0.0
  %3633 = vmatmul.mubr.f32.gmra.mrb[0].mxu0 %v3316
  %v3634 = vpop.f32.mrb[0].mxu0
  %v3635 = vadd.f32 0.0, %v3634
  %v3636 = vpop.f32.mrb[0].mxu0
  %3637 = vmatprep.mubr.f32.mxu0 0.0
  %3638 = vmatmul.mubr.f32.gmra.mrb[0].mxu0 %v3317
  %v3639 = vpop.f32.mrb[0].mxu0
  %v3640 = vadd.f32 0.0, %v3639
  %v3641 = vpop.f32.mrb[0].mxu0
  %3642 = vmatprep.mubr.f32.mxu0 0.0
  %3643 = vmatmul.mubr.f32.gmra.mrb[0].mxu0 %v3318
  %v3644 = vpop.f32.mrb[0].mxu0
  %v3645 = vadd.f32 0.0, %v3644
  %v3646 = vpop.f32.mrb[0].mxu0
  %3647 = vmatprep.mubr.f32.mxu0 0.0
  %3648 = vmatmul.mubr.f32.gmra.mrb[0].mxu0 %v3319
  %v3649 = vpop.f32.mrb[0].mxu0
  %v3650 = vadd.f32 0.0, %v3649
  %v3651 = vpop.f32.mrb[0].mxu0
  %3652 = vmatprep.mubr.f32.mxu0 0.0
  %3653 = vmatmul.mubr.f32.gmra.mrb[0].mxu0 %v3320
  %v3654 = vpop.f32.mrb[0].mxu0
  %v3655 = vadd.f32 0.0, %v3654
  %v3656 = vpop.f32.mrb[0].mxu0
  %3657 = vmatprep.mubr.f32.mxu0 0.0
  %3658 = vmatmul.mubr.f32.gmra.mrb[0].mxu0 %v3321
  %v3659 = vpop.f32.mrb[0].mxu0
  %v3660 = vadd.f32 0.0, %v3659
  %v3661 = vpop.f32.mrb[0].mxu0
  %3662 = vmatprep.mubr.f32.mxu0 0.0
  %3663 = vmatmul.mubr.f32.gmra.mrb[0].mxu0 %v3322
  %v3664 = vpop.f32.mrb[0].mxu0
  %v3665 = vadd.f32 0.0, %v3664
  %v3666 = vpop.f32.mrb[0].mxu0
  %3667 = vmatprep.mubr.f32.mxu0 0.0
  %3668 = vmatmul.mubr.f32.gmra.mrb[0].mxu0 %v3323
  %v3669 = vpop.f32.mrb[0].mxu0
  %v3670 = vadd.f32 0.0, %v3669
  %v3671 = vpop.f32.mrb[0].mxu0
  %3672 = vmatprep.mubr.f32.mxu0 0.0
  %3673 = vmatmul.mubr.f32.gmra.mrb[0].mxu0 %v3324
  %v3674 = vpop.f32.mrb[0].mxu0
  %v3675 = vadd.f32 0.0, %v3674
  %v3676 = vpop.f32.mrb[0].mxu0
  %3677 = vmatprep.mubr.f32.mxu0 0.0
  %3678 = vmatmul.mubr.f32.gmra.mrb[0].mxu0 %v3325
  %v3679 = vpop.f32.mrb[0].mxu0
  %v3680 = vadd.f32 0.0, %v3679
  %v3681 = vpop.f32.mrb[0].mxu0
  %3682 = vmatprep.mubr.f32.mxu0 0.0
  %3683 = vmatmul.mubr.f32.gmra.mrb[0].mxu0 %v3326
  %v3684 = vpop.f32.mrb[0].mxu0
  %v3685 = vadd.f32 0.0, %v3684
  %v3686 = vpop.f32.mrb[0].mxu0
  %3687 = vmatprep.mubr.f32.mxu0 0.0
  %3688 = vmatmul.mubr.f32.gmra.mrb[0].mxu0 %v3327
  %v3689 = vpop.f32.mrb[0].mxu0
  %v3690 = vadd.f32 0.0, %v3689
  %v3691 = vpop.f32.mrb[0].mxu0
  %3692 = vmatprep.mubr.f32.mxu0 0.0
  %3693 = vmatmul.mubr.f32.gmra.mrb[0].mxu0 %v3328
  %v3694 = vpop.f32.mrb[0].mxu0
  %v3695 = vadd.f32 0.0, %v3694
  %v3696 = vpop.f32.mrb[0].mxu0
  %3697 = vmatprep.mubr.f32.mxu0 0.0
  %3698 = vmatmul.mubr.f32.gmra.mrb[0].mxu0 %v3329
  %v3699 = vpop.f32.mrb[0].mxu0
  %v3700 = vadd.f32 0.0, %v3699
  %v3701 = vpop.f32.mrb[0].mxu0
  %3702 = vmatprep.mubr.f32.mxu0 0.0
  %3703 = vmatmul.mubr.f32.gmra.mrb[0].mxu0 %v3330
  %v3704 = vpop.f32.mrb[0].mxu0
  %v3705 = vadd.f32 0.0, %v3704
  %v3706 = vpop.f32.mrb[0].mxu0
  %3707 = vmatprep.mubr.f32.mxu0 0.0
  %3708 = vmatmul.mubr.f32.gmra.mrb[0].mxu0 %v3331
  %v3709 = vpop.f32.mrb[0].mxu0
  %v3710 = vadd.f32 0.0, %v3709
  %v3711 = vpop.f32.mrb[0].mxu0
  %3712 = vmatprep.mubr.f32.mxu0 0.0
  %3713 = vmatmul.mubr.f32.gmra.mrb[0].mxu0 %v3332
  %v3714 = vpop.f32.mrb[0].mxu0
  %v3715 = vadd.f32 0.0, %v3714
  %v3716 = vpop.f32.mrb[0].mxu0
  %3717 = vmatprep.mubr.f32.mxu0 0.0
  %3718 = vmatmul.mubr.f32.gmra.mrb[0].mxu0 %v3333
  %v3719 = vpop.f32.mrb[0].mxu0
  %v3720 = vadd.f32 0.0, %v3719
  %v3721 = vpop.f32.mrb[0].mxu0
  %3722 = vmatprep.mubr.f32.mxu0 0.0
  %3723 = vmatmul.mubr.f32.gmra.mrb[0].mxu0 %v3334
  %v3724 = vpop.f32.mrb[0].mxu0
  %v3725 = vadd.f32 0.0, %v3724
  %v3726 = vpop.f32.mrb[0].mxu0
  %3727 = vmatprep.mubr.f32.mxu0 0.0
  %3728 = vmatmul.mubr.f32.gmra.mrb[0].mxu0 %v3335
  %v3729 = vpop.f32.mrb[0].mxu0
  %v3730 = vadd.f32 0.0, %v3729
  %v3731 = vpop.f32.mrb[0].mxu0
  %3732 = vmatprep.mubr.f32.mxu0 0.0
  %3733 = vmatmul.mubr.f32.gmra.mrb[0].mxu0 %v3336
  %v3734 = vpop.f32.mrb[0].mxu0
  %v3735 = vadd.f32 0.0, %v3734
  %v3736 = vpop.f32.mrb[0].mxu0
  %3737 = vmatprep.mubr.f32.mxu0 0.0
  %3738 = vmatmul.mubr.f32.gmra.mrb[0].mxu0 %v3337
  %v3739 = vpop.f32.mrb[0].mxu0
  %v3740 = vadd.f32 0.0, %v3739
  %v3741 = vpop.f32.mrb[0].mxu0
  %3742 = vmatprep.mubr.f32.mxu0 0.0
  %3743 = vmatmul.mubr.f32.gmra.mrb[0].mxu0 %v3338
  %v3744 = vpop.f32.mrb[0].mxu0
  %v3745 = vadd.f32 0.0, %v3744
  %v3746 = vpop.f32.mrb[0].mxu0
  %3747 = vmatprep.mubr.f32.mxu0 0.0
  %3748 = vmatmul.mubr.f32.gmra.mrb[0].mxu0 %v3339
  %v3749 = vpop.f32.mrb[0].mxu0
  %v3750 = vadd.f32 0.0, %v3749
  %v3751 = vpop.f32.mrb[0].mxu0
  %3752 = vmatprep.mubr.f32.mxu0 0.0
  %3753 = vmatmul.mubr.f32.gmra.mrb[0].mxu0 %v3340
  %v3754 = vpop.f32.mrb[0].mxu0
  %v3755 = vadd.f32 0.0, %v3754
  %v3756 = vpop.f32.mrb[0].mxu0
  %3757 = vmatprep.mubr.f32.mxu0 0.0
  %3758 = vmatmul.mubr.f32.gmra.mrb[0].mxu0 %v3341
  %v3759 = vpop.f32.mrb[0].mxu0
  %v3760 = vadd.f32 0.0, %v3759
  %v3761 = vpop.f32.mrb[0].mxu0
  %3762 = vmatprep.mubr.f32.mxu0 0.0
  %3763 = vmatmul.mubr.f32.gmra.mrb[0].mxu0 %v3342
  %v3764 = vpop.f32.mrb[0].mxu0
  %v3765 = vadd.f32 0.0, %v3764
  %v3766 = vpop.f32.mrb[0].mxu0
  %3767 = vmatprep.mubr.f32.mxu0 0.0
  %3768 = vmatmul.mubr.f32.gmra.mrb[0].mxu0 %v3343
  %v3769 = vpop.f32.mrb[0].mxu0
  %v3770 = vadd.f32 0.0, %v3769
  %v3771 = vpop.f32.mrb[0].mxu0
  %3772 = vmatprep.mubr.f32.mxu0 0.0
  %3773 = vmatmul.mubr.f32.gmra.mrb[0].mxu0 %v3344
  %v3774 = vpop.f32.mrb[0].mxu0
  %v3775 = vadd.f32 0.0, %v3774
  %v3776 = vpop.f32.mrb[0].mxu0
  %3777 = vdwg.mxu0
  %v3778 = vmul.f32 %v3460, %v1968
  %v3779 = vmul.f32 %v3465, %v1968
  %v3780 = vmul.f32 %v3470, %v1968
  %v3781 = vmul.f32 %v3475, %v1968
  %v3782 = vmul.f32 %v3480, %v1968
  %v3783 = vmul.f32 %v3485, %v1968
  %v3784 = vmul.f32 %v3490, %v1968
  %v3785 = vmul.f32 %v3495, %v1968
  %v3786 = vmul.f32 %v3500, %v1968
  %v3787 = vmul.f32 %v3505, %v1968
  %v3788 = vmul.f32 %v3510, %v1968
  %v3789 = vmul.f32 %v3515, %v1968
  %v3790 = vmul.f32 %v3520, %v1968
  %v3791 = vmul.f32 %v3525, %v1968
  %v3792 = vmul.f32 %v3530, %v1968
  %v3793 = vmul.f32 %v3535, %v1968
  %v3794 = vmul.f32 %v3540, %v1973
  %v3795 = vmul.f32 %v3545, %v1973
  %v3796 = vmul.f32 %v3550, %v1973
  %v3797 = vmul.f32 %v3555, %v1973
  %v3798 = vmul.f32 %v3560, %v1973
  %v3799 = vmul.f32 %v3565, %v1973
  %v3800 = vmul.f32 %v3570, %v1973
  %v3801 = vmul.f32 %v3575, %v1973
  %v3802 = vmul.f32 %v3580, %v1973
  %v3803 = vmul.f32 %v3585, %v1973
  %v3804 = vmul.f32 %v3590, %v1973
  %v3805 = vmul.f32 %v3595, %v1973
  %v3806 = vmul.f32 %v3600, %v1973
  %v3807 = vmul.f32 %v3605, %v1973
  %v3808 = vmul.f32 %v3610, %v1973
  %v3809 = vmul.f32 %v3615, %v1973
  %v3810 = vadd.f32 %v3778, %v3794
  %v3811 = vadd.f32 %v3779, %v3795
  %v3812 = vadd.f32 %v3780, %v3796
  %v3813 = vadd.f32 %v3781, %v3797
  %v3814 = vadd.f32 %v3782, %v3798
  %v3815 = vadd.f32 %v3783, %v3799
  %v3816 = vadd.f32 %v3784, %v3800
  %v3817 = vadd.f32 %v3785, %v3801
  %v3818 = vadd.f32 %v3786, %v3802
  %v3819 = vadd.f32 %v3787, %v3803
  %v3820 = vadd.f32 %v3788, %v3804
  %v3821 = vadd.f32 %v3789, %v3805
  %v3822 = vadd.f32 %v3790, %v3806
  %v3823 = vadd.f32 %v3791, %v3807
  %v3824 = vadd.f32 %v3792, %v3808
  %v3825 = vadd.f32 %v3793, %v3809
  %v3826 = vmul.f32 %v3620, %v1978
  %v3827 = vmul.f32 %v3625, %v1978
  %v3828 = vmul.f32 %v3630, %v1978
  %v3829 = vmul.f32 %v3635, %v1978
  %v3830 = vmul.f32 %v3640, %v1978
  %v3831 = vmul.f32 %v3645, %v1978
  %v3832 = vmul.f32 %v3650, %v1978
  %v3833 = vmul.f32 %v3655, %v1978
  %v3834 = vmul.f32 %v3660, %v1978
  %v3835 = vmul.f32 %v3665, %v1978
  %v3836 = vmul.f32 %v3670, %v1978
  %v3837 = vmul.f32 %v3675, %v1978
  %v3838 = vmul.f32 %v3680, %v1978
  %v3839 = vmul.f32 %v3685, %v1978
  %v3840 = vmul.f32 %v3690, %v1978
  %v3841 = vmul.f32 %v3695, %v1978
  %v3842 = vadd.f32 %v3810, %v3826
  %v3843 = vadd.f32 %v3811, %v3827
  %v3844 = vadd.f32 %v3812, %v3828
  %v3845 = vadd.f32 %v3813, %v3829
  %v3846 = vadd.f32 %v3814, %v3830
  %v3847 = vadd.f32 %v3815, %v3831
  %v3848 = vadd.f32 %v3816, %v3832
  %v3849 = vadd.f32 %v3817, %v3833
  %v3850 = vadd.f32 %v3818, %v3834
  %v3851 = vadd.f32 %v3819, %v3835
  %v3852 = vadd.f32 %v3820, %v3836
  %v3853 = vadd.f32 %v3821, %v3837
  %v3854 = vadd.f32 %v3822, %v3838
  %v3855 = vadd.f32 %v3823, %v3839
  %v3856 = vadd.f32 %v3824, %v3840
  %v3857 = vadd.f32 %v3825, %v3841
  %v3858 = vmul.f32 %v3700, %v1983
  %v3859 = vmul.f32 %v3705, %v1983
  %v3860 = vmul.f32 %v3710, %v1983
  %v3861 = vmul.f32 %v3715, %v1983
  %v3862 = vmul.f32 %v3720, %v1983
  %v3863 = vmul.f32 %v3725, %v1983
  %v3864 = vmul.f32 %v3730, %v1983
  %v3865 = vmul.f32 %v3735, %v1983
  %v3866 = vmul.f32 %v3740, %v1983
  %v3867 = vmul.f32 %v3745, %v1983
  %v3868 = vmul.f32 %v3750, %v1983
  %v3869 = vmul.f32 %v3755, %v1983
  %v3870 = vmul.f32 %v3760, %v1983
  %v3871 = vmul.f32 %v3765, %v1983
  %v3872 = vmul.f32 %v3770, %v1983
  %v3873 = vmul.f32 %v3775, %v1983
  %v3874 = vadd.f32 %v3842, %v3858
  %v3875 = vadd.f32 %v3843, %v3859
  %v3876 = vadd.f32 %v3844, %v3860
  %v3877 = vadd.f32 %v3845, %v3861
  %v3878 = vadd.f32 %v3846, %v3862
  %v3879 = vadd.f32 %v3847, %v3863
  %v3880 = vadd.f32 %v3848, %v3864
  %v3881 = vadd.f32 %v3849, %v3865
  %v3882 = vadd.f32 %v3850, %v3866
  %v3883 = vadd.f32 %v3851, %v3867
  %v3884 = vadd.f32 %v3852, %v3868
  %v3885 = vadd.f32 %v3853, %v3869
  %v3886 = vadd.f32 %v3854, %v3870
  %v3887 = vadd.f32 %v3855, %v3871
  %v3888 = vadd.f32 %v3856, %v3872
  %v3889 = vadd.f32 %v3857, %v3873
  %v3890 = vld [vmem:[%s8] sm:$0xff]
  %v3891 = vld [vmem:[%s8 + $0x8] sm:$0xff]
  %v3892 = vld [vmem:[%s8 + $0x10] sm:$0xff]
  %v3893 = vld [vmem:[%s8 + $0x18] sm:$0xff]
  %v3894 = vld [vmem:[%s9] sm:$0x1]
  %v3896 = vlaneseq
  %v3897 = vshrl.u32 %v3896, 7
  %v3898 = vsub.s32 0, %v3897
  %v3899 = vrot.slane %v3894, %v3898
  %v3902 = vsel %vm69, %v3874, 0
  %v3905 = vsel %vm69, %v3875, 0
  %v3908 = vsel %vm69, %v3876, 0
  %v3911 = vsel %vm69, %v3877, 0
  %v3914 = vsel %vm69, %v3878, 0
  %v3917 = vsel %vm69, %v3879, 0
  %v3920 = vsel %vm69, %v3880, 0
  %v3923 = vsel %vm69, %v3881, 0
  %v3926 = vsel %vm69, %v3882, 0
  %v3929 = vsel %vm69, %v3883, 0
  %v3932 = vsel %vm69, %v3884, 0
  %v3935 = vsel %vm69, %v3885, 0
  %v3938 = vsel %vm69, %v3886, 0
  %v3941 = vsel %vm69, %v3887, 0
  %v3944 = vsel %vm69, %v3888, 0
  %v3947 = vsel %vm69, %v3889, 0
  %3949 = vmatprep.subr.mxu0 0.0
  %3950 = vmatpush1.msra.mxu0 %v3890
  %3951 = vmatprep.subr.mxu0 0.0
  %3952 = vmatpush1.msra.mxu0 %v3891
  %3953 = vmatprep.subr.mxu0 0.0
  %3954 = vmatpush1.msra.mxu0 %v3892
  %3955 = vmatprep.subr.mxu0 0.0
  %3956 = vmatpush1.msra.mxu0 %v3893
  %3957 = vmatprep.subr.mxu0 0.0
  %3958 = vmatpush1.msra.mxu0 0.0
  %3959 = vmatprep.subr.mxu0 0.0
  %3960 = vmatpush1.msra.mxu0 0.0
  %3961 = vmatprep.subr.mxu0 0.0
  %3962 = vmatpush1.msra.mxu0 0.0
  %3963 = vmatprep.subr.mxu0 0.0
  %3964 = vmatpush1.msra.mxu0 0.0
  %3965 = vmatprep.subr.mxu0 0.0
  %3966 = vmatpush1.msra.mxu0 0.0
  %3967 = vmatprep.subr.mxu0 0.0
  %3968 = vmatpush1.msra.mxu0 0.0
  %3969 = vmatprep.subr.mxu0 0.0
  %3970 = vmatpush1.msra.mxu0 0.0
  %3971 = vmatprep.subr.mxu0 0.0
  %3972 = vmatpush1.msra.mxu0 0.0
  %3973 = vmatprep.subr.mxu0 0.0
  %3974 = vmatpush1.msra.mxu0 0.0
  %3975 = vmatprep.subr.mxu0 0.0
  %3976 = vmatpush1.msra.mxu0 0.0
  %3977 = vmatprep.subr.mxu0 0.0
  %3978 = vmatpush1.msra.mxu0 0.0
  %3979 = vmatprep.subr.mxu0 0.0
  %3980 = vmatpush1.msra.mxu0 0.0
  %3981 = vmatprep.subr.mxu0 0.0
  %3982 = vmatpush1.msra.mxu0 0.0
  %3983 = vmatprep.subr.mxu0 0.0
  %3984 = vmatpush1.msra.mxu0 0.0
  %3985 = vmatprep.subr.mxu0 0.0
  %3986 = vmatpush1.msra.mxu0 0.0
  %3987 = vmatprep.subr.mxu0 0.0
  %3988 = vmatpush1.msra.mxu0 0.0
  %3989 = vmatprep.subr.mxu0 0.0
  %3990 = vmatpush1.msra.mxu0 0.0
  %3991 = vmatprep.subr.mxu0 0.0
  %3992 = vmatpush1.msra.mxu0 0.0
  %3993 = vmatprep.subr.mxu0 0.0
  %3994 = vmatpush1.msra.mxu0 0.0
  %3995 = vmatprep.subr.mxu0 0.0
  %3996 = vmatpush1.msra.mxu0 0.0
  %3997 = vmatprep.subr.mxu0 0.0
  %3998 = vmatpush1.msra.mxu0 0.0
  %3999 = vmatprep.subr.mxu0 0.0
  %4000 = vmatpush1.msra.mxu0 0.0
  %4001 = vmatprep.subr.mxu0 0.0
  %4002 = vmatpush1.msra.mxu0 0.0
  %4003 = vmatprep.subr.mxu0 0.0
  %4004 = vmatpush1.msra.mxu0 0.0
  %4005 = vmatprep.subr.mxu0 0.0
  %4006 = vmatpush1.msra.mxu0 0.0
  %4007 = vmatprep.subr.mxu0 0.0
  %4008 = vmatpush1.msra.mxu0 0.0
  %4009 = vmatprep.subr.mxu0 0.0
  %4010 = vmatpush1.msra.mxu0 0.0
  %4011 = vmatprep.subr.mxu0 0.0
  %4012 = vmatpush1.msra.mxu0 0.0
  %4013 = vmatprep.mubr.f32.mxu0 0.0
  %4014 = vmatmul.mubr.f32.gmra.mrb[0].mxu0 %v3902
  %v4015 = vpop.f32.mrb[0].mxu0
  %v4016 = vadd.f32 %v3899, %v4015
  %v4017 = vpop.f32.mrb[0].mxu0
  %4018 = vmatprep.mubr.f32.mxu0 0.0
  %4019 = vmatmul.mubr.f32.gmra.mrb[0].mxu0 %v3905
  %v4020 = vpop.f32.mrb[0].mxu0
  %v4021 = vadd.f32 %v3899, %v4020
  %v4022 = vpop.f32.mrb[0].mxu0
  %4023 = vmatprep.mubr.f32.mxu0 0.0
  %4024 = vmatmul.mubr.f32.gmra.mrb[0].mxu0 %v3908
  %v4025 = vpop.f32.mrb[0].mxu0
  %v4026 = vadd.f32 %v3899, %v4025
  %v4027 = vpop.f32.mrb[0].mxu0
  %4028 = vmatprep.mubr.f32.mxu0 0.0
  %4029 = vmatmul.mubr.f32.gmra.mrb[0].mxu0 %v3911
  %v4030 = vpop.f32.mrb[0].mxu0
  %v4031 = vadd.f32 %v3899, %v4030
  %v4032 = vpop.f32.mrb[0].mxu0
  %4033 = vmatprep.mubr.f32.mxu0 0.0
  %4034 = vmatmul.mubr.f32.gmra.mrb[0].mxu0 %v3914
  %v4035 = vpop.f32.mrb[0].mxu0
  %v4036 = vadd.f32 %v3899, %v4035
  %v4037 = vpop.f32.mrb[0].mxu0
  %4038 = vmatprep.mubr.f32.mxu0 0.0
  %4039 = vmatmul.mubr.f32.gmra.mrb[0].mxu0 %v3917
  %v4040 = vpop.f32.mrb[0].mxu0
  %v4041 = vadd.f32 %v3899, %v4040
  %v4042 = vpop.f32.mrb[0].mxu0
  %4043 = vmatprep.mubr.f32.mxu0 0.0
  %4044 = vmatmul.mubr.f32.gmra.mrb[0].mxu0 %v3920
  %v4045 = vpop.f32.mrb[0].mxu0
  %v4046 = vadd.f32 %v3899, %v4045
  %v4047 = vpop.f32.mrb[0].mxu0
  %4048 = vmatprep.mubr.f32.mxu0 0.0
  %4049 = vmatmul.mubr.f32.gmra.mrb[0].mxu0 %v3923
  %v4050 = vpop.f32.mrb[0].mxu0
  %v4051 = vadd.f32 %v3899, %v4050
  %v4052 = vpop.f32.mrb[0].mxu0
  %4053 = vmatprep.mubr.f32.mxu0 0.0
  %4054 = vmatmul.mubr.f32.gmra.mrb[0].mxu0 %v3926
  %v4055 = vpop.f32.mrb[0].mxu0
  %v4056 = vadd.f32 %v3899, %v4055
  %v4057 = vpop.f32.mrb[0].mxu0
  %4058 = vmatprep.mubr.f32.mxu0 0.0
  %4059 = vmatmul.mubr.f32.gmra.mrb[0].mxu0 %v3929
  %v4060 = vpop.f32.mrb[0].mxu0
  %v4061 = vadd.f32 %v3899, %v4060
  %v4062 = vpop.f32.mrb[0].mxu0
  %4063 = vmatprep.mubr.f32.mxu0 0.0
  %4064 = vmatmul.mubr.f32.gmra.mrb[0].mxu0 %v3932
  %v4065 = vpop.f32.mrb[0].mxu0
  %v4066 = vadd.f32 %v3899, %v4065
  %v4067 = vpop.f32.mrb[0].mxu0
  %4068 = vmatprep.mubr.f32.mxu0 0.0
  %4069 = vmatmul.mubr.f32.gmra.mrb[0].mxu0 %v3935
  %v4070 = vpop.f32.mrb[0].mxu0
  %v4071 = vadd.f32 %v3899, %v4070
  %v4072 = vpop.f32.mrb[0].mxu0
  %4073 = vmatprep.mubr.f32.mxu0 0.0
  %4074 = vmatmul.mubr.f32.gmra.mrb[0].mxu0 %v3938
  %v4075 = vpop.f32.mrb[0].mxu0
  %v4076 = vadd.f32 %v3899, %v4075
  %v4077 = vpop.f32.mrb[0].mxu0
  %4078 = vmatprep.mubr.f32.mxu0 0.0
  %4079 = vmatmul.mubr.f32.gmra.mrb[0].mxu0 %v3941
  %v4080 = vpop.f32.mrb[0].mxu0
  %v4081 = vadd.f32 %v3899, %v4080
  %v4082 = vpop.f32.mrb[0].mxu0
  %4083 = vmatprep.mubr.f32.mxu0 0.0
  %4084 = vmatmul.mubr.f32.gmra.mrb[0].mxu0 %v3944
  %v4085 = vpop.f32.mrb[0].mxu0
  %v4086 = vadd.f32 %v3899, %v4085
  %v4087 = vpop.f32.mrb[0].mxu0
  %4088 = vmatprep.mubr.f32.mxu0 0.0
  %4089 = vmatmul.mubr.f32.gmra.mrb[0].mxu0 %v3947
  %v4090 = vpop.f32.mrb[0].mxu0
  %v4091 = vadd.f32 %v3899, %v4090
  %v4092 = vpop.f32.mrb[0].mxu0
  %4093 = vdwg.mxu0
  %v4094 = vld [vmem:[%s3] sm:$0xff]
  %v4095 = vld [vmem:[%s3 + $0x8] sm:$0xff]
  %v4096 = vld [vmem:[%s3 + $0x10] sm:$0xff]
  %v4097 = vld [vmem:[%s3 + $0x18] sm:$0xff]
  %v4098 = vld [vmem:[%s3 + $0x20] sm:$0xff]
  %v4099 = vld [vmem:[%s3 + $0x28] sm:$0xff]
  %v4100 = vld [vmem:[%s3 + $0x30] sm:$0xff]
  %v4101 = vld [vmem:[%s3 + $0x38] sm:$0xff]
  %v4102 = vld [vmem:[%s3 + $0x40] sm:$0xff]
  %v4103 = vld [vmem:[%s3 + $0x48] sm:$0xff]
  %v4104 = vld [vmem:[%s3 + $0x50] sm:$0xff]
  %v4105 = vld [vmem:[%s3 + $0x58] sm:$0xff]
  %v4106 = vld [vmem:[%s3 + $0x60] sm:$0xff]
  %v4107 = vld [vmem:[%s3 + $0x68] sm:$0xff]
  %v4108 = vld [vmem:[%s3 + $0x70] sm:$0xff]
  %v4109 = vld [vmem:[%s3 + $0x78] sm:$0xff]
  %4110 = vmatprep.subr.mxu0 0.0
  %4111 = vmatpush1.msra.mxu0 %v4016
  %4112 = vmatprep.subr.mxu0 0.0
  %4113 = vmatpush1.msra.mxu0 %v4021
  %4114 = vmatprep.subr.mxu0 0.0
  %4115 = vmatpush1.msra.mxu0 %v4026
  %4116 = vmatprep.subr.mxu0 0.0
  %4117 = vmatpush1.msra.mxu0 %v4031
  %4118 = vmatprep.subr.mxu0 0.0
  %4119 = vmatpush1.msra.mxu0 %v4036
  %4120 = vmatprep.subr.mxu0 0.0
  %4121 = vmatpush1.msra.mxu0 %v4041
  %4122 = vmatprep.subr.mxu0 0.0
  %4123 = vmatpush1.msra.mxu0 %v4046
  %4124 = vmatprep.subr.mxu0 0.0
  %4125 = vmatpush1.msra.mxu0 %v4051
  %4126 = vmatprep.subr.mxu0 0.0
  %4127 = vmatpush1.msra.mxu0 %v4056
  %4128 = vmatprep.subr.mxu0 0.0
  %4129 = vmatpush1.msra.mxu0 %v4061
  %4130 = vmatprep.subr.mxu0 0.0
  %4131 = vmatpush1.msra.mxu0 %v4066
  %4132 = vmatprep.subr.mxu0 0.0
  %4133 = vmatpush1.msra.mxu0 %v4071
  %4134 = vmatprep.subr.mxu0 0.0
  %4135 = vmatpush1.msra.mxu0 %v4076
  %4136 = vmatprep.subr.mxu0 0.0
  %4137 = vmatpush1.msra.mxu0 %v4081
  %4138 = vmatprep.subr.mxu0 0.0
  %4139 = vmatpush1.msra.mxu0 %v4086
  %4140 = vmatprep.subr.mxu0 0.0
  %4141 = vmatpush1.msra.mxu0 %v4091
  %4142 = vmatprep.subr.mxu0 0.0
  %4143 = vmatpush1.msra.mxu0 0.0
  %4144 = vmatprep.subr.mxu0 0.0
  %4145 = vmatpush1.msra.mxu0 0.0
  %4146 = vmatprep.subr.mxu0 0.0
  %4147 = vmatpush1.msra.mxu0 0.0
  %4148 = vmatprep.subr.mxu0 0.0
  %4149 = vmatpush1.msra.mxu0 0.0
  %4150 = vmatprep.subr.mxu0 0.0
  %4151 = vmatpush1.msra.mxu0 0.0
  %4152 = vmatprep.subr.mxu0 0.0
  %4153 = vmatpush1.msra.mxu0 0.0
  %4154 = vmatprep.subr.mxu0 0.0
  %4155 = vmatpush1.msra.mxu0 0.0
  %4156 = vmatprep.subr.mxu0 0.0
  %4157 = vmatpush1.msra.mxu0 0.0
  %4158 = vmatprep.subr.mxu0 0.0
  %4159 = vmatpush1.msra.mxu0 0.0
  %4160 = vmatprep.subr.mxu0 0.0
  %4161 = vmatpush1.msra.mxu0 0.0
  %4162 = vmatprep.subr.mxu0 0.0
  %4163 = vmatpush1.msra.mxu0 0.0
  %4164 = vmatprep.subr.mxu0 0.0
  %4165 = vmatpush1.msra.mxu0 0.0
  %4166 = vmatprep.subr.mxu0 0.0
  %4167 = vmatpush1.msra.mxu0 0.0
  %4168 = vmatprep.subr.mxu0 0.0
  %4169 = vmatpush1.msra.mxu0 0.0
  %4170 = vmatprep.subr.mxu0 0.0
  %4171 = vmatpush1.msra.mxu0 0.0
  %4172 = vmatprep.subr.mxu0 0.0
  %4173 = vmatpush1.msra.mxu0 0.0
  %4174 = vmatprep.mubr.f32.mxu0 0.0
  %4175 = vmatmul.mubr.f32.gmra.mrb[0].mxu0 %v4094
  %v4176 = vpop.f32.mrb[0].mxu0
  %v4177 = vadd.f32 0.0, %v4176
  %v4178 = vpop.f32.mrb[0].mxu0
  %4179 = vmatprep.mubr.f32.mxu0 0.0
  %4180 = vmatmul.mubr.f32.gmra.mrb[0].mxu0 %v4095
  %v4181 = vpop.f32.mrb[0].mxu0
  %v4182 = vadd.f32 0.0, %v4181
  %v4183 = vpop.f32.mrb[0].mxu0
  %4184 = vmatprep.mubr.f32.mxu0 0.0
  %4185 = vmatmul.mubr.f32.gmra.mrb[0].mxu0 %v4096
  %v4186 = vpop.f32.mrb[0].mxu0
  %v4187 = vadd.f32 0.0, %v4186
  %v4188 = vpop.f32.mrb[0].mxu0
  %4189 = vmatprep.mubr.f32.mxu0 0.0
  %4190 = vmatmul.mubr.f32.gmra.mrb[0].mxu0 %v4097
  %v4191 = vpop.f32.mrb[0].mxu0
  %v4192 = vadd.f32 0.0, %v4191
  %v4193 = vpop.f32.mrb[0].mxu0
  %4194 = vmatprep.mubr.f32.mxu0 0.0
  %4195 = vmatmul.mubr.f32.gmra.mrb[0].mxu0 %v4098
  %v4196 = vpop.f32.mrb[0].mxu0
  %v4197 = vadd.f32 0.0, %v4196
  %v4198 = vpop.f32.mrb[0].mxu0
  %4199 = vmatprep.mubr.f32.mxu0 0.0
  %4200 = vmatmul.mubr.f32.gmra.mrb[0].mxu0 %v4099
  %v4201 = vpop.f32.mrb[0].mxu0
  %v4202 = vadd.f32 0.0, %v4201
  %v4203 = vpop.f32.mrb[0].mxu0
  %4204 = vmatprep.mubr.f32.mxu0 0.0
  %4205 = vmatmul.mubr.f32.gmra.mrb[0].mxu0 %v4100
  %v4206 = vpop.f32.mrb[0].mxu0
  %v4207 = vadd.f32 0.0, %v4206
  %v4208 = vpop.f32.mrb[0].mxu0
  %4209 = vmatprep.mubr.f32.mxu0 0.0
  %4210 = vmatmul.mubr.f32.gmra.mrb[0].mxu0 %v4101
  %v4211 = vpop.f32.mrb[0].mxu0
  %v4212 = vadd.f32 0.0, %v4211
  %v4213 = vpop.f32.mrb[0].mxu0
  %4214 = vmatprep.mubr.f32.mxu0 0.0
  %4215 = vmatmul.mubr.f32.gmra.mrb[0].mxu0 %v4102
  %v4216 = vpop.f32.mrb[0].mxu0
  %v4217 = vadd.f32 0.0, %v4216
  %v4218 = vpop.f32.mrb[0].mxu0
  %4219 = vmatprep.mubr.f32.mxu0 0.0
  %4220 = vmatmul.mubr.f32.gmra.mrb[0].mxu0 %v4103
  %v4221 = vpop.f32.mrb[0].mxu0
  %v4222 = vadd.f32 0.0, %v4221
  %v4223 = vpop.f32.mrb[0].mxu0
  %4224 = vmatprep.mubr.f32.mxu0 0.0
  %4225 = vmatmul.mubr.f32.gmra.mrb[0].mxu0 %v4104
  %v4226 = vpop.f32.mrb[0].mxu0
  %v4227 = vadd.f32 0.0, %v4226
  %v4228 = vpop.f32.mrb[0].mxu0
  %4229 = vmatprep.mubr.f32.mxu0 0.0
  %4230 = vmatmul.mubr.f32.gmra.mrb[0].mxu0 %v4105
  %v4231 = vpop.f32.mrb[0].mxu0
  %v4232 = vadd.f32 0.0, %v4231
  %v4233 = vpop.f32.mrb[0].mxu0
  %4234 = vmatprep.mubr.f32.mxu0 0.0
  %4235 = vmatmul.mubr.f32.gmra.mrb[0].mxu0 %v4106
  %v4236 = vpop.f32.mrb[0].mxu0
  %v4237 = vadd.f32 0.0, %v4236
  %v4238 = vpop.f32.mrb[0].mxu0
  %4239 = vmatprep.mubr.f32.mxu0 0.0
  %4240 = vmatmul.mubr.f32.gmra.mrb[0].mxu0 %v4107
  %v4241 = vpop.f32.mrb[0].mxu0
  %v4242 = vadd.f32 0.0, %v4241
  %v4243 = vpop.f32.mrb[0].mxu0
  %4244 = vmatprep.mubr.f32.mxu0 0.0
  %4245 = vmatmul.mubr.f32.gmra.mrb[0].mxu0 %v4108
  %v4246 = vpop.f32.mrb[0].mxu0
  %v4247 = vadd.f32 0.0, %v4246
  %v4248 = vpop.f32.mrb[0].mxu0
  %4249 = vmatprep.mubr.f32.mxu0 0.0
  %4250 = vmatmul.mubr.f32.gmra.mrb[0].mxu0 %v4109
  %v4251 = vpop.f32.mrb[0].mxu0
  %v4252 = vadd.f32 0.0, %v4251
  %v4253 = vpop.f32.mrb[0].mxu0
  %4254 = vdwg.mxu0
  %v4255 = vadd.f32 %v53, %v4177
  %v4256 = vadd.f32 %v54, %v4182
  %v4257 = vadd.f32 %v55, %v4187
  %v4258 = vadd.f32 %v56, %v4192
  %v4259 = vadd.f32 %v57, %v4197
  %v4260 = vadd.f32 %v58, %v4202
  %v4261 = vadd.f32 %v59, %v4207
  %v4262 = vadd.f32 %v60, %v4212
  %v4263 = vadd.f32 %v61, %v4217
  %v4264 = vadd.f32 %v62, %v4222
  %v4265 = vadd.f32 %v63, %v4227
  %v4266 = vadd.f32 %v64, %v4232
  %v4267 = vadd.f32 %v65, %v4237
  %v4268 = vadd.f32 %v66, %v4242
  %v4269 = vadd.f32 %v67, %v4247
  %v4270 = vadd.f32 %v68, %v4252
  %v4271 = vsel %vm69, %v4255, 0.0
  %4272 = vadd.xlane.f32.xlu0 %v4271
  %v4273 = vpop.xlane.xlu0 %4272
  %v4274 = vsel %vm69, %v4256, 0.0
  %4275 = vadd.xlane.f32.xlu0 %v4274
  %v4276 = vpop.xlane.xlu0 %4275
  %v4277 = vsel %vm69, %v4257, 0.0
  %4278 = vadd.xlane.f32.xlu0 %v4277
  %v4279 = vpop.xlane.xlu0 %4278
  %v4280 = vsel %vm69, %v4258, 0.0
  %4281 = vadd.xlane.f32.xlu0 %v4280
  %v4282 = vpop.xlane.xlu0 %4281
  %v4283 = vsel %vm69, %v4259, 0.0
  %4284 = vadd.xlane.f32.xlu0 %v4283
  %v4285 = vpop.xlane.xlu0 %4284
  %v4286 = vsel %vm69, %v4260, 0.0
  %4287 = vadd.xlane.f32.xlu0 %v4286
  %v4288 = vpop.xlane.xlu0 %4287
  %v4289 = vsel %vm69, %v4261, 0.0
  %4290 = vadd.xlane.f32.xlu0 %v4289
  %v4291 = vpop.xlane.xlu0 %4290
  %v4292 = vsel %vm69, %v4262, 0.0
  %4293 = vadd.xlane.f32.xlu0 %v4292
  %v4294 = vpop.xlane.xlu0 %4293
  %v4295 = vsel %vm69, %v4263, 0.0
  %4296 = vadd.xlane.f32.xlu0 %v4295
  %v4297 = vpop.xlane.xlu0 %4296
  %v4298 = vsel %vm69, %v4264, 0.0
  %4299 = vadd.xlane.f32.xlu0 %v4298
  %v4300 = vpop.xlane.xlu0 %4299
  %v4301 = vsel %vm69, %v4265, 0.0
  %4302 = vadd.xlane.f32.xlu0 %v4301
  %v4303 = vpop.xlane.xlu0 %4302
  %v4304 = vsel %vm69, %v4266, 0.0
  %4305 = vadd.xlane.f32.xlu0 %v4304
  %v4306 = vpop.xlane.xlu0 %4305
  %v4307 = vsel %vm69, %v4267, 0.0
  %4308 = vadd.xlane.f32.xlu0 %v4307
  %v4309 = vpop.xlane.xlu0 %4308
  %v4310 = vsel %vm69, %v4268, 0.0
  %4311 = vadd.xlane.f32.xlu0 %v4310
  %v4312 = vpop.xlane.xlu0 %4311
  %v4313 = vsel %vm69, %v4269, 0.0
  %4314 = vadd.xlane.f32.xlu0 %v4313
  %v4315 = vpop.xlane.xlu0 %4314
  %v4316 = vsel %vm69, %v4270, 0.0
  %4317 = vadd.xlane.f32.xlu0 %v4316
  %v4318 = vpop.xlane.xlu0 %4317
  %v4319 = vmul.f32 %v4273, %v118
  %v4320 = vmul.f32 %v4276, %v118
  %v4321 = vmul.f32 %v4279, %v118
  %v4322 = vmul.f32 %v4282, %v118
  %v4323 = vmul.f32 %v4285, %v118
  %v4324 = vmul.f32 %v4288, %v118
  %v4325 = vmul.f32 %v4291, %v118
  %v4326 = vmul.f32 %v4294, %v118
  %v4327 = vmul.f32 %v4297, %v118
  %v4328 = vmul.f32 %v4300, %v118
  %v4329 = vmul.f32 %v4303, %v118
  %v4330 = vmul.f32 %v4306, %v118
  %v4331 = vmul.f32 %v4309, %v118
  %v4332 = vmul.f32 %v4312, %v118
  %v4333 = vmul.f32 %v4315, %v118
  %v4334 = vmul.f32 %v4318, %v118
  %v4335 = vmul.f32 %v4255, %v4255
  %v4336 = vmul.f32 %v4256, %v4256
  %v4337 = vmul.f32 %v4257, %v4257
  %v4338 = vmul.f32 %v4258, %v4258
  %v4339 = vmul.f32 %v4259, %v4259
  %v4340 = vmul.f32 %v4260, %v4260
  %v4341 = vmul.f32 %v4261, %v4261
  %v4342 = vmul.f32 %v4262, %v4262
  %v4343 = vmul.f32 %v4263, %v4263
  %v4344 = vmul.f32 %v4264, %v4264
  %v4345 = vmul.f32 %v4265, %v4265
  %v4346 = vmul.f32 %v4266, %v4266
  %v4347 = vmul.f32 %v4267, %v4267
  %v4348 = vmul.f32 %v4268, %v4268
  %v4349 = vmul.f32 %v4269, %v4269
  %v4350 = vmul.f32 %v4270, %v4270
  %v4351 = vsel %vm69, %v4335, 0.0
  %4352 = vadd.xlane.f32.xlu0 %v4351
  %v4353 = vpop.xlane.xlu0 %4352
  %v4354 = vsel %vm69, %v4336, 0.0
  %4355 = vadd.xlane.f32.xlu0 %v4354
  %v4356 = vpop.xlane.xlu0 %4355
  %v4357 = vsel %vm69, %v4337, 0.0
  %4358 = vadd.xlane.f32.xlu0 %v4357
  %v4359 = vpop.xlane.xlu0 %4358
  %v4360 = vsel %vm69, %v4338, 0.0
  %4361 = vadd.xlane.f32.xlu0 %v4360
  %v4362 = vpop.xlane.xlu0 %4361
  %v4363 = vsel %vm69, %v4339, 0.0
  %4364 = vadd.xlane.f32.xlu0 %v4363
  %v4365 = vpop.xlane.xlu0 %4364
  %v4366 = vsel %vm69, %v4340, 0.0
  %4367 = vadd.xlane.f32.xlu0 %v4366
  %v4368 = vpop.xlane.xlu0 %4367
  %v4369 = vsel %vm69, %v4341, 0.0
  %4370 = vadd.xlane.f32.xlu0 %v4369
  %v4371 = vpop.xlane.xlu0 %4370
  %v4372 = vsel %vm69, %v4342, 0.0
  %4373 = vadd.xlane.f32.xlu0 %v4372
  %v4374 = vpop.xlane.xlu0 %4373
  %v4375 = vsel %vm69, %v4343, 0.0
  %4376 = vadd.xlane.f32.xlu0 %v4375
  %v4377 = vpop.xlane.xlu0 %4376
  %v4378 = vsel %vm69, %v4344, 0.0
  %4379 = vadd.xlane.f32.xlu0 %v4378
  %v4380 = vpop.xlane.xlu0 %4379
  %v4381 = vsel %vm69, %v4345, 0.0
  %4382 = vadd.xlane.f32.xlu0 %v4381
  %v4383 = vpop.xlane.xlu0 %4382
  %v4384 = vsel %vm69, %v4346, 0.0
  %4385 = vadd.xlane.f32.xlu0 %v4384
  %v4386 = vpop.xlane.xlu0 %4385
  %v4387 = vsel %vm69, %v4347, 0.0
  %4388 = vadd.xlane.f32.xlu0 %v4387
  %v4389 = vpop.xlane.xlu0 %4388
  %v4390 = vsel %vm69, %v4348, 0.0
  %4391 = vadd.xlane.f32.xlu0 %v4390
  %v4392 = vpop.xlane.xlu0 %4391
  %v4393 = vsel %vm69, %v4349, 0.0
  %4394 = vadd.xlane.f32.xlu0 %v4393
  %v4395 = vpop.xlane.xlu0 %4394
  %v4396 = vsel %vm69, %v4350, 0.0
  %4397 = vadd.xlane.f32.xlu0 %v4396
  %v4398 = vpop.xlane.xlu0 %4397
  %v4399 = vmul.f32 %v4353, %v118
  %v4400 = vmul.f32 %v4356, %v118
  %v4401 = vmul.f32 %v4359, %v118
  %v4402 = vmul.f32 %v4362, %v118
  %v4403 = vmul.f32 %v4365, %v118
  %v4404 = vmul.f32 %v4368, %v118
  %v4405 = vmul.f32 %v4371, %v118
  %v4406 = vmul.f32 %v4374, %v118
  %v4407 = vmul.f32 %v4377, %v118
  %v4408 = vmul.f32 %v4380, %v118
  %v4409 = vmul.f32 %v4383, %v118
  %v4410 = vmul.f32 %v4386, %v118
  %v4411 = vmul.f32 %v4389, %v118
  %v4412 = vmul.f32 %v4392, %v118
  %v4413 = vmul.f32 %v4395, %v118
  %v4414 = vmul.f32 %v4398, %v118
  %v4415 = vmul.f32 %v4319, %v4319
  %v4416 = vmul.f32 %v4320, %v4320
  %v4417 = vmul.f32 %v4321, %v4321
  %v4418 = vmul.f32 %v4322, %v4322
  %v4419 = vmul.f32 %v4323, %v4323
  %v4420 = vmul.f32 %v4324, %v4324
  %v4421 = vmul.f32 %v4325, %v4325
  %v4422 = vmul.f32 %v4326, %v4326
  %v4423 = vmul.f32 %v4327, %v4327
  %v4424 = vmul.f32 %v4328, %v4328
  %v4425 = vmul.f32 %v4329, %v4329
  %v4426 = vmul.f32 %v4330, %v4330
  %v4427 = vmul.f32 %v4331, %v4331
  %v4428 = vmul.f32 %v4332, %v4332
  %v4429 = vmul.f32 %v4333, %v4333
  %v4430 = vmul.f32 %v4334, %v4334
  %v4431 = vsub.f32 %v4399, %v4415
  %v4432 = vsub.f32 %v4400, %v4416
  %v4433 = vsub.f32 %v4401, %v4417
  %v4434 = vsub.f32 %v4402, %v4418
  %v4435 = vsub.f32 %v4403, %v4419
  %v4436 = vsub.f32 %v4404, %v4420
  %v4437 = vsub.f32 %v4405, %v4421
  %v4438 = vsub.f32 %v4406, %v4422
  %v4439 = vsub.f32 %v4407, %v4423
  %v4440 = vsub.f32 %v4408, %v4424
  %v4441 = vsub.f32 %v4409, %v4425
  %v4442 = vsub.f32 %v4410, %v4426
  %v4443 = vsub.f32 %v4411, %v4427
  %v4444 = vsub.f32 %v4412, %v4428
  %v4445 = vsub.f32 %v4413, %v4429
  %v4446 = vsub.f32 %v4414, %v4430
  %v4447 = vsub.f32 %v4255, %v4319
  %v4448 = vsub.f32 %v4256, %v4320
  %v4449 = vsub.f32 %v4257, %v4321
  %v4450 = vsub.f32 %v4258, %v4322
  %v4451 = vsub.f32 %v4259, %v4323
  %v4452 = vsub.f32 %v4260, %v4324
  %v4453 = vsub.f32 %v4261, %v4325
  %v4454 = vsub.f32 %v4262, %v4326
  %v4455 = vsub.f32 %v4263, %v4327
  %v4456 = vsub.f32 %v4264, %v4328
  %v4457 = vsub.f32 %v4265, %v4329
  %v4458 = vsub.f32 %v4266, %v4330
  %v4459 = vsub.f32 %v4267, %v4331
  %v4460 = vsub.f32 %v4268, %v4332
  %v4461 = vsub.f32 %v4269, %v4333
  %v4462 = vsub.f32 %v4270, %v4334
  %v4463 = vadd.f32 %v4431, 1e-05
  %v4464 = vadd.f32 %v4432, 1e-05
  %v4465 = vadd.f32 %v4433, 1e-05
  %v4466 = vadd.f32 %v4434, 1e-05
  %v4467 = vadd.f32 %v4435, 1e-05
  %v4468 = vadd.f32 %v4436, 1e-05
  %v4469 = vadd.f32 %v4437, 1e-05
  %v4470 = vadd.f32 %v4438, 1e-05
  %v4471 = vadd.f32 %v4439, 1e-05
  %v4472 = vadd.f32 %v4440, 1e-05
  %v4473 = vadd.f32 %v4441, 1e-05
  %v4474 = vadd.f32 %v4442, 1e-05
  %v4475 = vadd.f32 %v4443, 1e-05
  %v4476 = vadd.f32 %v4444, 1e-05
  %v4477 = vadd.f32 %v4445, 1e-05
  %v4478 = vadd.f32 %v4446, 1e-05
  %v4479 = vrsqrt.pop %v4463
  %v4480 = vrsqrt.pop %v4464
  %v4481 = vrsqrt.pop %v4465
  %v4482 = vrsqrt.pop %v4466
  %v4483 = vrsqrt.pop %v4467
  %v4484 = vrsqrt.pop %v4468
  %v4485 = vrsqrt.pop %v4469
  %v4486 = vrsqrt.pop %v4470
  %v4487 = vrsqrt.pop %v4471
  %v4488 = vrsqrt.pop %v4472
  %v4489 = vrsqrt.pop %v4473
  %v4490 = vrsqrt.pop %v4474
  %v4491 = vrsqrt.pop %v4475
  %v4492 = vrsqrt.pop %v4476
  %v4493 = vrsqrt.pop %v4477
  %v4494 = vrsqrt.pop %v4478
  %v4495 = vmul.f32 %v4447, %v4479
  %v4496 = vmul.f32 %v4448, %v4480
  %v4497 = vmul.f32 %v4449, %v4481
  %v4498 = vmul.f32 %v4450, %v4482
  %v4499 = vmul.f32 %v4451, %v4483
  %v4500 = vmul.f32 %v4452, %v4484
  %v4501 = vmul.f32 %v4453, %v4485
  %v4502 = vmul.f32 %v4454, %v4486
  %v4503 = vmul.f32 %v4455, %v4487
  %v4504 = vmul.f32 %v4456, %v4488
  %v4505 = vmul.f32 %v4457, %v4489
  %v4506 = vmul.f32 %v4458, %v4490
  %v4507 = vmul.f32 %v4459, %v4491
  %v4508 = vmul.f32 %v4460, %v4492
  %v4509 = vmul.f32 %v4461, %v4493
  %v4510 = vmul.f32 %v4462, %v4494
  %v4511 = vld [vmem:[%s10] sm:$0x1]
  %v4513 = vlaneseq
  %v4514 = vshrl.u32 %v4513, 7
  %v4515 = vsub.s32 0, %v4514
  %v4516 = vrot.slane %v4511, %v4515
  %v4518 = vmul.f32 %v4495, %v4516
  %v4519 = vmul.f32 %v4496, %v4516
  %v4520 = vmul.f32 %v4497, %v4516
  %v4521 = vmul.f32 %v4498, %v4516
  %v4522 = vmul.f32 %v4499, %v4516
  %v4523 = vmul.f32 %v4500, %v4516
  %v4524 = vmul.f32 %v4501, %v4516
  %v4525 = vmul.f32 %v4502, %v4516
  %v4526 = vmul.f32 %v4503, %v4516
  %v4527 = vmul.f32 %v4504, %v4516
  %v4528 = vmul.f32 %v4505, %v4516
  %v4529 = vmul.f32 %v4506, %v4516
  %v4530 = vmul.f32 %v4507, %v4516
  %v4531 = vmul.f32 %v4508, %v4516
  %v4532 = vmul.f32 %v4509, %v4516
  %v4533 = vmul.f32 %v4510, %v4516
  %v4534 = vld [vmem:[%s11] sm:$0x1]
  %v4536 = vlaneseq
  %v4537 = vshrl.u32 %v4536, 7
  %v4538 = vsub.s32 0, %v4537
  %v4539 = vrot.slane %v4534, %v4538
  %v4541 = vadd.f32 %v4518, %v4539
  %v4542 = vadd.f32 %v4519, %v4539
  %v4543 = vadd.f32 %v4520, %v4539
  %v4544 = vadd.f32 %v4521, %v4539
  %v4545 = vadd.f32 %v4522, %v4539
  %v4546 = vadd.f32 %v4523, %v4539
  %v4547 = vadd.f32 %v4524, %v4539
  %v4548 = vadd.f32 %v4525, %v4539
  %v4549 = vadd.f32 %v4526, %v4539
  %v4550 = vadd.f32 %v4527, %v4539
  %v4551 = vadd.f32 %v4528, %v4539
  %v4552 = vadd.f32 %v4529, %v4539
  %v4553 = vadd.f32 %v4530, %v4539
  %v4554 = vadd.f32 %v4531, %v4539
  %v4555 = vadd.f32 %v4532, %v4539
  %v4556 = vadd.f32 %v4533, %v4539
  %v4557 = vld [vmem:[%s12] sm:$0xff]
  %v4558 = vld [vmem:[%s12 + $0x8] sm:$0xff]
  %v4559 = vld [vmem:[%s12 + $0x10] sm:$0xff]
  %v4560 = vld [vmem:[%s12 + $0x18] sm:$0xff]
  %v4561 = vld [vmem:[%s13] sm:$0x1]
  %v4563 = vlaneseq
  %v4564 = vshrl.u32 %v4563, 7
  %v4565 = vsub.s32 0, %v4564
  %v4566 = vrot.slane %v4561, %v4565
  %v4569 = vsel %vm69, %v4541, 0
  %v4572 = vsel %vm69, %v4542, 0
  %v4575 = vsel %vm69, %v4543, 0
  %v4578 = vsel %vm69, %v4544, 0
  %v4581 = vsel %vm69, %v4545, 0
  %v4584 = vsel %vm69, %v4546, 0
  %v4587 = vsel %vm69, %v4547, 0
  %v4590 = vsel %vm69, %v4548, 0
  %v4593 = vsel %vm69, %v4549, 0
  %v4596 = vsel %vm69, %v4550, 0
  %v4599 = vsel %vm69, %v4551, 0
  %v4602 = vsel %vm69, %v4552, 0
  %v4605 = vsel %vm69, %v4553, 0
  %v4608 = vsel %vm69, %v4554, 0
  %v4611 = vsel %vm69, %v4555, 0
  %v4614 = vsel %vm69, %v4556, 0
  %4616 = vmatprep.subr.mxu0 0.0
  %4617 = vmatpush1.msra.mxu0 %v4557
  %4618 = vmatprep.subr.mxu0 0.0
  %4619 = vmatpush1.msra.mxu0 %v4558
  %4620 = vmatprep.subr.mxu0 0.0
  %4621 = vmatpush1.msra.mxu0 %v4559
  %4622 = vmatprep.subr.mxu0 0.0
  %4623 = vmatpush1.msra.mxu0 %v4560
  %4624 = vmatprep.subr.mxu0 0.0
  %4625 = vmatpush1.msra.mxu0 0.0
  %4626 = vmatprep.subr.mxu0 0.0
  %4627 = vmatpush1.msra.mxu0 0.0
  %4628 = vmatprep.subr.mxu0 0.0
  %4629 = vmatpush1.msra.mxu0 0.0
  %4630 = vmatprep.subr.mxu0 0.0
  %4631 = vmatpush1.msra.mxu0 0.0
  %4632 = vmatprep.subr.mxu0 0.0
  %4633 = vmatpush1.msra.mxu0 0.0
  %4634 = vmatprep.subr.mxu0 0.0
  %4635 = vmatpush1.msra.mxu0 0.0
  %4636 = vmatprep.subr.mxu0 0.0
  %4637 = vmatpush1.msra.mxu0 0.0
  %4638 = vmatprep.subr.mxu0 0.0
  %4639 = vmatpush1.msra.mxu0 0.0
  %4640 = vmatprep.subr.mxu0 0.0
  %4641 = vmatpush1.msra.mxu0 0.0
  %4642 = vmatprep.subr.mxu0 0.0
  %4643 = vmatpush1.msra.mxu0 0.0
  %4644 = vmatprep.subr.mxu0 0.0
  %4645 = vmatpush1.msra.mxu0 0.0
  %4646 = vmatprep.subr.mxu0 0.0
  %4647 = vmatpush1.msra.mxu0 0.0
  %4648 = vmatprep.subr.mxu0 0.0
  %4649 = vmatpush1.msra.mxu0 0.0
  %4650 = vmatprep.subr.mxu0 0.0
  %4651 = vmatpush1.msra.mxu0 0.0
  %4652 = vmatprep.subr.mxu0 0.0
  %4653 = vmatpush1.msra.mxu0 0.0
  %4654 = vmatprep.subr.mxu0 0.0
  %4655 = vmatpush1.msra.mxu0 0.0
  %4656 = vmatprep.subr.mxu0 0.0
  %4657 = vmatpush1.msra.mxu0 0.0
  %4658 = vmatprep.subr.mxu0 0.0
  %4659 = vmatpush1.msra.mxu0 0.0
  %4660 = vmatprep.subr.mxu0 0.0
  %4661 = vmatpush1.msra.mxu0 0.0
  %4662 = vmatprep.subr.mxu0 0.0
  %4663 = vmatpush1.msra.mxu0 0.0
  %4664 = vmatprep.subr.mxu0 0.0
  %4665 = vmatpush1.msra.mxu0 0.0
  %4666 = vmatprep.subr.mxu0 0.0
  %4667 = vmatpush1.msra.mxu0 0.0
  %4668 = vmatprep.subr.mxu0 0.0
  %4669 = vmatpush1.msra.mxu0 0.0
  %4670 = vmatprep.subr.mxu0 0.0
  %4671 = vmatpush1.msra.mxu0 0.0
  %4672 = vmatprep.subr.mxu0 0.0
  %4673 = vmatpush1.msra.mxu0 0.0
  %4674 = vmatprep.subr.mxu0 0.0
  %4675 = vmatpush1.msra.mxu0 0.0
  %4676 = vmatprep.subr.mxu0 0.0
  %4677 = vmatpush1.msra.mxu0 0.0
  %4678 = vmatprep.subr.mxu0 0.0
  %4679 = vmatpush1.msra.mxu0 0.0
  %4680 = vmatprep.mubr.f32.mxu0 0.0
  %4681 = vmatmul.mubr.f32.gmra.mrb[0].mxu0 %v4569
  %v4682 = vpop.f32.mrb[0].mxu0
  %v4683 = vadd.f32 %v4566, %v4682
  %v4684 = vpop.f32.mrb[0].mxu0
  %4685 = vmatprep.mubr.f32.mxu0 0.0
  %4686 = vmatmul.mubr.f32.gmra.mrb[0].mxu0 %v4572
  %v4687 = vpop.f32.mrb[0].mxu0
  %v4688 = vadd.f32 %v4566, %v4687
  %v4689 = vpop.f32.mrb[0].mxu0
  %4690 = vmatprep.mubr.f32.mxu0 0.0
  %4691 = vmatmul.mubr.f32.gmra.mrb[0].mxu0 %v4575
  %v4692 = vpop.f32.mrb[0].mxu0
  %v4693 = vadd.f32 %v4566, %v4692
  %v4694 = vpop.f32.mrb[0].mxu0
  %4695 = vmatprep.mubr.f32.mxu0 0.0
  %4696 = vmatmul.mubr.f32.gmra.mrb[0].mxu0 %v4578
  %v4697 = vpop.f32.mrb[0].mxu0
  %v4698 = vadd.f32 %v4566, %v4697
  %v4699 = vpop.f32.mrb[0].mxu0
  %4700 = vmatprep.mubr.f32.mxu0 0.0
  %4701 = vmatmul.mubr.f32.gmra.mrb[0].mxu0 %v4581
  %v4702 = vpop.f32.mrb[0].mxu0
  %v4703 = vadd.f32 %v4566, %v4702
  %v4704 = vpop.f32.mrb[0].mxu0
  %4705 = vmatprep.mubr.f32.mxu0 0.0
  %4706 = vmatmul.mubr.f32.gmra.mrb[0].mxu0 %v4584
  %v4707 = vpop.f32.mrb[0].mxu0
  %v4708 = vadd.f32 %v4566, %v4707
  %v4709 = vpop.f32.mrb[0].mxu0
  %4710 = vmatprep.mubr.f32.mxu0 0.0
  %4711 = vmatmul.mubr.f32.gmra.mrb[0].mxu0 %v4587
  %v4712 = vpop.f32.mrb[0].mxu0
  %v4713 = vadd.f32 %v4566, %v4712
  %v4714 = vpop.f32.mrb[0].mxu0
  %4715 = vmatprep.mubr.f32.mxu0 0.0
  %4716 = vmatmul.mubr.f32.gmra.mrb[0].mxu0 %v4590
  %v4717 = vpop.f32.mrb[0].mxu0
  %v4718 = vadd.f32 %v4566, %v4717
  %v4719 = vpop.f32.mrb[0].mxu0
  %4720 = vmatprep.mubr.f32.mxu0 0.0
  %4721 = vmatmul.mubr.f32.gmra.mrb[0].mxu0 %v4593
  %v4722 = vpop.f32.mrb[0].mxu0
  %v4723 = vadd.f32 %v4566, %v4722
  %v4724 = vpop.f32.mrb[0].mxu0
  %4725 = vmatprep.mubr.f32.mxu0 0.0
  %4726 = vmatmul.mubr.f32.gmra.mrb[0].mxu0 %v4596
  %v4727 = vpop.f32.mrb[0].mxu0
  %v4728 = vadd.f32 %v4566, %v4727
  %v4729 = vpop.f32.mrb[0].mxu0
  %4730 = vmatprep.mubr.f32.mxu0 0.0
  %4731 = vmatmul.mubr.f32.gmra.mrb[0].mxu0 %v4599
  %v4732 = vpop.f32.mrb[0].mxu0
  %v4733 = vadd.f32 %v4566, %v4732
  %v4734 = vpop.f32.mrb[0].mxu0
  %4735 = vmatprep.mubr.f32.mxu0 0.0
  %4736 = vmatmul.mubr.f32.gmra.mrb[0].mxu0 %v4602
  %v4737 = vpop.f32.mrb[0].mxu0
  %v4738 = vadd.f32 %v4566, %v4737
  %v4739 = vpop.f32.mrb[0].mxu0
  %4740 = vmatprep.mubr.f32.mxu0 0.0
  %4741 = vmatmul.mubr.f32.gmra.mrb[0].mxu0 %v4605
  %v4742 = vpop.f32.mrb[0].mxu0
  %v4743 = vadd.f32 %v4566, %v4742
  %v4744 = vpop.f32.mrb[0].mxu0
  %4745 = vmatprep.mubr.f32.mxu0 0.0
  %4746 = vmatmul.mubr.f32.gmra.mrb[0].mxu0 %v4608
  %v4747 = vpop.f32.mrb[0].mxu0
  %v4748 = vadd.f32 %v4566, %v4747
  %v4749 = vpop.f32.mrb[0].mxu0
  %4750 = vmatprep.mubr.f32.mxu0 0.0
  %4751 = vmatmul.mubr.f32.gmra.mrb[0].mxu0 %v4611
  %v4752 = vpop.f32.mrb[0].mxu0
  %v4753 = vadd.f32 %v4566, %v4752
  %v4754 = vpop.f32.mrb[0].mxu0
  %4755 = vmatprep.mubr.f32.mxu0 0.0
  %4756 = vmatmul.mubr.f32.gmra.mrb[0].mxu0 %v4614
  %v4757 = vpop.f32.mrb[0].mxu0
  %v4758 = vadd.f32 %v4566, %v4757
  %v4759 = vpop.f32.mrb[0].mxu0
  %4760 = vdwg.mxu0
  %v4761 = vmul.f32 %v4683, 0.5
  %v4762 = vmul.f32 %v4688, 0.5
  %v4763 = vmul.f32 %v4693, 0.5
  %v4764 = vmul.f32 %v4698, 0.5
  %v4765 = vmul.f32 %v4703, 0.5
  %v4766 = vmul.f32 %v4708, 0.5
  %v4767 = vmul.f32 %v4713, 0.5
  %v4768 = vmul.f32 %v4718, 0.5
  %v4769 = vmul.f32 %v4723, 0.5
  %v4770 = vmul.f32 %v4728, 0.5
  %v4771 = vmul.f32 %v4733, 0.5
  %v4772 = vmul.f32 %v4738, 0.5
  %v4773 = vmul.f32 %v4743, 0.5
  %v4774 = vmul.f32 %v4748, 0.5
  %v4775 = vmul.f32 %v4753, 0.5
  %v4776 = vmul.f32 %v4758, 0.5
  %v4777 = vmul.f32 %v4683, 0.70710677
  %v4778 = vmul.f32 %v4688, 0.70710677
  %v4779 = vmul.f32 %v4693, 0.70710677
  %v4780 = vmul.f32 %v4698, 0.70710677
  %v4781 = vmul.f32 %v4703, 0.70710677
  %v4782 = vmul.f32 %v4708, 0.70710677
  %v4783 = vmul.f32 %v4713, 0.70710677
  %v4784 = vmul.f32 %v4718, 0.70710677
  %v4785 = vmul.f32 %v4723, 0.70710677
  %v4786 = vmul.f32 %v4728, 0.70710677
  %v4787 = vmul.f32 %v4733, 0.70710677
  %v4788 = vmul.f32 %v4738, 0.70710677
  %v4789 = vmul.f32 %v4743, 0.70710677
  %v4790 = vmul.f32 %v4748, 0.70710677
  %v4791 = vmul.f32 %v4753, 0.70710677
  %v4792 = vmul.f32 %v4758, 0.70710677
  %vm4793 = vcmp.lt.f32.partialorder %v4777, 0.0
  %vm4794 = vcmp.lt.f32.partialorder %v4778, 0.0
  %vm4795 = vcmp.lt.f32.partialorder %v4779, 0.0
  %vm4796 = vcmp.lt.f32.partialorder %v4780, 0.0
  %vm4797 = vcmp.lt.f32.partialorder %v4781, 0.0
  %vm4798 = vcmp.lt.f32.partialorder %v4782, 0.0
  %vm4799 = vcmp.lt.f32.partialorder %v4783, 0.0
  %vm4800 = vcmp.lt.f32.partialorder %v4784, 0.0
  %vm4801 = vcmp.lt.f32.partialorder %v4785, 0.0
  %vm4802 = vcmp.lt.f32.partialorder %v4786, 0.0
  %vm4803 = vcmp.lt.f32.partialorder %v4787, 0.0
  %vm4804 = vcmp.lt.f32.partialorder %v4788, 0.0
  %vm4805 = vcmp.lt.f32.partialorder %v4789, 0.0
  %vm4806 = vcmp.lt.f32.partialorder %v4790, 0.0
  %vm4807 = vcmp.lt.f32.partialorder %v4791, 0.0
  %vm4808 = vcmp.lt.f32.partialorder %v4792, 0.0
  %v4809 = vsel %vm4793, -1.0, 1.0
  %v4810 = vsel %vm4794, -1.0, 1.0
  %v4811 = vsel %vm4795, -1.0, 1.0
  %v4812 = vsel %vm4796, -1.0, 1.0
  %v4813 = vsel %vm4797, -1.0, 1.0
  %v4814 = vsel %vm4798, -1.0, 1.0
  %v4815 = vsel %vm4799, -1.0, 1.0
  %v4816 = vsel %vm4800, -1.0, 1.0
  %v4817 = vsel %vm4801, -1.0, 1.0
  %v4818 = vsel %vm4802, -1.0, 1.0
  %v4819 = vsel %vm4803, -1.0, 1.0
  %v4820 = vsel %vm4804, -1.0, 1.0
  %v4821 = vsel %vm4805, -1.0, 1.0
  %v4822 = vsel %vm4806, -1.0, 1.0
  %v4823 = vsel %vm4807, -1.0, 1.0
  %v4824 = vsel %vm4808, -1.0, 1.0
  %v4825 = vand.u32 2147483647, %v4777
  %v4826 = vand.u32 2147483647, %v4778
  %v4827 = vand.u32 2147483647, %v4779
  %v4828 = vand.u32 2147483647, %v4780
  %v4829 = vand.u32 2147483647, %v4781
  %v4830 = vand.u32 2147483647, %v4782
  %v4831 = vand.u32 2147483647, %v4783
  %v4832 = vand.u32 2147483647, %v4784
  %v4833 = vand.u32 2147483647, %v4785
  %v4834 = vand.u32 2147483647, %v4786
  %v4835 = vand.u32 2147483647, %v4787
  %v4836 = vand.u32 2147483647, %v4788
  %v4837 = vand.u32 2147483647, %v4789
  %v4838 = vand.u32 2147483647, %v4790
  %v4839 = vand.u32 2147483647, %v4791
  %v4840 = vand.u32 2147483647, %v4792
  %v4841 = vmul.f32 %v4825, 0.3275911
  %v4842 = vmul.f32 %v4826, 0.3275911
  %v4843 = vmul.f32 %v4827, 0.3275911
  %v4844 = vmul.f32 %v4828, 0.3275911
  %v4845 = vmul.f32 %v4829, 0.3275911
  %v4846 = vmul.f32 %v4830, 0.3275911
  %v4847 = vmul.f32 %v4831, 0.3275911
  %v4848 = vmul.f32 %v4832, 0.3275911
  %v4849 = vmul.f32 %v4833, 0.3275911
  %v4850 = vmul.f32 %v4834, 0.3275911
  %v4851 = vmul.f32 %v4835, 0.3275911
  %v4852 = vmul.f32 %v4836, 0.3275911
  %v4853 = vmul.f32 %v4837, 0.3275911
  %v4854 = vmul.f32 %v4838, 0.3275911
  %v4855 = vmul.f32 %v4839, 0.3275911
  %v4856 = vmul.f32 %v4840, 0.3275911
  %v4857 = vadd.f32 %v4841, 1.0
  %v4858 = vadd.f32 %v4842, 1.0
  %v4859 = vadd.f32 %v4843, 1.0
  %v4860 = vadd.f32 %v4844, 1.0
  %v4861 = vadd.f32 %v4845, 1.0
  %v4862 = vadd.f32 %v4846, 1.0
  %v4863 = vadd.f32 %v4847, 1.0
  %v4864 = vadd.f32 %v4848, 1.0
  %v4865 = vadd.f32 %v4849, 1.0
  %v4866 = vadd.f32 %v4850, 1.0
  %v4867 = vadd.f32 %v4851, 1.0
  %v4868 = vadd.f32 %v4852, 1.0
  %v4869 = vadd.f32 %v4853, 1.0
  %v4870 = vadd.f32 %v4854, 1.0
  %v4871 = vadd.f32 %v4855, 1.0
  %v4872 = vadd.f32 %v4856, 1.0
  %v4873 = vrcp.pop %v4857
  %v4874 = vmul.f32 1.0, %v4873
  %v4875 = vrcp.pop %v4858
  %v4876 = vmul.f32 1.0, %v4875
  %v4877 = vrcp.pop %v4859
  %v4878 = vmul.f32 1.0, %v4877
  %v4879 = vrcp.pop %v4860
  %v4880 = vmul.f32 1.0, %v4879
  %v4881 = vrcp.pop %v4861
  %v4882 = vmul.f32 1.0, %v4881
  %v4883 = vrcp.pop %v4862
  %v4884 = vmul.f32 1.0, %v4883
  %v4885 = vrcp.pop %v4863
  %v4886 = vmul.f32 1.0, %v4885
  %v4887 = vrcp.pop %v4864
  %v4888 = vmul.f32 1.0, %v4887
  %v4889 = vrcp.pop %v4865
  %v4890 = vmul.f32 1.0, %v4889
  %v4891 = vrcp.pop %v4866
  %v4892 = vmul.f32 1.0, %v4891
  %v4893 = vrcp.pop %v4867
  %v4894 = vmul.f32 1.0, %v4893
  %v4895 = vrcp.pop %v4868
  %v4896 = vmul.f32 1.0, %v4895
  %v4897 = vrcp.pop %v4869
  %v4898 = vmul.f32 1.0, %v4897
  %v4899 = vrcp.pop %v4870
  %v4900 = vmul.f32 1.0, %v4899
  %v4901 = vrcp.pop %v4871
  %v4902 = vmul.f32 1.0, %v4901
  %v4903 = vrcp.pop %v4872
  %v4904 = vmul.f32 1.0, %v4903
  %v4905 = vmul.f32 %v4874, 1.0614054
  %v4906 = vmul.f32 %v4876, 1.0614054
  %v4907 = vmul.f32 %v4878, 1.0614054
  %v4908 = vmul.f32 %v4880, 1.0614054
  %v4909 = vmul.f32 %v4882, 1.0614054
  %v4910 = vmul.f32 %v4884, 1.0614054
  %v4911 = vmul.f32 %v4886, 1.0614054
  %v4912 = vmul.f32 %v4888, 1.0614054
  %v4913 = vmul.f32 %v4890, 1.0614054
  %v4914 = vmul.f32 %v4892, 1.0614054
  %v4915 = vmul.f32 %v4894, 1.0614054
  %v4916 = vmul.f32 %v4896, 1.0614054
  %v4917 = vmul.f32 %v4898, 1.0614054
  %v4918 = vmul.f32 %v4900, 1.0614054
  %v4919 = vmul.f32 %v4902, 1.0614054
  %v4920 = vmul.f32 %v4904, 1.0614054
  %v4921 = vadd.f32 %v4905, -1.4531521
  %v4922 = vadd.f32 %v4906, -1.4531521
  %v4923 = vadd.f32 %v4907, -1.4531521
  %v4924 = vadd.f32 %v4908, -1.4531521
  %v4925 = vadd.f32 %v4909, -1.4531521
  %v4926 = vadd.f32 %v4910, -1.4531521
  %v4927 = vadd.f32 %v4911, -1.4531521
  %v4928 = vadd.f32 %v4912, -1.4531521
  %v4929 = vadd.f32 %v4913, -1.4531521
  %v4930 = vadd.f32 %v4914, -1.4531521
  %v4931 = vadd.f32 %v4915, -1.4531521
  %v4932 = vadd.f32 %v4916, -1.4531521
  %v4933 = vadd.f32 %v4917, -1.4531521
  %v4934 = vadd.f32 %v4918, -1.4531521
  %v4935 = vadd.f32 %v4919, -1.4531521
  %v4936 = vadd.f32 %v4920, -1.4531521
  %v4937 = vmul.f32 %v4921, %v4874
  %v4938 = vmul.f32 %v4922, %v4876
  %v4939 = vmul.f32 %v4923, %v4878
  %v4940 = vmul.f32 %v4924, %v4880
  %v4941 = vmul.f32 %v4925, %v4882
  %v4942 = vmul.f32 %v4926, %v4884
  %v4943 = vmul.f32 %v4927, %v4886
  %v4944 = vmul.f32 %v4928, %v4888
  %v4945 = vmul.f32 %v4929, %v4890
  %v4946 = vmul.f32 %v4930, %v4892
  %v4947 = vmul.f32 %v4931, %v4894
  %v4948 = vmul.f32 %v4932, %v4896
  %v4949 = vmul.f32 %v4933, %v4898
  %v4950 = vmul.f32 %v4934, %v4900
  %v4951 = vmul.f32 %v4935, %v4902
  %v4952 = vmul.f32 %v4936, %v4904
  %v4953 = vadd.f32 %v4937, 1.4214138
  %v4954 = vadd.f32 %v4938, 1.4214138
  %v4955 = vadd.f32 %v4939, 1.4214138
  %v4956 = vadd.f32 %v4940, 1.4214138
  %v4957 = vadd.f32 %v4941, 1.4214138
  %v4958 = vadd.f32 %v4942, 1.4214138
  %v4959 = vadd.f32 %v4943, 1.4214138
  %v4960 = vadd.f32 %v4944, 1.4214138
  %v4961 = vadd.f32 %v4945, 1.4214138
  %v4962 = vadd.f32 %v4946, 1.4214138
  %v4963 = vadd.f32 %v4947, 1.4214138
  %v4964 = vadd.f32 %v4948, 1.4214138
  %v4965 = vadd.f32 %v4949, 1.4214138
  %v4966 = vadd.f32 %v4950, 1.4214138
  %v4967 = vadd.f32 %v4951, 1.4214138
  %v4968 = vadd.f32 %v4952, 1.4214138
  %v4969 = vmul.f32 %v4953, %v4874
  %v4970 = vmul.f32 %v4954, %v4876
  %v4971 = vmul.f32 %v4955, %v4878
  %v4972 = vmul.f32 %v4956, %v4880
  %v4973 = vmul.f32 %v4957, %v4882
  %v4974 = vmul.f32 %v4958, %v4884
  %v4975 = vmul.f32 %v4959, %v4886
  %v4976 = vmul.f32 %v4960, %v4888
  %v4977 = vmul.f32 %v4961, %v4890
  %v4978 = vmul.f32 %v4962, %v4892
  %v4979 = vmul.f32 %v4963, %v4894
  %v4980 = vmul.f32 %v4964, %v4896
  %v4981 = vmul.f32 %v4965, %v4898
  %v4982 = vmul.f32 %v4966, %v4900
  %v4983 = vmul.f32 %v4967, %v4902
  %v4984 = vmul.f32 %v4968, %v4904
  %v4985 = vadd.f32 %v4969, -0.28449672
  %v4986 = vadd.f32 %v4970, -0.28449672
  %v4987 = vadd.f32 %v4971, -0.28449672
  %v4988 = vadd.f32 %v4972, -0.28449672
  %v4989 = vadd.f32 %v4973, -0.28449672
  %v4990 = vadd.f32 %v4974, -0.28449672
  %v4991 = vadd.f32 %v4975, -0.28449672
  %v4992 = vadd.f32 %v4976, -0.28449672
  %v4993 = vadd.f32 %v4977, -0.28449672
  %v4994 = vadd.f32 %v4978, -0.28449672
  %v4995 = vadd.f32 %v4979, -0.28449672
  %v4996 = vadd.f32 %v4980, -0.28449672
  %v4997 = vadd.f32 %v4981, -0.28449672
  %v4998 = vadd.f32 %v4982, -0.28449672
  %v4999 = vadd.f32 %v4983, -0.28449672
  %v5000 = vadd.f32 %v4984, -0.28449672
  %v5001 = vmul.f32 %v4985, %v4874
  %v5002 = vmul.f32 %v4986, %v4876
  %v5003 = vmul.f32 %v4987, %v4878
  %v5004 = vmul.f32 %v4988, %v4880
  %v5005 = vmul.f32 %v4989, %v4882
  %v5006 = vmul.f32 %v4990, %v4884
  %v5007 = vmul.f32 %v4991, %v4886
  %v5008 = vmul.f32 %v4992, %v4888
  %v5009 = vmul.f32 %v4993, %v4890
  %v5010 = vmul.f32 %v4994, %v4892
  %v5011 = vmul.f32 %v4995, %v4894
  %v5012 = vmul.f32 %v4996, %v4896
  %v5013 = vmul.f32 %v4997, %v4898
  %v5014 = vmul.f32 %v4998, %v4900
  %v5015 = vmul.f32 %v4999, %v4902
  %v5016 = vmul.f32 %v5000, %v4904
  %v5017 = vadd.f32 %v5001, 0.2548296
  %v5018 = vadd.f32 %v5002, 0.2548296
  %v5019 = vadd.f32 %v5003, 0.2548296
  %v5020 = vadd.f32 %v5004, 0.2548296
  %v5021 = vadd.f32 %v5005, 0.2548296
  %v5022 = vadd.f32 %v5006, 0.2548296
  %v5023 = vadd.f32 %v5007, 0.2548296
  %v5024 = vadd.f32 %v5008, 0.2548296
  %v5025 = vadd.f32 %v5009, 0.2548296
  %v5026 = vadd.f32 %v5010, 0.2548296
  %v5027 = vadd.f32 %v5011, 0.2548296
  %v5028 = vadd.f32 %v5012, 0.2548296
  %v5029 = vadd.f32 %v5013, 0.2548296
  %v5030 = vadd.f32 %v5014, 0.2548296
  %v5031 = vadd.f32 %v5015, 0.2548296
  %v5032 = vadd.f32 %v5016, 0.2548296
  %v5033 = vmul.f32 %v5017, %v4874
  %v5034 = vmul.f32 %v5018, %v4876
  %v5035 = vmul.f32 %v5019, %v4878
  %v5036 = vmul.f32 %v5020, %v4880
  %v5037 = vmul.f32 %v5021, %v4882
  %v5038 = vmul.f32 %v5022, %v4884
  %v5039 = vmul.f32 %v5023, %v4886
  %v5040 = vmul.f32 %v5024, %v4888
  %v5041 = vmul.f32 %v5025, %v4890
  %v5042 = vmul.f32 %v5026, %v4892
  %v5043 = vmul.f32 %v5027, %v4894
  %v5044 = vmul.f32 %v5028, %v4896
  %v5045 = vmul.f32 %v5029, %v4898
  %v5046 = vmul.f32 %v5030, %v4900
  %v5047 = vmul.f32 %v5031, %v4902
  %v5048 = vmul.f32 %v5032, %v4904
  %v5049 = vsub.f32 0.0, %v4825
  %v5050 = vsub.f32 0.0, %v4826
  %v5051 = vsub.f32 0.0, %v4827
  %v5052 = vsub.f32 0.0, %v4828
  %v5053 = vsub.f32 0.0, %v4829
  %v5054 = vsub.f32 0.0, %v4830
  %v5055 = vsub.f32 0.0, %v4831
  %v5056 = vsub.f32 0.0, %v4832
  %v5057 = vsub.f32 0.0, %v4833
  %v5058 = vsub.f32 0.0, %v4834
  %v5059 = vsub.f32 0.0, %v4835
  %v5060 = vsub.f32 0.0, %v4836
  %v5061 = vsub.f32 0.0, %v4837
  %v5062 = vsub.f32 0.0, %v4838
  %v5063 = vsub.f32 0.0, %v4839
  %v5064 = vsub.f32 0.0, %v4840
  %v5065 = vmul.f32 %v5049, %v4825
  %v5066 = vmul.f32 %v5050, %v4826
  %v5067 = vmul.f32 %v5051, %v4827
  %v5068 = vmul.f32 %v5052, %v4828
  %v5069 = vmul.f32 %v5053, %v4829
  %v5070 = vmul.f32 %v5054, %v4830
  %v5071 = vmul.f32 %v5055, %v4831
  %v5072 = vmul.f32 %v5056, %v4832
  %v5073 = vmul.f32 %v5057, %v4833
  %v5074 = vmul.f32 %v5058, %v4834
  %v5075 = vmul.f32 %v5059, %v4835
  %v5076 = vmul.f32 %v5060, %v4836
  %v5077 = vmul.f32 %v5061, %v4837
  %v5078 = vmul.f32 %v5062, %v4838
  %v5079 = vmul.f32 %v5063, %v4839
  %v5080 = vmul.f32 %v5064, %v4840
  %v5081 = vmul.f32 %v5065, 1.442695
  %v5082 = vpow.pop %v5081
  %v5083 = vmul.f32 %v5066, 1.442695
  %v5084 = vpow.pop %v5083
  %v5085 = vmul.f32 %v5067, 1.442695
  %v5086 = vpow.pop %v5085
  %v5087 = vmul.f32 %v5068, 1.442695
  %v5088 = vpow.pop %v5087
  %v5089 = vmul.f32 %v5069, 1.442695
  %v5090 = vpow.pop %v5089
  %v5091 = vmul.f32 %v5070, 1.442695
  %v5092 = vpow.pop %v5091
  %v5093 = vmul.f32 %v5071, 1.442695
  %v5094 = vpow.pop %v5093
  %v5095 = vmul.f32 %v5072, 1.442695
  %v5096 = vpow.pop %v5095
  %v5097 = vmul.f32 %v5073, 1.442695
  %v5098 = vpow.pop %v5097
  %v5099 = vmul.f32 %v5074, 1.442695
  %v5100 = vpow.pop %v5099
  %v5101 = vmul.f32 %v5075, 1.442695
  %v5102 = vpow.pop %v5101
  %v5103 = vmul.f32 %v5076, 1.442695
  %v5104 = vpow.pop %v5103
  %v5105 = vmul.f32 %v5077, 1.442695
  %v5106 = vpow.pop %v5105
  %v5107 = vmul.f32 %v5078, 1.442695
  %v5108 = vpow.pop %v5107
  %v5109 = vmul.f32 %v5079, 1.442695
  %v5110 = vpow.pop %v5109
  %v5111 = vmul.f32 %v5080, 1.442695
  %v5112 = vpow.pop %v5111
  %v5113 = vmul.f32 %v5033, %v5082
  %v5114 = vmul.f32 %v5034, %v5084
  %v5115 = vmul.f32 %v5035, %v5086
  %v5116 = vmul.f32 %v5036, %v5088
  %v5117 = vmul.f32 %v5037, %v5090
  %v5118 = vmul.f32 %v5038, %v5092
  %v5119 = vmul.f32 %v5039, %v5094
  %v5120 = vmul.f32 %v5040, %v5096
  %v5121 = vmul.f32 %v5041, %v5098
  %v5122 = vmul.f32 %v5042, %v5100
  %v5123 = vmul.f32 %v5043, %v5102
  %v5124 = vmul.f32 %v5044, %v5104
  %v5125 = vmul.f32 %v5045, %v5106
  %v5126 = vmul.f32 %v5046, %v5108
  %v5127 = vmul.f32 %v5047, %v5110
  %v5128 = vmul.f32 %v5048, %v5112
  %v5129 = vsub.f32 1.0, %v5113
  %v5130 = vsub.f32 1.0, %v5114
  %v5131 = vsub.f32 1.0, %v5115
  %v5132 = vsub.f32 1.0, %v5116
  %v5133 = vsub.f32 1.0, %v5117
  %v5134 = vsub.f32 1.0, %v5118
  %v5135 = vsub.f32 1.0, %v5119
  %v5136 = vsub.f32 1.0, %v5120
  %v5137 = vsub.f32 1.0, %v5121
  %v5138 = vsub.f32 1.0, %v5122
  %v5139 = vsub.f32 1.0, %v5123
  %v5140 = vsub.f32 1.0, %v5124
  %v5141 = vsub.f32 1.0, %v5125
  %v5142 = vsub.f32 1.0, %v5126
  %v5143 = vsub.f32 1.0, %v5127
  %v5144 = vsub.f32 1.0, %v5128
  %v5145 = vmul.f32 %v4809, %v5129
  %v5146 = vmul.f32 %v4810, %v5130
  %v5147 = vmul.f32 %v4811, %v5131
  %v5148 = vmul.f32 %v4812, %v5132
  %v5149 = vmul.f32 %v4813, %v5133
  %v5150 = vmul.f32 %v4814, %v5134
  %v5151 = vmul.f32 %v4815, %v5135
  %v5152 = vmul.f32 %v4816, %v5136
  %v5153 = vmul.f32 %v4817, %v5137
  %v5154 = vmul.f32 %v4818, %v5138
  %v5155 = vmul.f32 %v4819, %v5139
  %v5156 = vmul.f32 %v4820, %v5140
  %v5157 = vmul.f32 %v4821, %v5141
  %v5158 = vmul.f32 %v4822, %v5142
  %v5159 = vmul.f32 %v4823, %v5143
  %v5160 = vmul.f32 %v4824, %v5144
  %v5161 = vadd.f32 %v5145, 1.0
  %v5162 = vadd.f32 %v5146, 1.0
  %v5163 = vadd.f32 %v5147, 1.0
  %v5164 = vadd.f32 %v5148, 1.0
  %v5165 = vadd.f32 %v5149, 1.0
  %v5166 = vadd.f32 %v5150, 1.0
  %v5167 = vadd.f32 %v5151, 1.0
  %v5168 = vadd.f32 %v5152, 1.0
  %v5169 = vadd.f32 %v5153, 1.0
  %v5170 = vadd.f32 %v5154, 1.0
  %v5171 = vadd.f32 %v5155, 1.0
  %v5172 = vadd.f32 %v5156, 1.0
  %v5173 = vadd.f32 %v5157, 1.0
  %v5174 = vadd.f32 %v5158, 1.0
  %v5175 = vadd.f32 %v5159, 1.0
  %v5176 = vadd.f32 %v5160, 1.0
  %v5177 = vmul.f32 %v4761, %v5161
  %v5178 = vmul.f32 %v4762, %v5162
  %v5179 = vmul.f32 %v4763, %v5163
  %v5180 = vmul.f32 %v4764, %v5164
  %v5181 = vmul.f32 %v4765, %v5165
  %v5182 = vmul.f32 %v4766, %v5166
  %v5183 = vmul.f32 %v4767, %v5167
  %v5184 = vmul.f32 %v4768, %v5168
  %v5185 = vmul.f32 %v4769, %v5169
  %v5186 = vmul.f32 %v4770, %v5170
  %v5187 = vmul.f32 %v4771, %v5171
  %v5188 = vmul.f32 %v4772, %v5172
  %v5189 = vmul.f32 %v4773, %v5173
  %v5190 = vmul.f32 %v4774, %v5174
  %v5191 = vmul.f32 %v4775, %v5175
  %v5192 = vmul.f32 %v4776, %v5176
  %v5193 = vld [vmem:[%s14] sm:$0xff]
  %v5194 = vld [vmem:[%s14 + $0x8] sm:$0xff]
  %v5195 = vld [vmem:[%s14 + $0x10] sm:$0xff]
  %v5196 = vld [vmem:[%s14 + $0x18] sm:$0xff]
  %v5197 = vld [vmem:[%s14 + $0x20] sm:$0xff]
  %v5198 = vld [vmem:[%s14 + $0x28] sm:$0xff]
  %v5199 = vld [vmem:[%s14 + $0x30] sm:$0xff]
  %v5200 = vld [vmem:[%s14 + $0x38] sm:$0xff]
  %v5201 = vld [vmem:[%s14 + $0x40] sm:$0xff]
  %v5202 = vld [vmem:[%s14 + $0x48] sm:$0xff]
  %v5203 = vld [vmem:[%s14 + $0x50] sm:$0xff]
  %v5204 = vld [vmem:[%s14 + $0x58] sm:$0xff]
  %v5205 = vld [vmem:[%s14 + $0x60] sm:$0xff]
  %v5206 = vld [vmem:[%s14 + $0x68] sm:$0xff]
  %v5207 = vld [vmem:[%s14 + $0x70] sm:$0xff]
  %v5208 = vld [vmem:[%s14 + $0x78] sm:$0xff]
  %5209 = vmatprep.subr.mxu0 0.0
  %5210 = vmatpush1.msra.mxu0 %v5193
  %5211 = vmatprep.subr.mxu0 0.0
  %5212 = vmatpush1.msra.mxu0 %v5194
  %5213 = vmatprep.subr.mxu0 0.0
  %5214 = vmatpush1.msra.mxu0 %v5195
  %5215 = vmatprep.subr.mxu0 0.0
  %5216 = vmatpush1.msra.mxu0 %v5196
  %5217 = vmatprep.subr.mxu0 0.0
  %5218 = vmatpush1.msra.mxu0 %v5197
  %5219 = vmatprep.subr.mxu0 0.0
  %5220 = vmatpush1.msra.mxu0 %v5198
  %5221 = vmatprep.subr.mxu0 0.0
  %5222 = vmatpush1.msra.mxu0 %v5199
  %5223 = vmatprep.subr.mxu0 0.0
  %5224 = vmatpush1.msra.mxu0 %v5200
  %5225 = vmatprep.subr.mxu0 0.0
  %5226 = vmatpush1.msra.mxu0 %v5201
  %5227 = vmatprep.subr.mxu0 0.0
  %5228 = vmatpush1.msra.mxu0 %v5202
  %5229 = vmatprep.subr.mxu0 0.0
  %5230 = vmatpush1.msra.mxu0 %v5203
  %5231 = vmatprep.subr.mxu0 0.0
  %5232 = vmatpush1.msra.mxu0 %v5204
  %5233 = vmatprep.subr.mxu0 0.0
  %5234 = vmatpush1.msra.mxu0 %v5205
  %5235 = vmatprep.subr.mxu0 0.0
  %5236 = vmatpush1.msra.mxu0 %v5206
  %5237 = vmatprep.subr.mxu0 0.0
  %5238 = vmatpush1.msra.mxu0 %v5207
  %5239 = vmatprep.subr.mxu0 0.0
  %5240 = vmatpush1.msra.mxu0 %v5208
  %5241 = vmatprep.subr.mxu0 0.0
  %5242 = vmatpush1.msra.mxu0 0.0
  %5243 = vmatprep.subr.mxu0 0.0
  %5244 = vmatpush1.msra.mxu0 0.0
  %5245 = vmatprep.subr.mxu0 0.0
  %5246 = vmatpush1.msra.mxu0 0.0
  %5247 = vmatprep.subr.mxu0 0.0
  %5248 = vmatpush1.msra.mxu0 0.0
  %5249 = vmatprep.subr.mxu0 0.0
  %5250 = vmatpush1.msra.mxu0 0.0
  %5251 = vmatprep.subr.mxu0 0.0
  %5252 = vmatpush1.msra.mxu0 0.0
  %5253 = vmatprep.subr.mxu0 0.0
  %5254 = vmatpush1.msra.mxu0 0.0
  %5255 = vmatprep.subr.mxu0 0.0
  %5256 = vmatpush1.msra.mxu0 0.0
  %5257 = vmatprep.subr.mxu0 0.0
  %5258 = vmatpush1.msra.mxu0 0.0
  %5259 = vmatprep.subr.mxu0 0.0
  %5260 = vmatpush1.msra.mxu0 0.0
  %5261 = vmatprep.subr.mxu0 0.0
  %5262 = vmatpush1.msra.mxu0 0.0
  %5263 = vmatprep.subr.mxu0 0.0
  %5264 = vmatpush1.msra.mxu0 0.0
  %5265 = vmatprep.subr.mxu0 0.0
  %5266 = vmatpush1.msra.mxu0 0.0
  %5267 = vmatprep.subr.mxu0 0.0
  %5268 = vmatpush1.msra.mxu0 0.0
  %5269 = vmatprep.subr.mxu0 0.0
  %5270 = vmatpush1.msra.mxu0 0.0
  %5271 = vmatprep.subr.mxu0 0.0
  %5272 = vmatpush1.msra.mxu0 0.0
  %5273 = vmatprep.mubr.f32.mxu0 0.0
  %5274 = vmatmul.mubr.f32.gmra.mrb[0].mxu0 %v5177
  %v5275 = vpop.f32.mrb[0].mxu0
  %v5276 = vadd.f32 0.0, %v5275
  %v5277 = vpop.f32.mrb[0].mxu0
  %5278 = vmatprep.mubr.f32.mxu0 0.0
  %5279 = vmatmul.mubr.f32.gmra.mrb[0].mxu0 %v5178
  %v5280 = vpop.f32.mrb[0].mxu0
  %v5281 = vadd.f32 0.0, %v5280
  %v5282 = vpop.f32.mrb[0].mxu0
  %5283 = vmatprep.mubr.f32.mxu0 0.0
  %5284 = vmatmul.mubr.f32.gmra.mrb[0].mxu0 %v5179
  %v5285 = vpop.f32.mrb[0].mxu0
  %v5286 = vadd.f32 0.0, %v5285
  %v5287 = vpop.f32.mrb[0].mxu0
  %5288 = vmatprep.mubr.f32.mxu0 0.0
  %5289 = vmatmul.mubr.f32.gmra.mrb[0].mxu0 %v5180
  %v5290 = vpop.f32.mrb[0].mxu0
  %v5291 = vadd.f32 0.0, %v5290
  %v5292 = vpop.f32.mrb[0].mxu0
  %5293 = vmatprep.mubr.f32.mxu0 0.0
  %5294 = vmatmul.mubr.f32.gmra.mrb[0].mxu0 %v5181
  %v5295 = vpop.f32.mrb[0].mxu0
  %v5296 = vadd.f32 0.0, %v5295
  %v5297 = vpop.f32.mrb[0].mxu0
  %5298 = vmatprep.mubr.f32.mxu0 0.0
  %5299 = vmatmul.mubr.f32.gmra.mrb[0].mxu0 %v5182
  %v5300 = vpop.f32.mrb[0].mxu0
  %v5301 = vadd.f32 0.0, %v5300
  %v5302 = vpop.f32.mrb[0].mxu0
  %5303 = vmatprep.mubr.f32.mxu0 0.0
  %5304 = vmatmul.mubr.f32.gmra.mrb[0].mxu0 %v5183
  %v5305 = vpop.f32.mrb[0].mxu0
  %v5306 = vadd.f32 0.0, %v5305
  %v5307 = vpop.f32.mrb[0].mxu0
  %5308 = vmatprep.mubr.f32.mxu0 0.0
  %5309 = vmatmul.mubr.f32.gmra.mrb[0].mxu0 %v5184
  %v5310 = vpop.f32.mrb[0].mxu0
  %v5311 = vadd.f32 0.0, %v5310
  %v5312 = vpop.f32.mrb[0].mxu0
  %5313 = vmatprep.mubr.f32.mxu0 0.0
  %5314 = vmatmul.mubr.f32.gmra.mrb[0].mxu0 %v5185
  %v5315 = vpop.f32.mrb[0].mxu0
  %v5316 = vadd.f32 0.0, %v5315
  %v5317 = vpop.f32.mrb[0].mxu0
  %5318 = vmatprep.mubr.f32.mxu0 0.0
  %5319 = vmatmul.mubr.f32.gmra.mrb[0].mxu0 %v5186
  %v5320 = vpop.f32.mrb[0].mxu0
  %v5321 = vadd.f32 0.0, %v5320
  %v5322 = vpop.f32.mrb[0].mxu0
  %5323 = vmatprep.mubr.f32.mxu0 0.0
  %5324 = vmatmul.mubr.f32.gmra.mrb[0].mxu0 %v5187
  %v5325 = vpop.f32.mrb[0].mxu0
  %v5326 = vadd.f32 0.0, %v5325
  %v5327 = vpop.f32.mrb[0].mxu0
  %5328 = vmatprep.mubr.f32.mxu0 0.0
  %5329 = vmatmul.mubr.f32.gmra.mrb[0].mxu0 %v5188
  %v5330 = vpop.f32.mrb[0].mxu0
  %v5331 = vadd.f32 0.0, %v5330
  %v5332 = vpop.f32.mrb[0].mxu0
  %5333 = vmatprep.mubr.f32.mxu0 0.0
  %5334 = vmatmul.mubr.f32.gmra.mrb[0].mxu0 %v5189
  %v5335 = vpop.f32.mrb[0].mxu0
  %v5336 = vadd.f32 0.0, %v5335
  %v5337 = vpop.f32.mrb[0].mxu0
  %5338 = vmatprep.mubr.f32.mxu0 0.0
  %5339 = vmatmul.mubr.f32.gmra.mrb[0].mxu0 %v5190
  %v5340 = vpop.f32.mrb[0].mxu0
  %v5341 = vadd.f32 0.0, %v5340
  %v5342 = vpop.f32.mrb[0].mxu0
  %5343 = vmatprep.mubr.f32.mxu0 0.0
  %5344 = vmatmul.mubr.f32.gmra.mrb[0].mxu0 %v5191
  %v5345 = vpop.f32.mrb[0].mxu0
  %v5346 = vadd.f32 0.0, %v5345
  %v5347 = vpop.f32.mrb[0].mxu0
  %5348 = vmatprep.mubr.f32.mxu0 0.0
  %5349 = vmatmul.mubr.f32.gmra.mrb[0].mxu0 %v5192
  %v5350 = vpop.f32.mrb[0].mxu0
  %v5351 = vadd.f32 0.0, %v5350
  %v5352 = vpop.f32.mrb[0].mxu0
  %5353 = vdwg.mxu0
  %v5354 = vadd.f32 %v4255, %v5276
  %v5355 = vadd.f32 %v4256, %v5281
  %v5356 = vadd.f32 %v4257, %v5286
  %v5357 = vadd.f32 %v4258, %v5291
  %v5358 = vadd.f32 %v4259, %v5296
  %v5359 = vadd.f32 %v4260, %v5301
  %v5360 = vadd.f32 %v4261, %v5306
  %v5361 = vadd.f32 %v4262, %v5311
  %v5362 = vadd.f32 %v4263, %v5316
  %v5363 = vadd.f32 %v4264, %v5321
  %v5364 = vadd.f32 %v4265, %v5326
  %v5365 = vadd.f32 %v4266, %v5331
  %v5366 = vadd.f32 %v4267, %v5336
  %v5367 = vadd.f32 %v4268, %v5341
  %v5368 = vadd.f32 %v4269, %v5346
  %v5369 = vadd.f32 %v4270, %v5351
  %v5370 = vld [vmem:[%s15] sm:$0x1]
  %v5372 = vlaneseq
  %v5373 = vshrl.u32 %v5372, 7
  %v5374 = vsub.s32 0, %v5373
  %v5375 = vrot.slane %v5370, %v5374
  %v5377 = vadd.f32 %v5354, %v5375
  %v5378 = vadd.f32 %v5355, %v5375
  %v5379 = vadd.f32 %v5356, %v5375
  %v5380 = vadd.f32 %v5357, %v5375
  %v5381 = vadd.f32 %v5358, %v5375
  %v5382 = vadd.f32 %v5359, %v5375
  %v5383 = vadd.f32 %v5360, %v5375
  %v5384 = vadd.f32 %v5361, %v5375
  %v5385 = vadd.f32 %v5362, %v5375
  %v5386 = vadd.f32 %v5363, %v5375
  %v5387 = vadd.f32 %v5364, %v5375
  %v5388 = vadd.f32 %v5365, %v5375
  %v5389 = vadd.f32 %v5366, %v5375
  %v5390 = vadd.f32 %v5367, %v5375
  %v5391 = vadd.f32 %v5368, %v5375
  %v5392 = vadd.f32 %v5369, %v5375
  %5393 = vst.msk [vmem:[%s16] sm:$0xff] %vm69, %v5377
  %5394 = vst.msk [vmem:[%s16 + $0x8] sm:$0xff] %vm69, %v5378
  %5395 = vst.msk [vmem:[%s16 + $0x10] sm:$0xff] %vm69, %v5379
  %5396 = vst.msk [vmem:[%s16 + $0x18] sm:$0xff] %vm69, %v5380
  %5397 = vst.msk [vmem:[%s16 + $0x20] sm:$0xff] %vm69, %v5381
  %5398 = vst.msk [vmem:[%s16 + $0x28] sm:$0xff] %vm69, %v5382
  %5399 = vst.msk [vmem:[%s16 + $0x30] sm:$0xff] %vm69, %v5383
  %5400 = vst.msk [vmem:[%s16 + $0x38] sm:$0xff] %vm69, %v5384
  %5401 = vst.msk [vmem:[%s16 + $0x40] sm:$0xff] %vm69, %v5385
  %5402 = vst.msk [vmem:[%s16 + $0x48] sm:$0xff] %vm69, %v5386
  %5403 = vst.msk [vmem:[%s16 + $0x50] sm:$0xff] %vm69, %v5387
  %5404 = vst.msk [vmem:[%s16 + $0x58] sm:$0xff] %vm69, %v5388
  %5405 = vst.msk [vmem:[%s16 + $0x60] sm:$0xff] %vm69, %v5389
  %5406 = vst.msk [vmem:[%s16 + $0x68] sm:$0xff] %vm69, %v5390
  %5407 = vst.msk [vmem:[%s16 + $0x70] sm:$0xff] %vm69, %v5391
  %5408 = vst.msk [vmem:[%s16 + $0x78] sm:$0xff] %vm69, %v5392
  // Predicated region
  $region66: #{tpu_custom_call.1} parent=0 // pred_check
    _
  $region67: #{tpu_custom_call.1} parent=0 // pred_check_branch
    %5410 = sbr.rel (0) target = $region69
  $region68: #{tpu_custom_call.1} parent=0 // pred_region
    _
  $region69: #{tpu_custom_call.1} parent=0 // pred_fallthru
    _
  // Predicated region
  $region70: #{tpu_custom_call.1} parent=0 // pred_check
    _
  $region71: #{tpu_custom_call.1} parent=0 // pred_check_branch
    %5412 = sbr.rel (0) target = $region73
  $region72: #{tpu_custom_call.1} parent=0 // pred_region
    _
  $region73: #{tpu_custom_call.1} parent=0 // pred_fallthru
    _

</llo_original>
